<compile_context>
chip_gen: v7x
topology: tpu7x:2x2x1
jax: 0.10.0
libtpu: 0.0.40
codegen_flags: <defaults>
</compile_context>

<pallas_src>
import math
from functools import partial

import numpy as np
import jax
import jax.numpy as jnp
from jax.experimental import pallas as pl
from jax.experimental.pallas import tpu as pltpu


def _round_up(x, m):
    return (x + m - 1) // m * m


def _pad_gate_cols(w, H, Hp):
    """(..., 4H) -> (..., 4Hp): zero-pad each of the 4 gate blocks from H to Hp columns."""
    if Hp == H:
        return w
    parts = jnp.split(w, 4, axis=-1)
    pad = [(0, 0)] * (w.ndim - 1) + [(0, Hp - H)]
    return jnp.concatenate([jnp.pad(p, pad) for p in parts], axis=-1)


def _make_bilstm_kernel(*, n_parts, CT, Bp, Hp, NC):
    """Fused forward+backward LSTM layer kernel. grid = (direction, time-chunk)."""
    G = 4 * Hp

    def kernel(*args):
        x_refs = args[:n_parts]                              # each (CT, Bp, Din_part)
        len_ref = args[n_parts]                              # (Bp, 1) int32
        w_ih_refs = args[n_parts + 1: 2 * n_parts + 1]       # each (Din_part, 4Hp) bf16
        w_hh_ref = args[2 * n_parts + 1]                     # (Hp, 4Hp) bf16
        b_ref = args[2 * n_parts + 2]                        # (1, 4Hp) f32
        out_ref = args[2 * n_parts + 3]                      # (CT, Bp, Hp) f32
        gx_scr, h_scr, c_scr = args[2 * n_parts + 4:]

        d = pl.program_id(0)          # 0 = forward, 1 = backward
        c = pl.program_id(1)          # chunk index along (possibly reversed) time

        @pl.when(c == 0)
        def _():
            h_scr[...] = jnp.zeros_like(h_scr)
            c_scr[...] = jnp.zeros_like(c_scr)

        # ---- hoisted input projection: one large MXU matmul per chunk (bf16 in, f32 acc) ----
        gx = None
        for xr, wr in zip(x_refs, w_ih_refs):
            xp = xr[...].reshape(CT * Bp, xr.shape[-1]).astype(jnp.bfloat16)
            part = jnp.dot(xp, wr[...], preferred_element_type=jnp.float32)
            gx = part if gx is None else gx + part
        gx = gx + b_ref[...]
        gx_scr[...] = gx.reshape(CT, Bp, G)

        # loop-invariant loads (outside the recurrent loop)
        lens = len_ref[...]                                   # (Bp, 1) int32
        w_hh = w_hh_ref[...]                                  # (Hp, 4Hp) bf16

        g_chunk = (1 - d) * c + d * (NC - 1 - c)              # global chunk index
        t_base = g_chunk * CT

        def step(i, carry):
            lt = jnp.where(d == 0, i, CT - 1 - i)             # local time inside chunk
            t = t_base + lt                                   # global time
            valid = lens > t                                  # (Bp, 1) bool mask

            gates = gx_scr[lt] + jnp.dot(
                h_scr[...].astype(jnp.bfloat16), w_hh,
                preferred_element_type=jnp.float32)           # (Bp, 4Hp) f32
            # lane-aligned gate slices (Hp is a multiple of 128)
            i_g = jax.nn.sigmoid(gates[:, 0 * Hp:1 * Hp])
            f_g = jax.nn.sigmoid(gates[:, 1 * Hp:2 * Hp])
            g_g = jnp.tanh(gates[:, 2 * Hp:3 * Hp])
            o_g = jax.nn.sigmoid(gates[:, 3 * Hp:4 * Hp])

            c_new = f_g * c_scr[...] + i_g * g_g
            h_new = o_g * jnp.tanh(c_new)

            # packed-sequence semantics via a single select per state
            c_scr[...] = jnp.where(valid, c_new, c_scr[...])
            h_scr[...] = jnp.where(valid, h_new, h_scr[...])
            out_ref[lt] = jnp.where(valid, h_new, 0.0).astype(out_ref.dtype)
            return carry

        unroll = CT if CT <= 16 else 8
        jax.lax.fori_loop(0, CT, step, 0, unroll=unroll)

    return kernel


def _bilstm_layer(x, bidir_input, lens, w_ih_parts, w_hh2, bias2, *, CT, NC, T_pad, Bp, Hp):
    """One bidirectional LSTM layer. Returns (2, T_pad, Bp, Hp): slab 0 = fwd, 1 = bwd."""
    G = 4 * Hp
    n_parts = len(w_ih_parts)

    def gidx(d, c):
        # forward walks chunks 0..NC-1; backward walks NC-1..0
        return (1 - d) * c + d * (NC - 1 - c)

    if bidir_input:
        # previous layer output (2, T_pad, Bp, Hp): read both slabs as two views
        x_args = [x] * n_parts
        x_specs = [
            pl.BlockSpec((None, CT, Bp, Hp), lambda d, c, p=p: (p, gidx(d, c), 0, 0))
            for p in range(n_parts)
        ]
    else:
        Din = int(x.shape[-1])
        x_args = [x]
        x_specs = [pl.BlockSpec((CT, Bp, Din), lambda d, c: (gidx(d, c), 0, 0))]

    w_ih_specs = [
        pl.BlockSpec((None,) + tuple(int(s) for s in w.shape[1:]), lambda d, c: (d, 0, 0))
        for w in w_ih_parts
    ]
    w_hh_spec = pl.BlockSpec((None, Hp, G), lambda d, c: (d, 0, 0))
    b_spec = pl.BlockSpec((None, 1, G), lambda d, c: (d, 0, 0))
    len_spec = pl.BlockSpec((Bp, 1), lambda d, c: (0, 0))
    out_spec = pl.BlockSpec((None, CT, Bp, Hp), lambda d, c: (d, gidx(d, c), 0, 0))

    # rough VMEM footprint (double-buffered blocks + weights + scratch) -> scoped limit
    est = 0
    for a in x_args:
        est += 2 * CT * Bp * int(a.shape[-1]) * 4
    for w in w_ih_parts:
        est += 2 * int(w.shape[1]) * G * 2
    est += 2 * Hp * G * 2 + 2 * G * 4 + 2 * Bp * 4
    est += 2 * CT * Bp * Hp * 4
    est += CT * Bp * G * 4 + 2 * Bp * Hp * 4
    vmem_limit = int(min(100 * 2**20, max(16 * 2**20, 2 * est)))

    kernel = _make_bilstm_kernel(n_parts=n_parts, CT=CT, Bp=Bp, Hp=Hp, NC=NC)

    return pl.pallas_call(
        kernel,
        out_shape=jax.ShapeDtypeStruct((2, T_pad, Bp, Hp), jnp.float32),
        grid_spec=pltpu.PrefetchScalarGridSpec(
            num_scalar_prefetch=0,
            grid=(2, NC),
            in_specs=x_specs + [len_spec] + w_ih_specs + [w_hh_spec, b_spec],
            out_specs=out_spec,
            scratch_shapes=[
                pltpu.VMEM((CT, Bp, G), jnp.float32),   # hoisted input-projection gates
                pltpu.VMEM((Bp, Hp), jnp.float32),      # h state (carries across chunks)
                pltpu.VMEM((Bp, Hp), jnp.float32),      # c state
            ]),
        compiler_params=pltpu.CompilerParams(
            dimension_semantics=("parallel", "arbitrary"),
            vmem_limit_bytes=vmem_limit),
    )(*x_args, lens, *w_ih_parts, w_hh2, bias2)


def _prep_layer_weights(layer_params, H, Hp, first_layer):
    """PyTorch-layout per-direction weights -> stacked, gate-padded, bf16 slabs."""
    n_parts = 1 if first_layer else 2
    parts_acc = [[] for _ in range(n_parts)]
    w_hh_dir, b_dir = [], []
    for (w_ih, w_hh, b_ih, b_hh) in layer_params:
        w_ih_t = jnp.transpose(w_ih)                       # (Din_total, 4H)
        if first_layer:
            parts = [w_ih_t]                               # (D, 4H)
        else:
            parts = [w_ih_t[:H], w_ih_t[H:]]               # fwd-feature / bwd-feature halves
        for acc, p in zip(parts_acc, parts):
            p = _pad_gate_cols(p, H, Hp)                   # (Din_part, 4Hp)
            if not first_layer and Hp != H:
                p = jnp.pad(p, ((0, Hp - H), (0, 0)))      # prev-layer features padded to Hp
            acc.append(p.astype(jnp.bfloat16))

        whh = _pad_gate_cols(jnp.transpose(w_hh), H, Hp)   # (H, 4Hp)
        if Hp != H:
            whh = jnp.pad(whh, ((0, Hp - H), (0, 0)))      # (Hp, 4Hp)
        w_hh_dir.append(whh.astype(jnp.bfloat16))

        b_dir.append(_pad_gate_cols((b_ih + b_hh).reshape(1, 4 * H), H, Hp))  # (1, 4Hp) f32

    w_ih_parts = [jnp.stack(acc, axis=0) for acc in parts_acc]   # (2, Din_part, 4Hp) bf16
    w_hh2 = jnp.stack(w_hh_dir, axis=0)                          # (2, Hp, 4Hp) bf16
    bias2 = jnp.stack(b_dir, axis=0)                             # (2, 1, 4Hp) f32
    return w_ih_parts, w_hh2, bias2


def rnn_encoder_forward(x, lengths, params, drop_prob=0.0, chunk_T=64):
    """Pallas implementation of RNNEncoder.forward.

    x: (B, T, input_size), lengths: (B,) int32.  Returns (B, T, 2*hidden_size).
    The sort/pack/unsort in the PyTorch code is a cuDNN perf trick; explicit length
    masking is order-independent, so it is omitted.
    """
    B, T, _ = x.shape
    H = params[0][0][1].shape[1]                 # w_hh is (4H, H)
    Hp = _round_up(H, 128)                       # lane-aligned hidden size
    Bp = _round_up(B, 8)                         # sublane-aligned batch
    CT = min(chunk_T, T)
    T_pad = _round_up(T, CT)
    NC = T_pad // CT

    # TODO(synk): fold the batch-first <-> time-major transposes into BlockSpec index_maps
    # (currently two XLA layout passes, one at entry and one at exit).
    x_tm = jnp.transpose(x, (1, 0, 2)).astype(jnp.float32)          # (T, B, D)
    x_tm = jnp.pad(x_tm, ((0, T_pad - T), (0, Bp - B), (0, 0)))
    lens = jnp.pad(lengths.astype(jnp.int32), (0, Bp - B)).reshape(Bp, 1)

    layer_in = x_tm
    bidir_input = False
    for li, layer_params in enumerate(params):
        w_ih_parts, w_hh2, bias2 = _prep_layer_weights(layer_params, H, Hp, first_layer=(li == 0))
        layer_in = _bilstm_layer(layer_in, bidir_input, lens, w_ih_parts, w_hh2, bias2,
                                 CT=CT, NC=NC, T_pad=T_pad, Bp=Bp, Hp=Hp)
        bidir_input = True
        # TODO(synk): inter-layer / output dropout skipped (eval mode, drop_prob=0.0).
        # TODO(synk): intermediate layer activations could be stored bf16 (halves HBM
        # traffic, matmul operands are bf16 anyway) once Bp is a 16-sublane multiple.

    fwd = layer_in[0, :T, :B, :H]                # (T, B, H)
    bwd = layer_in[1, :T, :B, :H]
    y = jnp.concatenate([fwd, bwd], axis=-1)     # (T, B, 2H) -- final strip of padding only
    return jnp.transpose(y, (1, 0, 2))           # (B, T, 2H)


# ----------------------------- pure-JAX reference -----------------------------
def _ref_lstm_direction(x_tbd, lengths, w_ih, w_hh, b_ih, b_hh, reverse):
    T, B, _ = x_tbd.shape
    H = w_hh.shape[1]
    h = jnp.zeros((B, H), jnp.float32)
    c = jnp.zeros((B, H), jnp.float32)
    out = [None] * T
    order = range(T - 1, -1, -1) if reverse else range(T)
    for t in order:
        m = (lengths > t).astype(jnp.float32)[:, None]
        gates = x_tbd[t] @ w_ih.T + h @ w_hh.T + b_ih + b_hh
        i_g = jax.nn.sigmoid(gates[:, 0 * H:1 * H])
        f_g = jax.nn.sigmoid(gates[:, 1 * H:2 * H])
        g_g = jnp.tanh(gates[:, 2 * H:3 * H])
        o_g = jax.nn.sigmoid(gates[:, 3 * H:4 * H])
        c_new = f_g * c + i_g * g_g
        h_new = o_g * jnp.tanh(c_new)
        c = m * c_new + (1.0 - m) * c
        h = m * h_new + (1.0 - m) * h
        out[t] = m * h_new
    return jnp.stack(out, axis=0)


def rnn_encoder_reference(x, lengths, params):
    B, T, _ = x.shape
    inp = jnp.transpose(x, (1, 0, 2)).astype(jnp.float32)
    for layer_params in params:
        outs = [
            _ref_lstm_direction(inp, lengths, *p, reverse=(d == 1))
            for d, p in enumerate(layer_params)
        ]
        inp = jnp.concatenate(outs, axis=-1)
    return jnp.transpose(inp, (1, 0, 2))


# ------------------------------- param init -----------------------------------
def init_params(key, input_size, hidden_size, num_layers):
    """Deterministic init matching nn.LSTM shapes: U(-1/sqrt(H), 1/sqrt(H))."""
    bound = 1.0 / math.sqrt(hidden_size)
    params = []
    for layer in range(num_layers):
        in_sz = input_size if layer == 0 else 2 * hidden_size
        layer_p = []
        for _direction in range(2):
            key, k1, k2, k3, k4 = jax.random.split(key, 5)
            w_ih = jax.random.uniform(k1, (4 * hidden_size, in_sz), jnp.float32, -bound, bound)
            w_hh = jax.random.uniform(k2, (4 * hidden_size, hidden_size), jnp.float32, -bound, bound)
            b_ih = jax.random.uniform(k3, (4 * hidden_size,), jnp.float32, -bound, bound)
            b_hh = jax.random.uniform(k4, (4 * hidden_size,), jnp.float32, -bound, bound)
            layer_p.append((w_ih, w_hh, b_ih, b_hh))
        params.append(layer_p)
    return params


if __name__ == "__main__":
    B, T, input_size, hidden_size, num_layers = 3, 8, 16, 32, 2

    key = jax.random.PRNGKey(0)
    kx, kp = jax.random.split(key)
    x = jax.random.normal(kx, (B, T, input_size), jnp.float32)
    lengths = jnp.array([8, 5, 3], dtype=jnp.int32)
    params = init_params(kp, input_size, hidden_size, num_layers)

    # chunk_T=4 -> 2 time-chunks per direction, exercising the chunked grid + state carry.
    # The whole forward (padding/transposes + both layer pallas_calls) runs as one jit program.
    fwd_fn = jax.jit(partial(rnn_encoder_forward, drop_prob=0.0, chunk_T=4))
    out = jax.block_until_ready(fwd_fn(x, lengths, params))

    assert out.shape == (B, T, 2 * hidden_size), out.shape

    ref = jax.block_until_ready(rnn_encoder_reference(x, lengths, params))
    # matmuls use bf16 operands with f32 accumulation -> relaxed tolerance vs f32 reference
    np.testing.assert_allclose(np.asarray(out), np.asarray(ref), rtol=2e-2, atol=2e-2)

    # padded positions must be exactly zero (pad_packed_sequence semantics)
    for b, L in enumerate(np.asarray(lengths)):
        assert np.all(np.asarray(out)[b, L:, :] == 0.0)

    print("KERNEL_OK")
</pallas_src>

<mosaic_0001>
module attributes {stable_mosaic.version = 11 : i64} {
  func.func @kernel(%arg0: i32, %arg1: i32, %arg2: memref<4x8x16xf32, #tpu.memory_space<vmem>>, %arg3: memref<8x1xi32, #tpu.memory_space<vmem>>, %arg4: memref<1x16x512xbf16, #tpu.memory_space<vmem>>, %arg5: memref<1x128x512xbf16, #tpu.memory_space<vmem>>, %arg6: memref<1x1x512xf32, #tpu.memory_space<vmem>>, %arg7: memref<1x4x8x128xf32, #tpu.memory_space<vmem>>, %arg8: memref<4x8x512xf32, #tpu.memory_space<vmem>>, %arg9: memref<8x128xf32, #tpu.memory_space<vmem>>, %arg10: memref<8x128xf32, #tpu.memory_space<vmem>>) attributes {dimension_semantics = [#tpu.dimension_semantics<parallel>, #tpu.dimension_semantics<arbitrary>], iteration_bounds = array<i64: 2, 2>, scalar_prefetch = 0 : i64, scratch_operands = 3 : i64, tpu.core_type = #tpu.core_type<tc>, window_params = [{transform_indices = @transform_0, window_bounds = array<i64: 4, 8, 16>}, {pipeline_mode = #tpu.pipeline_mode<synchronous>, transform_indices = @transform_1, window_bounds = array<i64: 8, 1>}, {transform_indices = @transform_2, window_bounds = array<i64: 1, 16, 512>}, {transform_indices = @transform_3, window_bounds = array<i64: 1, 128, 512>}, {transform_indices = @transform_4, window_bounds = array<i64: 1, 1, 512>}, {transform_indices = @transform_5, window_bounds = array<i64: 1, 4, 8, 128>}]} {
    %c0_i32 = arith.constant 0 : i32
    %0 = arith.cmpi eq, %arg1, %c0_i32 : i32
    %1 = arith.extui %0 : i1 to i32
    %c0_i32_0 = arith.constant 0 : i32
    %2 = arith.cmpi ne, %1, %c0_i32_0 : i32
    scf.if %2 {
      %cst_117 = arith.constant 0.000000e+00 : f32
      %252 = vector.broadcast %cst_117 : f32 to vector<8x128xf32>
      %c0_118 = arith.constant 0 : index
      %c0_119 = arith.constant 0 : index
      %253 = vector.load %arg9[%c0_118, %c0_119] : memref<8x128xf32, #tpu.memory_space<vmem>>, vector<8x128xf32>
      tpu.vector_store %arg9[%c0_118, %c0_119], %252 {strides = array<i32>} : memref<8x128xf32, #tpu.memory_space<vmem>>, vector<8x128xf32>,
      %cst_120 = arith.constant 0.000000e+00 : f32
      %254 = vector.broadcast %cst_120 : f32 to vector<8x128xf32>
      %c0_121 = arith.constant 0 : index
      %c0_122 = arith.constant 0 : index
      %255 = vector.load %arg10[%c0_121, %c0_122] : memref<8x128xf32, #tpu.memory_space<vmem>>, vector<8x128xf32>
      tpu.vector_store %arg10[%c0_121, %c0_122], %254 {strides = array<i32>} : memref<8x128xf32, #tpu.memory_space<vmem>>, vector<8x128xf32>,
    } else {
    }
    %c0 = arith.constant 0 : index
    %c0_1 = arith.constant 0 : index
    %c0_2 = arith.constant 0 : index
    %3 = vector.load %arg2[%c0, %c0_1, %c0_2] : memref<4x8x16xf32, #tpu.memory_space<vmem>>, vector<4x8x16xf32>
    %4 = vector.shape_cast %3 : vector<4x8x16xf32> to vector<32x16xf32>
    %5 = arith.truncf %4 : vector<32x16xf32> to vector<32x16xbf16>
    %c0_3 = arith.constant 0 : index
    %c0_4 = arith.constant 0 : index
    %c0_5 = arith.constant 0 : index
    %6 = vector.load %arg4[%c0_3, %c0_4, %c0_5] : memref<1x16x512xbf16, #tpu.memory_space<vmem>>, vector<1x16x512xbf16>
    %7 = vector.shape_cast %6 : vector<1x16x512xbf16> to vector<16x512xbf16>
    %cst = arith.constant dense<0.000000e+00> : vector<32x512xf32>
    %8 = tpu.matmul %5, %7, %cst {dimension_numbers = #tpu.dot_dimension_numbers<[1], [0], [0], [1], [0, 0, 1, 1], [], []>} : vector<32x16xbf16>, vector<16x512xbf16>, vector<32x512xf32> -> vector<32x512xf32>
    %c0_6 = arith.constant 0 : index
    %c0_7 = arith.constant 0 : index
    %c0_8 = arith.constant 0 : index
    %9 = vector.load %arg6[%c0_6, %c0_7, %c0_8] : memref<1x1x512xf32, #tpu.memory_space<vmem>>, vector<1x1x512xf32>
    %10 = vector.shape_cast %9 : vector<1x1x512xf32> to vector<1x512xf32>
    %11 = vector.broadcast %10 : vector<1x512xf32> to vector<32x512xf32>
    %12 = arith.addf %8, %11 : vector<32x512xf32>
    %13 = vector.shape_cast %12 : vector<32x512xf32> to vector<4x8x512xf32>
    %c0_9 = arith.constant 0 : index
    %c0_10 = arith.constant 0 : index
    %c0_11 = arith.constant 0 : index
    %14 = vector.load %arg8[%c0_9, %c0_10, %c0_11] : memref<4x8x512xf32, #tpu.memory_space<vmem>>, vector<4x8x512xf32>
    tpu.vector_store %arg8[%c0_9, %c0_10, %c0_11], %13 {strides = array<i32>} : memref<4x8x512xf32, #tpu.memory_space<vmem>>, vector<4x8x512xf32>,
    %c0_12 = arith.constant 0 : index
    %c0_13 = arith.constant 0 : index
    %15 = vector.load %arg3[%c0_12, %c0_13] : memref<8x1xi32, #tpu.memory_space<vmem>>, vector<8x1xi32>
    %c0_14 = arith.constant 0 : index
    %c0_15 = arith.constant 0 : index
    %c0_16 = arith.constant 0 : index
    %16 = vector.load %arg5[%c0_14, %c0_15, %c0_16] : memref<1x128x512xbf16, #tpu.memory_space<vmem>>, vector<1x128x512xbf16>
    %17 = vector.shape_cast %16 : vector<1x128x512xbf16> to vector<128x512xbf16>
    %c1_i32 = arith.constant 1 : i32
    %18 = arith.subi %c1_i32, %arg0 : i32
    %19 = arith.muli %18, %arg1 : i32
    %c1_i32_17 = arith.constant 1 : i32
    %20 = arith.subi %c1_i32_17, %arg1 : i32
    %21 = arith.muli %arg0, %20 : i32
    %22 = arith.addi %19, %21 : i32
    %c4_i32 = arith.constant 4 : i32
    %23 = arith.muli %22, %c4_i32 : i32
    %c0_i32_18 = arith.constant 0 : i32
    %c0_i32_19 = arith.constant 0 : i32
    %24 = arith.cmpi eq, %arg0, %c0_i32_19 : i32
    %c3_i32 = arith.constant 3 : i32
    %25 = arith.subi %c3_i32, %c0_i32_18 : i32
    %26 = arith.select %24, %c0_i32_18, %25 : i32
    %27 = arith.addi %23, %26 : i32
    %28 = vector.broadcast %27 : i32 to vector<8x1xi32>
    %29 = arith.cmpi sgt, %15, %28 : vector<8x1xi32>
    %30 = arith.index_cast %26 : i32 to index
    %c0_20 = arith.constant 0 : index
    %c0_21 = arith.constant 0 : index
    %31 = vector.load %arg8[%30, %c0_20, %c0_21] : memref<4x8x512xf32, #tpu.memory_space<vmem>>, vector<1x8x512xf32>
    %32 = vector.shape_cast %31 : vector<1x8x512xf32> to vector<8x512xf32>
    %c0_22 = arith.constant 0 : index
    %c0_23 = arith.constant 0 : index
    %33 = vector.load %arg9[%c0_22, %c0_23] : memref<8x128xf32, #tpu.memory_space<vmem>>, vector<8x128xf32>
    %34 = arith.truncf %33 : vector<8x128xf32> to vector<8x128xbf16>
    %cst_24 = arith.constant dense<0.000000e+00> : vector<8x512xf32>
    %35 = tpu.matmul %34, %17, %cst_24 {dimension_numbers = #tpu.dot_dimension_numbers<[1], [0], [0], [1], [0, 0, 1, 1], [], []>} : vector<8x128xbf16>, vector<128x512xbf16>, vector<8x512xf32> -> vector<8x512xf32>
    %36 = arith.addf %32, %35 : vector<8x512xf32>
    %37 = vector.extract_strided_slice %36 {offsets = [0, 0], sizes = [8, 128], strides = [1, 1]} : vector<8x512xf32> to vector<8x128xf32>
    %38 = arith.negf %37 : vector<8x128xf32>
    %39 = math.exp %38 : vector<8x128xf32>
    %cst_25 = arith.constant 1.000000e+00 : f32
    %40 = vector.broadcast %cst_25 : f32 to vector<8x128xf32>
    %41 = arith.addf %40, %39 : vector<8x128xf32>
    %42 = arith.divf %40, %41 : vector<8x128xf32>
    %43 = vector.extract_strided_slice %36 {offsets = [0, 128], sizes = [8, 128], strides = [1, 1]} : vector<8x512xf32> to vector<8x128xf32>
    %44 = arith.negf %43 : vector<8x128xf32>
    %45 = math.exp %44 : vector<8x128xf32>
    %cst_26 = arith.constant 1.000000e+00 : f32
    %46 = vector.broadcast %cst_26 : f32 to vector<8x128xf32>
    %47 = arith.addf %46, %45 : vector<8x128xf32>
    %48 = arith.divf %46, %47 : vector<8x128xf32>
    %49 = vector.extract_strided_slice %36 {offsets = [0, 256], sizes = [8, 128], strides = [1, 1]} : vector<8x512xf32> to vector<8x128xf32>
    %50 = math.tanh %49 : vector<8x128xf32>
    %51 = vector.extract_strided_slice %36 {offsets = [0, 384], sizes = [8, 128], strides = [1, 1]} : vector<8x512xf32> to vector<8x128xf32>
    %52 = arith.negf %51 : vector<8x128xf32>
    %53 = math.exp %52 : vector<8x128xf32>
    %cst_27 = arith.constant 1.000000e+00 : f32
    %54 = vector.broadcast %cst_27 : f32 to vector<8x128xf32>
    %55 = arith.addf %54, %53 : vector<8x128xf32>
    %56 = arith.divf %54, %55 : vector<8x128xf32>
    %c0_28 = arith.constant 0 : index
    %c0_29 = arith.constant 0 : index
    %57 = vector.load %arg10[%c0_28, %c0_29] : memref<8x128xf32, #tpu.memory_space<vmem>>, vector<8x128xf32>
    %58 = arith.mulf %48, %57 : vector<8x128xf32>
    %59 = arith.mulf %42, %50 : vector<8x128xf32>
    %60 = arith.addf %58, %59 : vector<8x128xf32>
    %61 = math.tanh %60 : vector<8x128xf32>
    %62 = arith.mulf %56, %61 : vector<8x128xf32>
    %c0_30 = arith.constant 0 : index
    %c0_31 = arith.constant 0 : index
    %63 = vector.load %arg10[%c0_30, %c0_31] : memref<8x128xf32, #tpu.memory_space<vmem>>, vector<8x128xf32>
    %64 = vector.shape_cast %29 : vector<8x1xi1> to vector<8x1xi1>
    %65 = vector.broadcast %64 : vector<8x1xi1> to vector<8x128xi1>
    %66 = arith.select %65, %60, %63 : vector<8x128xi1>, vector<8x128xf32>
    %c0_32 = arith.constant 0 : index
    %c0_33 = arith.constant 0 : index
    %67 = vector.load %arg10[%c0_32, %c0_33] : memref<8x128xf32, #tpu.memory_space<vmem>>, vector<8x128xf32>
    tpu.vector_store %arg10[%c0_32, %c0_33], %66 {strides = array<i32>} : memref<8x128xf32, #tpu.memory_space<vmem>>, vector<8x128xf32>,
    %c0_34 = arith.constant 0 : index
    %c0_35 = arith.constant 0 : index
    %68 = vector.load %arg9[%c0_34, %c0_35] : memref<8x128xf32, #tpu.memory_space<vmem>>, vector<8x128xf32>
    %69 = vector.shape_cast %29 : vector<8x1xi1> to vector<8x1xi1>
    %70 = vector.broadcast %69 : vector<8x1xi1> to vector<8x128xi1>
    %71 = arith.select %70, %62, %68 : vector<8x128xi1>, vector<8x128xf32>
    %c0_36 = arith.constant 0 : index
    %c0_37 = arith.constant 0 : index
    %72 = vector.load %arg9[%c0_36, %c0_37] : memref<8x128xf32, #tpu.memory_space<vmem>>, vector<8x128xf32>
    tpu.vector_store %arg9[%c0_36, %c0_37], %71 {strides = array<i32>} : memref<8x128xf32, #tpu.memory_space<vmem>>, vector<8x128xf32>,
    %cst_38 = arith.constant 0.000000e+00 : f32
    %73 = vector.shape_cast %29 : vector<8x1xi1> to vector<8x1xi1>
    %74 = vector.broadcast %73 : vector<8x1xi1> to vector<8x128xi1>
    %75 = vector.broadcast %cst_38 : f32 to vector<8x128xf32>
    %76 = arith.select %74, %62, %75 : vector<8x128xi1>, vector<8x128xf32>
    %c0_39 = arith.constant 0 : index
    %77 = arith.index_cast %26 : i32 to index
    %c0_40 = arith.constant 0 : index
    %c0_41 = arith.constant 0 : index
    %78 = vector.load %arg7[%c0_39, %77, %c0_40, %c0_41] : memref<1x4x8x128xf32, #tpu.memory_space<vmem>>, vector<1x1x8x128xf32>
    %79 = vector.shape_cast %78 : vector<1x1x8x128xf32> to vector<8x128xf32>
    %80 = vector.shape_cast %76 : vector<8x128xf32> to vector<1x1x8x128xf32>
    tpu.vector_store %arg7[%c0_39, %77, %c0_40, %c0_41], %80 {strides = array<i32>} : memref<1x4x8x128xf32, #tpu.memory_space<vmem>>, vector<1x1x8x128xf32>,
    %c1_i32_42 = arith.constant 1 : i32
    %c0_i32_43 = arith.constant 0 : i32
    %81 = arith.cmpi eq, %arg0, %c0_i32_43 : i32
    %c3_i32_44 = arith.constant 3 : i32
    %82 = arith.subi %c3_i32_44, %c1_i32_42 : i32
    %83 = arith.select %81, %c1_i32_42, %82 : i32
    %84 = arith.addi %23, %83 : i32
    %85 = vector.broadcast %84 : i32 to vector<8x1xi32>
    %86 = arith.cmpi sgt, %15, %85 : vector<8x1xi32>
    %87 = arith.index_cast %83 : i32 to index
    %c0_45 = arith.constant 0 : index
    %c0_46 = arith.constant 0 : index
    %88 = vector.load %arg8[%87, %c0_45, %c0_46] : memref<4x8x512xf32, #tpu.memory_space<vmem>>, vector<1x8x512xf32>
    %89 = vector.shape_cast %88 : vector<1x8x512xf32> to vector<8x512xf32>
    %c0_47 = arith.constant 0 : index
    %c0_48 = arith.constant 0 : index
    %90 = vector.load %arg9[%c0_47, %c0_48] : memref<8x128xf32, #tpu.memory_space<vmem>>, vector<8x128xf32>
    %91 = arith.truncf %90 : vector<8x128xf32> to vector<8x128xbf16>
    %cst_49 = arith.constant dense<0.000000e+00> : vector<8x512xf32>
    %92 = tpu.matmul %91, %17, %cst_49 {dimension_numbers = #tpu.dot_dimension_numbers<[1], [0], [0], [1], [0, 0, 1, 1], [], []>} : vector<8x128xbf16>, vector<128x512xbf16>, vector<8x512xf32> -> vector<8x512xf32>
    %93 = arith.addf %89, %92 : vector<8x512xf32>
    %94 = vector.extract_strided_slice %93 {offsets = [0, 0], sizes = [8, 128], strides = [1, 1]} : vector<8x512xf32> to vector<8x128xf32>
    %95 = arith.negf %94 : vector<8x128xf32>
    %96 = math.exp %95 : vector<8x128xf32>
    %cst_50 = arith.constant 1.000000e+00 : f32
    %97 = vector.broadcast %cst_50 : f32 to vector<8x128xf32>
    %98 = arith.addf %97, %96 : vector<8x128xf32>
    %99 = arith.divf %97, %98 : vector<8x128xf32>
    %100 = vector.extract_strided_slice %93 {offsets = [0, 128], sizes = [8, 128], strides = [1, 1]} : vector<8x512xf32> to vector<8x128xf32>
    %101 = arith.negf %100 : vector<8x128xf32>
    %102 = math.exp %101 : vector<8x128xf32>
    %cst_51 = arith.constant 1.000000e+00 : f32
    %103 = vector.broadcast %cst_51 : f32 to vector<8x128xf32>
    %104 = arith.addf %103, %102 : vector<8x128xf32>
    %105 = arith.divf %103, %104 : vector<8x128xf32>
    %106 = vector.extract_strided_slice %93 {offsets = [0, 256], sizes = [8, 128], strides = [1, 1]} : vector<8x512xf32> to vector<8x128xf32>
    %107 = math.tanh %106 : vector<8x128xf32>
    %108 = vector.extract_strided_slice %93 {offsets = [0, 384], sizes = [8, 128], strides = [1, 1]} : vector<8x512xf32> to vector<8x128xf32>
    %109 = arith.negf %108 : vector<8x128xf32>
    %110 = math.exp %109 : vector<8x128xf32>
    %cst_52 = arith.constant 1.000000e+00 : f32
    %111 = vector.broadcast %cst_52 : f32 to vector<8x128xf32>
    %112 = arith.addf %111, %110 : vector<8x128xf32>
    %113 = arith.divf %111, %112 : vector<8x128xf32>
    %c0_53 = arith.constant 0 : index
    %c0_54 = arith.constant 0 : index
    %114 = vector.load %arg10[%c0_53, %c0_54] : memref<8x128xf32, #tpu.memory_space<vmem>>, vector<8x128xf32>
    %115 = arith.mulf %105, %114 : vector<8x128xf32>
    %116 = arith.mulf %99, %107 : vector<8x128xf32>
    %117 = arith.addf %115, %116 : vector<8x128xf32>
    %118 = math.tanh %117 : vector<8x128xf32>
    %119 = arith.mulf %113, %118 : vector<8x128xf32>
    %c0_55 = arith.constant 0 : index
    %c0_56 = arith.constant 0 : index
    %120 = vector.load %arg10[%c0_55, %c0_56] : memref<8x128xf32, #tpu.memory_space<vmem>>, vector<8x128xf32>
    %121 = vector.shape_cast %86 : vector<8x1xi1> to vector<8x1xi1>
    %122 = vector.broadcast %121 : vector<8x1xi1> to vector<8x128xi1>
    %123 = arith.select %122, %117, %120 : vector<8x128xi1>, vector<8x128xf32>
    %c0_57 = arith.constant 0 : index
    %c0_58 = arith.constant 0 : index
    %124 = vector.load %arg10[%c0_57, %c0_58] : memref<8x128xf32, #tpu.memory_space<vmem>>, vector<8x128xf32>
    tpu.vector_store %arg10[%c0_57, %c0_58], %123 {strides = array<i32>} : memref<8x128xf32, #tpu.memory_space<vmem>>, vector<8x128xf32>,
    %c0_59 = arith.constant 0 : index
    %c0_60 = arith.constant 0 : index
    %125 = vector.load %arg9[%c0_59, %c0_60] : memref<8x128xf32, #tpu.memory_space<vmem>>, vector<8x128xf32>
    %126 = vector.shape_cast %86 : vector<8x1xi1> to vector<8x1xi1>
    %127 = vector.broadcast %126 : vector<8x1xi1> to vector<8x128xi1>
    %128 = arith.select %127, %119, %125 : vector<8x128xi1>, vector<8x128xf32>
    %c0_61 = arith.constant 0 : index
    %c0_62 = arith.constant 0 : index
    %129 = vector.load %arg9[%c0_61, %c0_62] : memref<8x128xf32, #tpu.memory_space<vmem>>, vector<8x128xf32>
    tpu.vector_store %arg9[%c0_61, %c0_62], %128 {strides = array<i32>} : memref<8x128xf32, #tpu.memory_space<vmem>>, vector<8x128xf32>,
    %cst_63 = arith.constant 0.000000e+00 : f32
    %130 = vector.shape_cast %86 : vector<8x1xi1> to vector<8x1xi1>
    %131 = vector.broadcast %130 : vector<8x1xi1> to vector<8x128xi1>
    %132 = vector.broadcast %cst_63 : f32 to vector<8x128xf32>
    %133 = arith.select %131, %119, %132 : vector<8x128xi1>, vector<8x128xf32>
    %c0_64 = arith.constant 0 : index
    %134 = arith.index_cast %83 : i32 to index
    %c0_65 = arith.constant 0 : index
    %c0_66 = arith.constant 0 : index
    %135 = vector.load %arg7[%c0_64, %134, %c0_65, %c0_66] : memref<1x4x8x128xf32, #tpu.memory_space<vmem>>, vector<1x1x8x128xf32>
    %136 = vector.shape_cast %135 : vector<1x1x8x128xf32> to vector<8x128xf32>
    %137 = vector.shape_cast %133 : vector<8x128xf32> to vector<1x1x8x128xf32>
    tpu.vector_store %arg7[%c0_64, %134, %c0_65, %c0_66], %137 {strides = array<i32>} : memref<1x4x8x128xf32, #tpu.memory_space<vmem>>, vector<1x1x8x128xf32>,
    %c2_i32 = arith.constant 2 : i32
    %c0_i32_67 = arith.constant 0 : i32
    %138 = arith.cmpi eq, %arg0, %c0_i32_67 : i32
    %c3_i32_68 = arith.constant 3 : i32
    %139 = arith.subi %c3_i32_68, %c2_i32 : i32
    %140 = arith.select %138, %c2_i32, %139 : i32
    %141 = arith.addi %23, %140 : i32
    %142 = vector.broadcast %141 : i32 to vector<8x1xi32>
    %143 = arith.cmpi sgt, %15, %142 : vector<8x1xi32>
    %144 = arith.index_cast %140 : i32 to index
    %c0_69 = arith.constant 0 : index
    %c0_70 = arith.constant 0 : index
    %145 = vector.load %arg8[%144, %c0_69, %c0_70] : memref<4x8x512xf32, #tpu.memory_space<vmem>>, vector<1x8x512xf32>
    %146 = vector.shape_cast %145 : vector<1x8x512xf32> to vector<8x512xf32>
    %c0_71 = arith.constant 0 : index
    %c0_72 = arith.constant 0 : index
    %147 = vector.load %arg9[%c0_71, %c0_72] : memref<8x128xf32, #tpu.memory_space<vmem>>, vector<8x128xf32>
    %148 = arith.truncf %147 : vector<8x128xf32> to vector<8x128xbf16>
    %cst_73 = arith.constant dense<0.000000e+00> : vector<8x512xf32>
    %149 = tpu.matmul %148, %17, %cst_73 {dimension_numbers = #tpu.dot_dimension_numbers<[1], [0], [0], [1], [0, 0, 1, 1], [], []>} : vector<8x128xbf16>, vector<128x512xbf16>, vector<8x512xf32> -> vector<8x512xf32>
    %150 = arith.addf %146, %149 : vector<8x512xf32>
    %151 = vector.extract_strided_slice %150 {offsets = [0, 0], sizes = [8, 128], strides = [1, 1]} : vector<8x512xf32> to vector<8x128xf32>
    %152 = arith.negf %151 : vector<8x128xf32>
    %153 = math.exp %152 : vector<8x128xf32>
    %cst_74 = arith.constant 1.000000e+00 : f32
    %154 = vector.broadcast %cst_74 : f32 to vector<8x128xf32>
    %155 = arith.addf %154, %153 : vector<8x128xf32>
    %156 = arith.divf %154, %155 : vector<8x128xf32>
    %157 = vector.extract_strided_slice %150 {offsets = [0, 128], sizes = [8, 128], strides = [1, 1]} : vector<8x512xf32> to vector<8x128xf32>
    %158 = arith.negf %157 : vector<8x128xf32>
    %159 = math.exp %158 : vector<8x128xf32>
    %cst_75 = arith.constant 1.000000e+00 : f32
    %160 = vector.broadcast %cst_75 : f32 to vector<8x128xf32>
    %161 = arith.addf %160, %159 : vector<8x128xf32>
    %162 = arith.divf %160, %161 : vector<8x128xf32>
    %163 = vector.extract_strided_slice %150 {offsets = [0, 256], sizes = [8, 128], strides = [1, 1]} : vector<8x512xf32> to vector<8x128xf32>
    %164 = math.tanh %163 : vector<8x128xf32>
    %165 = vector.extract_strided_slice %150 {offsets = [0, 384], sizes = [8, 128], strides = [1, 1]} : vector<8x512xf32> to vector<8x128xf32>
    %166 = arith.negf %165 : vector<8x128xf32>
    %167 = math.exp %166 : vector<8x128xf32>
    %cst_76 = arith.constant 1.000000e+00 : f32
    %168 = vector.broadcast %cst_76 : f32 to vector<8x128xf32>
    %169 = arith.addf %168, %167 : vector<8x128xf32>
    %170 = arith.divf %168, %169 : vector<8x128xf32>
    %c0_77 = arith.constant 0 : index
    %c0_78 = arith.constant 0 : index
    %171 = vector.load %arg10[%c0_77, %c0_78] : memref<8x128xf32, #tpu.memory_space<vmem>>, vector<8x128xf32>
    %172 = arith.mulf %162, %171 : vector<8x128xf32>
    %173 = arith.mulf %156, %164 : vector<8x128xf32>
    %174 = arith.addf %172, %173 : vector<8x128xf32>
    %175 = math.tanh %174 : vector<8x128xf32>
    %176 = arith.mulf %170, %175 : vector<8x128xf32>
    %c0_79 = arith.constant 0 : index
    %c0_80 = arith.constant 0 : index
    %177 = vector.load %arg10[%c0_79, %c0_80] : memref<8x128xf32, #tpu.memory_space<vmem>>, vector<8x128xf32>
    %178 = vector.shape_cast %143 : vector<8x1xi1> to vector<8x1xi1>
    %179 = vector.broadcast %178 : vector<8x1xi1> to vector<8x128xi1>
    %180 = arith.select %179, %174, %177 : vector<8x128xi1>, vector<8x128xf32>
    %c0_81 = arith.constant 0 : index
    %c0_82 = arith.constant 0 : index
    %181 = vector.load %arg10[%c0_81, %c0_82] : memref<8x128xf32, #tpu.memory_space<vmem>>, vector<8x128xf32>
    tpu.vector_store %arg10[%c0_81, %c0_82], %180 {strides = array<i32>} : memref<8x128xf32, #tpu.memory_space<vmem>>, vector<8x128xf32>,
    %c0_83 = arith.constant 0 : index
    %c0_84 = arith.constant 0 : index
    %182 = vector.load %arg9[%c0_83, %c0_84] : memref<8x128xf32, #tpu.memory_space<vmem>>, vector<8x128xf32>
    %183 = vector.shape_cast %143 : vector<8x1xi1> to vector<8x1xi1>
    %184 = vector.broadcast %183 : vector<8x1xi1> to vector<8x128xi1>
    %185 = arith.select %184, %176, %182 : vector<8x128xi1>, vector<8x128xf32>
    %c0_85 = arith.constant 0 : index
    %c0_86 = arith.constant 0 : index
    %186 = vector.load %arg9[%c0_85, %c0_86] : memref<8x128xf32, #tpu.memory_space<vmem>>, vector<8x128xf32>
    tpu.vector_store %arg9[%c0_85, %c0_86], %185 {strides = array<i32>} : memref<8x128xf32, #tpu.memory_space<vmem>>, vector<8x128xf32>,
    %cst_87 = arith.constant 0.000000e+00 : f32
    %187 = vector.shape_cast %143 : vector<8x1xi1> to vector<8x1xi1>
    %188 = vector.broadcast %187 : vector<8x1xi1> to vector<8x128xi1>
    %189 = vector.broadcast %cst_87 : f32 to vector<8x128xf32>
    %190 = arith.select %188, %176, %189 : vector<8x128xi1>, vector<8x128xf32>
    %c0_88 = arith.constant 0 : index
    %191 = arith.index_cast %140 : i32 to index
    %c0_89 = arith.constant 0 : index
    %c0_90 = arith.constant 0 : index
    %192 = vector.load %arg7[%c0_88, %191, %c0_89, %c0_90] : memref<1x4x8x128xf32, #tpu.memory_space<vmem>>, vector<1x1x8x128xf32>
    %193 = vector.shape_cast %192 : vector<1x1x8x128xf32> to vector<8x128xf32>
    %194 = vector.shape_cast %190 : vector<8x128xf32> to vector<1x1x8x128xf32>
    tpu.vector_store %arg7[%c0_88, %191, %c0_89, %c0_90], %194 {strides = array<i32>} : memref<1x4x8x128xf32, #tpu.memory_space<vmem>>, vector<1x1x8x128xf32>,
    %c3_i32_91 = arith.constant 3 : i32
    %c0_i32_92 = arith.constant 0 : i32
    %195 = arith.cmpi eq, %arg0, %c0_i32_92 : i32
    %c3_i32_93 = arith.constant 3 : i32
    %196 = arith.subi %c3_i32_93, %c3_i32_91 : i32
    %197 = arith.select %195, %c3_i32_91, %196 : i32
    %198 = arith.addi %23, %197 : i32
    %199 = vector.broadcast %198 : i32 to vector<8x1xi32>
    %200 = arith.cmpi sgt, %15, %199 : vector<8x1xi32>
    %201 = arith.index_cast %197 : i32 to index
    %c0_94 = arith.constant 0 : index
    %c0_95 = arith.constant 0 : index
    %202 = vector.load %arg8[%201, %c0_94, %c0_95] : memref<4x8x512xf32, #tpu.memory_space<vmem>>, vector<1x8x512xf32>
    %203 = vector.shape_cast %202 : vector<1x8x512xf32> to vector<8x512xf32>
    %c0_96 = arith.constant 0 : index
    %c0_97 = arith.constant 0 : index
    %204 = vector.load %arg9[%c0_96, %c0_97] : memref<8x128xf32, #tpu.memory_space<vmem>>, vector<8x128xf32>
    %205 = arith.truncf %204 : vector<8x128xf32> to vector<8x128xbf16>
    %cst_98 = arith.constant dense<0.000000e+00> : vector<8x512xf32>
    %206 = tpu.matmul %205, %17, %cst_98 {dimension_numbers = #tpu.dot_dimension_numbers<[1], [0], [0], [1], [0, 0, 1, 1], [], []>} : vector<8x128xbf16>, vector<128x512xbf16>, vector<8x512xf32> -> vector<8x512xf32>
    %207 = arith.addf %203, %206 : vector<8x512xf32>
    %208 = vector.extract_strided_slice %207 {offsets = [0, 0], sizes = [8, 128], strides = [1, 1]} : vector<8x512xf32> to vector<8x128xf32>
    %209 = arith.negf %208 : vector<8x128xf32>
    %210 = math.exp %209 : vector<8x128xf32>
    %cst_99 = arith.constant 1.000000e+00 : f32
    %211 = vector.broadcast %cst_99 : f32 to vector<8x128xf32>
    %212 = arith.addf %211, %210 : vector<8x128xf32>
    %213 = arith.divf %211, %212 : vector<8x128xf32>
    %214 = vector.extract_strided_slice %207 {offsets = [0, 128], sizes = [8, 128], strides = [1, 1]} : vector<8x512xf32> to vector<8x128xf32>
    %215 = arith.negf %214 : vector<8x128xf32>
    %216 = math.exp %215 : vector<8x128xf32>
    %cst_100 = arith.constant 1.000000e+00 : f32
    %217 = vector.broadcast %cst_100 : f32 to vector<8x128xf32>
    %218 = arith.addf %217, %216 : vector<8x128xf32>
    %219 = arith.divf %217, %218 : vector<8x128xf32>
    %220 = vector.extract_strided_slice %207 {offsets = [0, 256], sizes = [8, 128], strides = [1, 1]} : vector<8x512xf32> to vector<8x128xf32>
    %221 = math.tanh %220 : vector<8x128xf32>
    %222 = vector.extract_strided_slice %207 {offsets = [0, 384], sizes = [8, 128], strides = [1, 1]} : vector<8x512xf32> to vector<8x128xf32>
    %223 = arith.negf %222 : vector<8x128xf32>
    %224 = math.exp %223 : vector<8x128xf32>
    %cst_101 = arith.constant 1.000000e+00 : f32
    %225 = vector.broadcast %cst_101 : f32 to vector<8x128xf32>
    %226 = arith.addf %225, %224 : vector<8x128xf32>
    %227 = arith.divf %225, %226 : vector<8x128xf32>
    %c0_102 = arith.constant 0 : index
    %c0_103 = arith.constant 0 : index
    %228 = vector.load %arg10[%c0_102, %c0_103] : memref<8x128xf32, #tpu.memory_space<vmem>>, vector<8x128xf32>
    %229 = arith.mulf %219, %228 : vector<8x128xf32>
    %230 = arith.mulf %213, %221 : vector<8x128xf32>
    %231 = arith.addf %229, %230 : vector<8x128xf32>
    %232 = math.tanh %231 : vector<8x128xf32>
    %233 = arith.mulf %227, %232 : vector<8x128xf32>
    %c0_104 = arith.constant 0 : index
    %c0_105 = arith.constant 0 : index
    %234 = vector.load %arg10[%c0_104, %c0_105] : memref<8x128xf32, #tpu.memory_space<vmem>>, vector<8x128xf32>
    %235 = vector.shape_cast %200 : vector<8x1xi1> to vector<8x1xi1>
    %236 = vector.broadcast %235 : vector<8x1xi1> to vector<8x128xi1>
    %237 = arith.select %236, %231, %234 : vector<8x128xi1>, vector<8x128xf32>
    %c0_106 = arith.constant 0 : index
    %c0_107 = arith.constant 0 : index
    %238 = vector.load %arg10[%c0_106, %c0_107] : memref<8x128xf32, #tpu.memory_space<vmem>>, vector<8x128xf32>
    tpu.vector_store %arg10[%c0_106, %c0_107], %237 {strides = array<i32>} : memref<8x128xf32, #tpu.memory_space<vmem>>, vector<8x128xf32>,
    %c0_108 = arith.constant 0 : index
    %c0_109 = arith.constant 0 : index
    %239 = vector.load %arg9[%c0_108, %c0_109] : memref<8x128xf32, #tpu.memory_space<vmem>>, vector<8x128xf32>
    %240 = vector.shape_cast %200 : vector<8x1xi1> to vector<8x1xi1>
    %241 = vector.broadcast %240 : vector<8x1xi1> to vector<8x128xi1>
    %242 = arith.select %241, %233, %239 : vector<8x128xi1>, vector<8x128xf32>
    %c0_110 = arith.constant 0 : index
    %c0_111 = arith.constant 0 : index
    %243 = vector.load %arg9[%c0_110, %c0_111] : memref<8x128xf32, #tpu.memory_space<vmem>>, vector<8x128xf32>
    tpu.vector_store %arg9[%c0_110, %c0_111], %242 {strides = array<i32>} : memref<8x128xf32, #tpu.memory_space<vmem>>, vector<8x128xf32>,
    %cst_112 = arith.constant 0.000000e+00 : f32
    %244 = vector.shape_cast %200 : vector<8x1xi1> to vector<8x1xi1>
    %245 = vector.broadcast %244 : vector<8x1xi1> to vector<8x128xi1>
    %246 = vector.broadcast %cst_112 : f32 to vector<8x128xf32>
    %247 = arith.select %245, %233, %246 : vector<8x128xi1>, vector<8x128xf32>
    %c0_113 = arith.constant 0 : index
    %248 = arith.index_cast %197 : i32 to index
    %c0_114 = arith.constant 0 : index
    %c0_115 = arith.constant 0 : index
    %249 = vector.load %arg7[%c0_113, %248, %c0_114, %c0_115] : memref<1x4x8x128xf32, #tpu.memory_space<vmem>>, vector<1x1x8x128xf32>
    %250 = vector.shape_cast %249 : vector<1x1x8x128xf32> to vector<8x128xf32>
    %251 = vector.shape_cast %247 : vector<8x128xf32> to vector<1x1x8x128xf32>
    tpu.vector_store %arg7[%c0_113, %248, %c0_114, %c0_115], %251 {strides = array<i32>} : memref<1x4x8x128xf32, #tpu.memory_space<vmem>>, vector<1x1x8x128xf32>,
    %c4_i32_116 = arith.constant 4 : i32
    return
  }
  func.func @transform_0(%arg0: i32, %arg1: i32) -> (i32, i32, i32) {
    %c1_i32 = arith.constant 1 : i32
    %0 = arith.subi %c1_i32, %arg0 : i32
    %1 = arith.muli %0, %arg1 : i32
    %c1_i32_0 = arith.constant 1 : i32
    %2 = arith.subi %c1_i32_0, %arg1 : i32
    %3 = arith.muli %arg0, %2 : i32
    %4 = arith.addi %1, %3 : i32
    %c0_i32 = arith.constant 0 : i32
    %c0_i32_1 = arith.constant 0 : i32
    %c0_i32_2 = arith.constant 0 : i32
    return %4, %c0_i32, %c0_i32_1 : i32, i32, i32
  }
  func.func @transform_1(%arg0: i32, %arg1: i32) -> (i32, i32) {
    %c0_i32 = arith.constant 0 : i32
    %c0_i32_0 = arith.constant 0 : i32
    %c0_i32_1 = arith.constant 0 : i32
    return %c0_i32, %c0_i32_0 : i32, i32
  }
  func.func @transform_2(%arg0: i32, %arg1: i32) -> (i32, i32, i32) {
    %c0_i32 = arith.constant 0 : i32
    %c0_i32_0 = arith.constant 0 : i32
    %c0_i32_1 = arith.constant 0 : i32
    return %arg0, %c0_i32, %c0_i32_0 : i32, i32, i32
  }
  func.func @transform_3(%arg0: i32, %arg1: i32) -> (i32, i32, i32) {
    %c0_i32 = arith.constant 0 : i32
    %c0_i32_0 = arith.constant 0 : i32
    %c0_i32_1 = arith.constant 0 : i32
    return %arg0, %c0_i32, %c0_i32_0 : i32, i32, i32
  }
  func.func @transform_4(%arg0: i32, %arg1: i32) -> (i32, i32, i32) {
    %c0_i32 = arith.constant 0 : i32
    %c0_i32_0 = arith.constant 0 : i32
    %c0_i32_1 = arith.constant 0 : i32
    return %arg0, %c0_i32, %c0_i32_0 : i32, i32, i32
  }
  func.func @transform_5(%arg0: i32, %arg1: i32) -> (i32, i32, i32, i32) {
    %c1_i32 = arith.constant 1 : i32
    %0 = arith.subi %c1_i32, %arg0 : i32
    %1 = arith.muli %0, %arg1 : i32
    %c1_i32_0 = arith.constant 1 : i32
    %2 = arith.subi %c1_i32_0, %arg1 : i32
    %3 = arith.muli %arg0, %2 : i32
    %4 = arith.addi %1, %3 : i32
    %c0_i32 = arith.constant 0 : i32
    %c0_i32_1 = arith.constant 0 : i32
    %c0_i32_2 = arith.constant 0 : i32
    return %arg0, %4, %c0_i32, %c0_i32_1 : i32, i32, i32, i32
  }
}

module attributes {stable_mosaic.version = 11 : i64} {
  func.func @kernel(%arg0: i32, %arg1: i32, %arg2: memref<1x4x8x128xf32, #tpu.memory_space<vmem>>, %arg3: memref<1x4x8x128xf32, #tpu.memory_space<vmem>>, %arg4: memref<8x1xi32, #tpu.memory_space<vmem>>, %arg5: memref<1x128x512xbf16, #tpu.memory_space<vmem>>, %arg6: memref<1x128x512xbf16, #tpu.memory_space<vmem>>, %arg7: memref<1x128x512xbf16, #tpu.memory_space<vmem>>, %arg8: memref<1x1x512xf32, #tpu.memory_space<vmem>>, %arg9: memref<1x4x8x128xf32, #tpu.memory_space<vmem>>, %arg10: memref<4x8x512xf32, #tpu.memory_space<vmem>>, %arg11: memref<8x128xf32, #tpu.memory_space<vmem>>, %arg12: memref<8x128xf32, #tpu.memory_space<vmem>>) attributes {dimension_semantics = [#tpu.dimension_semantics<parallel>, #tpu.dimension_semantics<arbitrary>], iteration_bounds = array<i64: 2, 2>, scalar_prefetch = 0 : i64, scratch_operands = 3 : i64, tpu.core_type = #tpu.core_type<tc>, window_params = [{transform_indices = @transform_0, window_bounds = array<i64: 1, 4, 8, 128>}, {transform_indices = @transform_1, window_bounds = array<i64: 1, 4, 8, 128>}, {pipeline_mode = #tpu.pipeline_mode<synchronous>, transform_indices = @transform_2, window_bounds = array<i64: 8, 1>}, {transform_indices = @transform_3, window_bounds = array<i64: 1, 128, 512>}, {transform_indices = @transform_4, window_bounds = array<i64: 1, 128, 512>}, {transform_indices = @transform_5, window_bounds = array<i64: 1, 128, 512>}, {transform_indices = @transform_6, window_bounds = array<i64: 1, 1, 512>}, {transform_indices = @transform_7, window_bounds = array<i64: 1, 4, 8, 128>}]} {
    %c0_i32 = arith.constant 0 : i32
    %0 = arith.cmpi eq, %arg1, %c0_i32 : i32
    %1 = arith.extui %0 : i1 to i32
    %c0_i32_0 = arith.constant 0 : i32
    %2 = arith.cmpi ne, %1, %c0_i32_0 : i32
    scf.if %2 {
      %cst_126 = arith.constant 0.000000e+00 : f32
      %261 = vector.broadcast %cst_126 : f32 to vector<8x128xf32>
      %c0_127 = arith.constant 0 : index
      %c0_128 = arith.constant 0 : index
      %262 = vector.load %arg11[%c0_127, %c0_128] : memref<8x128xf32, #tpu.memory_space<vmem>>, vector<8x128xf32>
      tpu.vector_store %arg11[%c0_127, %c0_128], %261 {strides = array<i32>} : memref<8x128xf32, #tpu.memory_space<vmem>>, vector<8x128xf32>,
      %cst_129 = arith.constant 0.000000e+00 : f32
      %263 = vector.broadcast %cst_129 : f32 to vector<8x128xf32>
      %c0_130 = arith.constant 0 : index
      %c0_131 = arith.constant 0 : index
      %264 = vector.load %arg12[%c0_130, %c0_131] : memref<8x128xf32, #tpu.memory_space<vmem>>, vector<8x128xf32>
      tpu.vector_store %arg12[%c0_130, %c0_131], %263 {strides = array<i32>} : memref<8x128xf32, #tpu.memory_space<vmem>>, vector<8x128xf32>,
    } else {
    }
    %c0 = arith.constant 0 : index
    %c0_1 = arith.constant 0 : index
    %c0_2 = arith.constant 0 : index
    %c0_3 = arith.constant 0 : index
    %3 = vector.load %arg2[%c0, %c0_1, %c0_2, %c0_3] : memref<1x4x8x128xf32, #tpu.memory_space<vmem>>, vector<1x4x8x128xf32>
    %4 = vector.shape_cast %3 : vector<1x4x8x128xf32> to vector<4x8x128xf32>
    %5 = vector.shape_cast %4 : vector<4x8x128xf32> to vector<32x128xf32>
    %6 = arith.truncf %5 : vector<32x128xf32> to vector<32x128xbf16>
    %c0_4 = arith.constant 0 : index
    %c0_5 = arith.constant 0 : index
    %c0_6 = arith.constant 0 : index
    %7 = vector.load %arg5[%c0_4, %c0_5, %c0_6] : memref<1x128x512xbf16, #tpu.memory_space<vmem>>, vector<1x128x512xbf16>
    %8 = vector.shape_cast %7 : vector<1x128x512xbf16> to vector<128x512xbf16>
    %cst = arith.constant dense<0.000000e+00> : vector<32x512xf32>
    %9 = tpu.matmul %6, %8, %cst {dimension_numbers = #tpu.dot_dimension_numbers<[1], [0], [0], [1], [0, 0, 1, 1], [], []>} : vector<32x128xbf16>, vector<128x512xbf16>, vector<32x512xf32> -> vector<32x512xf32>
    %c0_7 = arith.constant 0 : index
    %c0_8 = arith.constant 0 : index
    %c0_9 = arith.constant 0 : index
    %c0_10 = arith.constant 0 : index
    %10 = vector.load %arg3[%c0_7, %c0_8, %c0_9, %c0_10] : memref<1x4x8x128xf32, #tpu.memory_space<vmem>>, vector<1x4x8x128xf32>
    %11 = vector.shape_cast %10 : vector<1x4x8x128xf32> to vector<4x8x128xf32>
    %12 = vector.shape_cast %11 : vector<4x8x128xf32> to vector<32x128xf32>
    %13 = arith.truncf %12 : vector<32x128xf32> to vector<32x128xbf16>
    %c0_11 = arith.constant 0 : index
    %c0_12 = arith.constant 0 : index
    %c0_13 = arith.constant 0 : index
    %14 = vector.load %arg6[%c0_11, %c0_12, %c0_13] : memref<1x128x512xbf16, #tpu.memory_space<vmem>>, vector<1x128x512xbf16>
    %15 = vector.shape_cast %14 : vector<1x128x512xbf16> to vector<128x512xbf16>
    %cst_14 = arith.constant dense<0.000000e+00> : vector<32x512xf32>
    %16 = tpu.matmul %13, %15, %cst_14 {dimension_numbers = #tpu.dot_dimension_numbers<[1], [0], [0], [1], [0, 0, 1, 1], [], []>} : vector<32x128xbf16>, vector<128x512xbf16>, vector<32x512xf32> -> vector<32x512xf32>
    %17 = arith.addf %9, %16 : vector<32x512xf32>
    %c0_15 = arith.constant 0 : index
    %c0_16 = arith.constant 0 : index
    %c0_17 = arith.constant 0 : index
    %18 = vector.load %arg8[%c0_15, %c0_16, %c0_17] : memref<1x1x512xf32, #tpu.memory_space<vmem>>, vector<1x1x512xf32>
    %19 = vector.shape_cast %18 : vector<1x1x512xf32> to vector<1x512xf32>
    %20 = vector.broadcast %19 : vector<1x512xf32> to vector<32x512xf32>
    %21 = arith.addf %17, %20 : vector<32x512xf32>
    %22 = vector.shape_cast %21 : vector<32x512xf32> to vector<4x8x512xf32>
    %c0_18 = arith.constant 0 : index
    %c0_19 = arith.constant 0 : index
    %c0_20 = arith.constant 0 : index
    %23 = vector.load %arg10[%c0_18, %c0_19, %c0_20] : memref<4x8x512xf32, #tpu.memory_space<vmem>>, vector<4x8x512xf32>
    tpu.vector_store %arg10[%c0_18, %c0_19, %c0_20], %22 {strides = array<i32>} : memref<4x8x512xf32, #tpu.memory_space<vmem>>, vector<4x8x512xf32>,
    %c0_21 = arith.constant 0 : index
    %c0_22 = arith.constant 0 : index
    %24 = vector.load %arg4[%c0_21, %c0_22] : memref<8x1xi32, #tpu.memory_space<vmem>>, vector<8x1xi32>
    %c0_23 = arith.constant 0 : index
    %c0_24 = arith.constant 0 : index
    %c0_25 = arith.constant 0 : index
    %25 = vector.load %arg7[%c0_23, %c0_24, %c0_25] : memref<1x128x512xbf16, #tpu.memory_space<vmem>>, vector<1x128x512xbf16>
    %26 = vector.shape_cast %25 : vector<1x128x512xbf16> to vector<128x512xbf16>
    %c1_i32 = arith.constant 1 : i32
    %27 = arith.subi %c1_i32, %arg0 : i32
    %28 = arith.muli %27, %arg1 : i32
    %c1_i32_26 = arith.constant 1 : i32
    %29 = arith.subi %c1_i32_26, %arg1 : i32
    %30 = arith.muli %arg0, %29 : i32
    %31 = arith.addi %28, %30 : i32
    %c4_i32 = arith.constant 4 : i32
    %32 = arith.muli %31, %c4_i32 : i32
    %c0_i32_27 = arith.constant 0 : i32
    %c0_i32_28 = arith.constant 0 : i32
    %33 = arith.cmpi eq, %arg0, %c0_i32_28 : i32
    %c3_i32 = arith.constant 3 : i32
    %34 = arith.subi %c3_i32, %c0_i32_27 : i32
    %35 = arith.select %33, %c0_i32_27, %34 : i32
    %36 = arith.addi %32, %35 : i32
    %37 = vector.broadcast %36 : i32 to vector<8x1xi32>
    %38 = arith.cmpi sgt, %24, %37 : vector<8x1xi32>
    %39 = arith.index_cast %35 : i32 to index
    %c0_29 = arith.constant 0 : index
    %c0_30 = arith.constant 0 : index
    %40 = vector.load %arg10[%39, %c0_29, %c0_30] : memref<4x8x512xf32, #tpu.memory_space<vmem>>, vector<1x8x512xf32>
    %41 = vector.shape_cast %40 : vector<1x8x512xf32> to vector<8x512xf32>
    %c0_31 = arith.constant 0 : index
    %c0_32 = arith.constant 0 : index
    %42 = vector.load %arg11[%c0_31, %c0_32] : memref<8x128xf32, #tpu.memory_space<vmem>>, vector<8x128xf32>
    %43 = arith.truncf %42 : vector<8x128xf32> to vector<8x128xbf16>
    %cst_33 = arith.constant dense<0.000000e+00> : vector<8x512xf32>
    %44 = tpu.matmul %43, %26, %cst_33 {dimension_numbers = #tpu.dot_dimension_numbers<[1], [0], [0], [1], [0, 0, 1, 1], [], []>} : vector<8x128xbf16>, vector<128x512xbf16>, vector<8x512xf32> -> vector<8x512xf32>
    %45 = arith.addf %41, %44 : vector<8x512xf32>
    %46 = vector.extract_strided_slice %45 {offsets = [0, 0], sizes = [8, 128], strides = [1, 1]} : vector<8x512xf32> to vector<8x128xf32>
    %47 = arith.negf %46 : vector<8x128xf32>
    %48 = math.exp %47 : vector<8x128xf32>
    %cst_34 = arith.constant 1.000000e+00 : f32
    %49 = vector.broadcast %cst_34 : f32 to vector<8x128xf32>
    %50 = arith.addf %49, %48 : vector<8x128xf32>
    %51 = arith.divf %49, %50 : vector<8x128xf32>
    %52 = vector.extract_strided_slice %45 {offsets = [0, 128], sizes = [8, 128], strides = [1, 1]} : vector<8x512xf32> to vector<8x128xf32>
    %53 = arith.negf %52 : vector<8x128xf32>
    %54 = math.exp %53 : vector<8x128xf32>
    %cst_35 = arith.constant 1.000000e+00 : f32
    %55 = vector.broadcast %cst_35 : f32 to vector<8x128xf32>
    %56 = arith.addf %55, %54 : vector<8x128xf32>
    %57 = arith.divf %55, %56 : vector<8x128xf32>
    %58 = vector.extract_strided_slice %45 {offsets = [0, 256], sizes = [8, 128], strides = [1, 1]} : vector<8x512xf32> to vector<8x128xf32>
    %59 = math.tanh %58 : vector<8x128xf32>
    %60 = vector.extract_strided_slice %45 {offsets = [0, 384], sizes = [8, 128], strides = [1, 1]} : vector<8x512xf32> to vector<8x128xf32>
    %61 = arith.negf %60 : vector<8x128xf32>
    %62 = math.exp %61 : vector<8x128xf32>
    %cst_36 = arith.constant 1.000000e+00 : f32
    %63 = vector.broadcast %cst_36 : f32 to vector<8x128xf32>
    %64 = arith.addf %63, %62 : vector<8x128xf32>
    %65 = arith.divf %63, %64 : vector<8x128xf32>
    %c0_37 = arith.constant 0 : index
    %c0_38 = arith.constant 0 : index
    %66 = vector.load %arg12[%c0_37, %c0_38] : memref<8x128xf32, #tpu.memory_space<vmem>>, vector<8x128xf32>
    %67 = arith.mulf %57, %66 : vector<8x128xf32>
    %68 = arith.mulf %51, %59 : vector<8x128xf32>
    %69 = arith.addf %67, %68 : vector<8x128xf32>
    %70 = math.tanh %69 : vector<8x128xf32>
    %71 = arith.mulf %65, %70 : vector<8x128xf32>
    %c0_39 = arith.constant 0 : index
    %c0_40 = arith.constant 0 : index
    %72 = vector.load %arg12[%c0_39, %c0_40] : memref<8x128xf32, #tpu.memory_space<vmem>>, vector<8x128xf32>
    %73 = vector.shape_cast %38 : vector<8x1xi1> to vector<8x1xi1>
    %74 = vector.broadcast %73 : vector<8x1xi1> to vector<8x128xi1>
    %75 = arith.select %74, %69, %72 : vector<8x128xi1>, vector<8x128xf32>
    %c0_41 = arith.constant 0 : index
    %c0_42 = arith.constant 0 : index
    %76 = vector.load %arg12[%c0_41, %c0_42] : memref<8x128xf32, #tpu.memory_space<vmem>>, vector<8x128xf32>
    tpu.vector_store %arg12[%c0_41, %c0_42], %75 {strides = array<i32>} : memref<8x128xf32, #tpu.memory_space<vmem>>, vector<8x128xf32>,
    %c0_43 = arith.constant 0 : index
    %c0_44 = arith.constant 0 : index
    %77 = vector.load %arg11[%c0_43, %c0_44] : memref<8x128xf32, #tpu.memory_space<vmem>>, vector<8x128xf32>
    %78 = vector.shape_cast %38 : vector<8x1xi1> to vector<8x1xi1>
    %79 = vector.broadcast %78 : vector<8x1xi1> to vector<8x128xi1>
    %80 = arith.select %79, %71, %77 : vector<8x128xi1>, vector<8x128xf32>
    %c0_45 = arith.constant 0 : index
    %c0_46 = arith.constant 0 : index
    %81 = vector.load %arg11[%c0_45, %c0_46] : memref<8x128xf32, #tpu.memory_space<vmem>>, vector<8x128xf32>
    tpu.vector_store %arg11[%c0_45, %c0_46], %80 {strides = array<i32>} : memref<8x128xf32, #tpu.memory_space<vmem>>, vector<8x128xf32>,
    %cst_47 = arith.constant 0.000000e+00 : f32
    %82 = vector.shape_cast %38 : vector<8x1xi1> to vector<8x1xi1>
    %83 = vector.broadcast %82 : vector<8x1xi1> to vector<8x128xi1>
    %84 = vector.broadcast %cst_47 : f32 to vector<8x128xf32>
    %85 = arith.select %83, %71, %84 : vector<8x128xi1>, vector<8x128xf32>
    %c0_48 = arith.constant 0 : index
    %86 = arith.index_cast %35 : i32 to index
    %c0_49 = arith.constant 0 : index
    %c0_50 = arith.constant 0 : index
    %87 = vector.load %arg9[%c0_48, %86, %c0_49, %c0_50] : memref<1x4x8x128xf32, #tpu.memory_space<vmem>>, vector<1x1x8x128xf32>
    %88 = vector.shape_cast %87 : vector<1x1x8x128xf32> to vector<8x128xf32>
    %89 = vector.shape_cast %85 : vector<8x128xf32> to vector<1x1x8x128xf32>
    tpu.vector_store %arg9[%c0_48, %86, %c0_49, %c0_50], %89 {strides = array<i32>} : memref<1x4x8x128xf32, #tpu.memory_space<vmem>>, vector<1x1x8x128xf32>,
    %c1_i32_51 = arith.constant 1 : i32
    %c0_i32_52 = arith.constant 0 : i32
    %90 = arith.cmpi eq, %arg0, %c0_i32_52 : i32
    %c3_i32_53 = arith.constant 3 : i32
    %91 = arith.subi %c3_i32_53, %c1_i32_51 : i32
    %92 = arith.select %90, %c1_i32_51, %91 : i32
    %93 = arith.addi %32, %92 : i32
    %94 = vector.broadcast %93 : i32 to vector<8x1xi32>
    %95 = arith.cmpi sgt, %24, %94 : vector<8x1xi32>
    %96 = arith.index_cast %92 : i32 to index
    %c0_54 = arith.constant 0 : index
    %c0_55 = arith.constant 0 : index
    %97 = vector.load %arg10[%96, %c0_54, %c0_55] : memref<4x8x512xf32, #tpu.memory_space<vmem>>, vector<1x8x512xf32>
    %98 = vector.shape_cast %97 : vector<1x8x512xf32> to vector<8x512xf32>
    %c0_56 = arith.constant 0 : index
    %c0_57 = arith.constant 0 : index
    %99 = vector.load %arg11[%c0_56, %c0_57] : memref<8x128xf32, #tpu.memory_space<vmem>>, vector<8x128xf32>
    %100 = arith.truncf %99 : vector<8x128xf32> to vector<8x128xbf16>
    %cst_58 = arith.constant dense<0.000000e+00> : vector<8x512xf32>
    %101 = tpu.matmul %100, %26, %cst_58 {dimension_numbers = #tpu.dot_dimension_numbers<[1], [0], [0], [1], [0, 0, 1, 1], [], []>} : vector<8x128xbf16>, vector<128x512xbf16>, vector<8x512xf32> -> vector<8x512xf32>
    %102 = arith.addf %98, %101 : vector<8x512xf32>
    %103 = vector.extract_strided_slice %102 {offsets = [0, 0], sizes = [8, 128], strides = [1, 1]} : vector<8x512xf32> to vector<8x128xf32>
    %104 = arith.negf %103 : vector<8x128xf32>
    %105 = math.exp %104 : vector<8x128xf32>
    %cst_59 = arith.constant 1.000000e+00 : f32
    %106 = vector.broadcast %cst_59 : f32 to vector<8x128xf32>
    %107 = arith.addf %106, %105 : vector<8x128xf32>
    %108 = arith.divf %106, %107 : vector<8x128xf32>
    %109 = vector.extract_strided_slice %102 {offsets = [0, 128], sizes = [8, 128], strides = [1, 1]} : vector<8x512xf32> to vector<8x128xf32>
    %110 = arith.negf %109 : vector<8x128xf32>
    %111 = math.exp %110 : vector<8x128xf32>
    %cst_60 = arith.constant 1.000000e+00 : f32
    %112 = vector.broadcast %cst_60 : f32 to vector<8x128xf32>
    %113 = arith.addf %112, %111 : vector<8x128xf32>
    %114 = arith.divf %112, %113 : vector<8x128xf32>
    %115 = vector.extract_strided_slice %102 {offsets = [0, 256], sizes = [8, 128], strides = [1, 1]} : vector<8x512xf32> to vector<8x128xf32>
    %116 = math.tanh %115 : vector<8x128xf32>
    %117 = vector.extract_strided_slice %102 {offsets = [0, 384], sizes = [8, 128], strides = [1, 1]} : vector<8x512xf32> to vector<8x128xf32>
    %118 = arith.negf %117 : vector<8x128xf32>
    %119 = math.exp %118 : vector<8x128xf32>
    %cst_61 = arith.constant 1.000000e+00 : f32
    %120 = vector.broadcast %cst_61 : f32 to vector<8x128xf32>
    %121 = arith.addf %120, %119 : vector<8x128xf32>
    %122 = arith.divf %120, %121 : vector<8x128xf32>
    %c0_62 = arith.constant 0 : index
    %c0_63 = arith.constant 0 : index
    %123 = vector.load %arg12[%c0_62, %c0_63] : memref<8x128xf32, #tpu.memory_space<vmem>>, vector<8x128xf32>
    %124 = arith.mulf %114, %123 : vector<8x128xf32>
    %125 = arith.mulf %108, %116 : vector<8x128xf32>
    %126 = arith.addf %124, %125 : vector<8x128xf32>
    %127 = math.tanh %126 : vector<8x128xf32>
    %128 = arith.mulf %122, %127 : vector<8x128xf32>
    %c0_64 = arith.constant 0 : index
    %c0_65 = arith.constant 0 : index
    %129 = vector.load %arg12[%c0_64, %c0_65] : memref<8x128xf32, #tpu.memory_space<vmem>>, vector<8x128xf32>
    %130 = vector.shape_cast %95 : vector<8x1xi1> to vector<8x1xi1>
    %131 = vector.broadcast %130 : vector<8x1xi1> to vector<8x128xi1>
    %132 = arith.select %131, %126, %129 : vector<8x128xi1>, vector<8x128xf32>
    %c0_66 = arith.constant 0 : index
    %c0_67 = arith.constant 0 : index
    %133 = vector.load %arg12[%c0_66, %c0_67] : memref<8x128xf32, #tpu.memory_space<vmem>>, vector<8x128xf32>
    tpu.vector_store %arg12[%c0_66, %c0_67], %132 {strides = array<i32>} : memref<8x128xf32, #tpu.memory_space<vmem>>, vector<8x128xf32>,
    %c0_68 = arith.constant 0 : index
    %c0_69 = arith.constant 0 : index
    %134 = vector.load %arg11[%c0_68, %c0_69] : memref<8x128xf32, #tpu.memory_space<vmem>>, vector<8x128xf32>
    %135 = vector.shape_cast %95 : vector<8x1xi1> to vector<8x1xi1>
    %136 = vector.broadcast %135 : vector<8x1xi1> to vector<8x128xi1>
    %137 = arith.select %136, %128, %134 : vector<8x128xi1>, vector<8x128xf32>
    %c0_70 = arith.constant 0 : index
    %c0_71 = arith.constant 0 : index
    %138 = vector.load %arg11[%c0_70, %c0_71] : memref<8x128xf32, #tpu.memory_space<vmem>>, vector<8x128xf32>
    tpu.vector_store %arg11[%c0_70, %c0_71], %137 {strides = array<i32>} : memref<8x128xf32, #tpu.memory_space<vmem>>, vector<8x128xf32>,
    %cst_72 = arith.constant 0.000000e+00 : f32
    %139 = vector.shape_cast %95 : vector<8x1xi1> to vector<8x1xi1>
    %140 = vector.broadcast %139 : vector<8x1xi1> to vector<8x128xi1>
    %141 = vector.broadcast %cst_72 : f32 to vector<8x128xf32>
    %142 = arith.select %140, %128, %141 : vector<8x128xi1>, vector<8x128xf32>
    %c0_73 = arith.constant 0 : index
    %143 = arith.index_cast %92 : i32 to index
    %c0_74 = arith.constant 0 : index
    %c0_75 = arith.constant 0 : index
    %144 = vector.load %arg9[%c0_73, %143, %c0_74, %c0_75] : memref<1x4x8x128xf32, #tpu.memory_space<vmem>>, vector<1x1x8x128xf32>
    %145 = vector.shape_cast %144 : vector<1x1x8x128xf32> to vector<8x128xf32>
    %146 = vector.shape_cast %142 : vector<8x128xf32> to vector<1x1x8x128xf32>
    tpu.vector_store %arg9[%c0_73, %143, %c0_74, %c0_75], %146 {strides = array<i32>} : memref<1x4x8x128xf32, #tpu.memory_space<vmem>>, vector<1x1x8x128xf32>,
    %c2_i32 = arith.constant 2 : i32
    %c0_i32_76 = arith.constant 0 : i32
    %147 = arith.cmpi eq, %arg0, %c0_i32_76 : i32
    %c3_i32_77 = arith.constant 3 : i32
    %148 = arith.subi %c3_i32_77, %c2_i32 : i32
    %149 = arith.select %147, %c2_i32, %148 : i32
    %150 = arith.addi %32, %149 : i32
    %151 = vector.broadcast %150 : i32 to vector<8x1xi32>
    %152 = arith.cmpi sgt, %24, %151 : vector<8x1xi32>
    %153 = arith.index_cast %149 : i32 to index
    %c0_78 = arith.constant 0 : index
    %c0_79 = arith.constant 0 : index
    %154 = vector.load %arg10[%153, %c0_78, %c0_79] : memref<4x8x512xf32, #tpu.memory_space<vmem>>, vector<1x8x512xf32>
    %155 = vector.shape_cast %154 : vector<1x8x512xf32> to vector<8x512xf32>
    %c0_80 = arith.constant 0 : index
    %c0_81 = arith.constant 0 : index
    %156 = vector.load %arg11[%c0_80, %c0_81] : memref<8x128xf32, #tpu.memory_space<vmem>>, vector<8x128xf32>
    %157 = arith.truncf %156 : vector<8x128xf32> to vector<8x128xbf16>
    %cst_82 = arith.constant dense<0.000000e+00> : vector<8x512xf32>
    %158 = tpu.matmul %157, %26, %cst_82 {dimension_numbers = #tpu.dot_dimension_numbers<[1], [0], [0], [1], [0, 0, 1, 1], [], []>} : vector<8x128xbf16>, vector<128x512xbf16>, vector<8x512xf32> -> vector<8x512xf32>
    %159 = arith.addf %155, %158 : vector<8x512xf32>
    %160 = vector.extract_strided_slice %159 {offsets = [0, 0], sizes = [8, 128], strides = [1, 1]} : vector<8x512xf32> to vector<8x128xf32>
    %161 = arith.negf %160 : vector<8x128xf32>
    %162 = math.exp %161 : vector<8x128xf32>
    %cst_83 = arith.constant 1.000000e+00 : f32
    %163 = vector.broadcast %cst_83 : f32 to vector<8x128xf32>
    %164 = arith.addf %163, %162 : vector<8x128xf32>
    %165 = arith.divf %163, %164 : vector<8x128xf32>
    %166 = vector.extract_strided_slice %159 {offsets = [0, 128], sizes = [8, 128], strides = [1, 1]} : vector<8x512xf32> to vector<8x128xf32>
    %167 = arith.negf %166 : vector<8x128xf32>
    %168 = math.exp %167 : vector<8x128xf32>
    %cst_84 = arith.constant 1.000000e+00 : f32
    %169 = vector.broadcast %cst_84 : f32 to vector<8x128xf32>
    %170 = arith.addf %169, %168 : vector<8x128xf32>
    %171 = arith.divf %169, %170 : vector<8x128xf32>
    %172 = vector.extract_strided_slice %159 {offsets = [0, 256], sizes = [8, 128], strides = [1, 1]} : vector<8x512xf32> to vector<8x128xf32>
    %173 = math.tanh %172 : vector<8x128xf32>
    %174 = vector.extract_strided_slice %159 {offsets = [0, 384], sizes = [8, 128], strides = [1, 1]} : vector<8x512xf32> to vector<8x128xf32>
    %175 = arith.negf %174 : vector<8x128xf32>
    %176 = math.exp %175 : vector<8x128xf32>
    %cst_85 = arith.constant 1.000000e+00 : f32
    %177 = vector.broadcast %cst_85 : f32 to vector<8x128xf32>
    %178 = arith.addf %177, %176 : vector<8x128xf32>
    %179 = arith.divf %177, %178 : vector<8x128xf32>
    %c0_86 = arith.constant 0 : index
    %c0_87 = arith.constant 0 : index
    %180 = vector.load %arg12[%c0_86, %c0_87] : memref<8x128xf32, #tpu.memory_space<vmem>>, vector<8x128xf32>
    %181 = arith.mulf %171, %180 : vector<8x128xf32>
    %182 = arith.mulf %165, %173 : vector<8x128xf32>
    %183 = arith.addf %181, %182 : vector<8x128xf32>
    %184 = math.tanh %183 : vector<8x128xf32>
    %185 = arith.mulf %179, %184 : vector<8x128xf32>
    %c0_88 = arith.constant 0 : index
    %c0_89 = arith.constant 0 : index
    %186 = vector.load %arg12[%c0_88, %c0_89] : memref<8x128xf32, #tpu.memory_space<vmem>>, vector<8x128xf32>
    %187 = vector.shape_cast %152 : vector<8x1xi1> to vector<8x1xi1>
    %188 = vector.broadcast %187 : vector<8x1xi1> to vector<8x128xi1>
    %189 = arith.select %188, %183, %186 : vector<8x128xi1>, vector<8x128xf32>
    %c0_90 = arith.constant 0 : index
    %c0_91 = arith.constant 0 : index
    %190 = vector.load %arg12[%c0_90, %c0_91] : memref<8x128xf32, #tpu.memory_space<vmem>>, vector<8x128xf32>
    tpu.vector_store %arg12[%c0_90, %c0_91], %189 {strides = array<i32>} : memref<8x128xf32, #tpu.memory_space<vmem>>, vector<8x128xf32>,
    %c0_92 = arith.constant 0 : index
    %c0_93 = arith.constant 0 : index
    %191 = vector.load %arg11[%c0_92, %c0_93] : memref<8x128xf32, #tpu.memory_space<vmem>>, vector<8x128xf32>
    %192 = vector.shape_cast %152 : vector<8x1xi1> to vector<8x1xi1>
    %193 = vector.broadcast %192 : vector<8x1xi1> to vector<8x128xi1>
    %194 = arith.select %193, %185, %191 : vector<8x128xi1>, vector<8x128xf32>
    %c0_94 = arith.constant 0 : index
    %c0_95 = arith.constant 0 : index
    %195 = vector.load %arg11[%c0_94, %c0_95] : memref<8x128xf32, #tpu.memory_space<vmem>>, vector<8x128xf32>
    tpu.vector_store %arg11[%c0_94, %c0_95], %194 {strides = array<i32>} : memref<8x128xf32, #tpu.memory_space<vmem>>, vector<8x128xf32>,
    %cst_96 = arith.constant 0.000000e+00 : f32
    %196 = vector.shape_cast %152 : vector<8x1xi1> to vector<8x1xi1>
    %197 = vector.broadcast %196 : vector<8x1xi1> to vector<8x128xi1>
    %198 = vector.broadcast %cst_96 : f32 to vector<8x128xf32>
    %199 = arith.select %197, %185, %198 : vector<8x128xi1>, vector<8x128xf32>
    %c0_97 = arith.constant 0 : index
    %200 = arith.index_cast %149 : i32 to index
    %c0_98 = arith.constant 0 : index
    %c0_99 = arith.constant 0 : index
    %201 = vector.load %arg9[%c0_97, %200, %c0_98, %c0_99] : memref<1x4x8x128xf32, #tpu.memory_space<vmem>>, vector<1x1x8x128xf32>
    %202 = vector.shape_cast %201 : vector<1x1x8x128xf32> to vector<8x128xf32>
    %203 = vector.shape_cast %199 : vector<8x128xf32> to vector<1x1x8x128xf32>
    tpu.vector_store %arg9[%c0_97, %200, %c0_98, %c0_99], %203 {strides = array<i32>} : memref<1x4x8x128xf32, #tpu.memory_space<vmem>>, vector<1x1x8x128xf32>,
    %c3_i32_100 = arith.constant 3 : i32
    %c0_i32_101 = arith.constant 0 : i32
    %204 = arith.cmpi eq, %arg0, %c0_i32_101 : i32
    %c3_i32_102 = arith.constant 3 : i32
    %205 = arith.subi %c3_i32_102, %c3_i32_100 : i32
    %206 = arith.select %204, %c3_i32_100, %205 : i32
    %207 = arith.addi %32, %206 : i32
    %208 = vector.broadcast %207 : i32 to vector<8x1xi32>
    %209 = arith.cmpi sgt, %24, %208 : vector<8x1xi32>
    %210 = arith.index_cast %206 : i32 to index
    %c0_103 = arith.constant 0 : index
    %c0_104 = arith.constant 0 : index
    %211 = vector.load %arg10[%210, %c0_103, %c0_104] : memref<4x8x512xf32, #tpu.memory_space<vmem>>, vector<1x8x512xf32>
    %212 = vector.shape_cast %211 : vector<1x8x512xf32> to vector<8x512xf32>
    %c0_105 = arith.constant 0 : index
    %c0_106 = arith.constant 0 : index
    %213 = vector.load %arg11[%c0_105, %c0_106] : memref<8x128xf32, #tpu.memory_space<vmem>>, vector<8x128xf32>
    %214 = arith.truncf %213 : vector<8x128xf32> to vector<8x128xbf16>
    %cst_107 = arith.constant dense<0.000000e+00> : vector<8x512xf32>
    %215 = tpu.matmul %214, %26, %cst_107 {dimension_numbers = #tpu.dot_dimension_numbers<[1], [0], [0], [1], [0, 0, 1, 1], [], []>} : vector<8x128xbf16>, vector<128x512xbf16>, vector<8x512xf32> -> vector<8x512xf32>
    %216 = arith.addf %212, %215 : vector<8x512xf32>
    %217 = vector.extract_strided_slice %216 {offsets = [0, 0], sizes = [8, 128], strides = [1, 1]} : vector<8x512xf32> to vector<8x128xf32>
    %218 = arith.negf %217 : vector<8x128xf32>
    %219 = math.exp %218 : vector<8x128xf32>
    %cst_108 = arith.constant 1.000000e+00 : f32
    %220 = vector.broadcast %cst_108 : f32 to vector<8x128xf32>
    %221 = arith.addf %220, %219 : vector<8x128xf32>
    %222 = arith.divf %220, %221 : vector<8x128xf32>
    %223 = vector.extract_strided_slice %216 {offsets = [0, 128], sizes = [8, 128], strides = [1, 1]} : vector<8x512xf32> to vector<8x128xf32>
    %224 = arith.negf %223 : vector<8x128xf32>
    %225 = math.exp %224 : vector<8x128xf32>
    %cst_109 = arith.constant 1.000000e+00 : f32
    %226 = vector.broadcast %cst_109 : f32 to vector<8x128xf32>
    %227 = arith.addf %226, %225 : vector<8x128xf32>
    %228 = arith.divf %226, %227 : vector<8x128xf32>
    %229 = vector.extract_strided_slice %216 {offsets = [0, 256], sizes = [8, 128], strides = [1, 1]} : vector<8x512xf32> to vector<8x128xf32>
    %230 = math.tanh %229 : vector<8x128xf32>
    %231 = vector.extract_strided_slice %216 {offsets = [0, 384], sizes = [8, 128], strides = [1, 1]} : vector<8x512xf32> to vector<8x128xf32>
    %232 = arith.negf %231 : vector<8x128xf32>
    %233 = math.exp %232 : vector<8x128xf32>
    %cst_110 = arith.constant 1.000000e+00 : f32
    %234 = vector.broadcast %cst_110 : f32 to vector<8x128xf32>
    %235 = arith.addf %234, %233 : vector<8x128xf32>
    %236 = arith.divf %234, %235 : vector<8x128xf32>
    %c0_111 = arith.constant 0 : index
    %c0_112 = arith.constant 0 : index
    %237 = vector.load %arg12[%c0_111, %c0_112] : memref<8x128xf32, #tpu.memory_space<vmem>>, vector<8x128xf32>
    %238 = arith.mulf %228, %237 : vector<8x128xf32>
    %239 = arith.mulf %222, %230 : vector<8x128xf32>
    %240 = arith.addf %238, %239 : vector<8x128xf32>
    %241 = math.tanh %240 : vector<8x128xf32>
    %242 = arith.mulf %236, %241 : vector<8x128xf32>
    %c0_113 = arith.constant 0 : index
    %c0_114 = arith.constant 0 : index
    %243 = vector.load %arg12[%c0_113, %c0_114] : memref<8x128xf32, #tpu.memory_space<vmem>>, vector<8x128xf32>
    %244 = vector.shape_cast %209 : vector<8x1xi1> to vector<8x1xi1>
    %245 = vector.broadcast %244 : vector<8x1xi1> to vector<8x128xi1>
    %246 = arith.select %245, %240, %243 : vector<8x128xi1>, vector<8x128xf32>
    %c0_115 = arith.constant 0 : index
    %c0_116 = arith.constant 0 : index
    %247 = vector.load %arg12[%c0_115, %c0_116] : memref<8x128xf32, #tpu.memory_space<vmem>>, vector<8x128xf32>
    tpu.vector_store %arg12[%c0_115, %c0_116], %246 {strides = array<i32>} : memref<8x128xf32, #tpu.memory_space<vmem>>, vector<8x128xf32>,
    %c0_117 = arith.constant 0 : index
    %c0_118 = arith.constant 0 : index
    %248 = vector.load %arg11[%c0_117, %c0_118] : memref<8x128xf32, #tpu.memory_space<vmem>>, vector<8x128xf32>
    %249 = vector.shape_cast %209 : vector<8x1xi1> to vector<8x1xi1>
    %250 = vector.broadcast %249 : vector<8x1xi1> to vector<8x128xi1>
    %251 = arith.select %250, %242, %248 : vector<8x128xi1>, vector<8x128xf32>
    %c0_119 = arith.constant 0 : index
    %c0_120 = arith.constant 0 : index
    %252 = vector.load %arg11[%c0_119, %c0_120] : memref<8x128xf32, #tpu.memory_space<vmem>>, vector<8x128xf32>
    tpu.vector_store %arg11[%c0_119, %c0_120], %251 {strides = array<i32>} : memref<8x128xf32, #tpu.memory_space<vmem>>, vector<8x128xf32>,
    %cst_121 = arith.constant 0.000000e+00 : f32
    %253 = vector.shape_cast %209 : vector<8x1xi1> to vector<8x1xi1>
    %254 = vector.broadcast %253 : vector<8x1xi1> to vector<8x128xi1>
    %255 = vector.broadcast %cst_121 : f32 to vector<8x128xf32>
    %256 = arith.select %254, %242, %255 : vector<8x128xi1>, vector<8x128xf32>
    %c0_122 = arith.constant 0 : index
    %257 = arith.index_cast %206 : i32 to index
    %c0_123 = arith.constant 0 : index
    %c0_124 = arith.constant 0 : index
    %258 = vector.load %arg9[%c0_122, %257, %c0_123, %c0_124] : memref<1x4x8x128xf32, #tpu.memory_space<vmem>>, vector<1x1x8x128xf32>
    %259 = vector.shape_cast %258 : vector<1x1x8x128xf32> to vector<8x128xf32>
    %260 = vector.shape_cast %256 : vector<8x128xf32> to vector<1x1x8x128xf32>
    tpu.vector_store %arg9[%c0_122, %257, %c0_123, %c0_124], %260 {strides = array<i32>} : memref<1x4x8x128xf32, #tpu.memory_space<vmem>>, vector<1x1x8x128xf32>,
    %c4_i32_125 = arith.constant 4 : i32
    return
  }
  func.func @transform_0(%arg0: i32, %arg1: i32) -> (i32, i32, i32, i32) {
    %c1_i32 = arith.constant 1 : i32
    %0 = arith.subi %c1_i32, %arg0 : i32
    %1 = arith.muli %0, %arg1 : i32
    %c1_i32_0 = arith.constant 1 : i32
    %2 = arith.subi %c1_i32_0, %arg1 : i32
    %3 = arith.muli %arg0, %2 : i32
    %4 = arith.addi %1, %3 : i32
    %c0_i32 = arith.constant 0 : i32
    %c0_i32_1 = arith.constant 0 : i32
    %c0_i32_2 = arith.constant 0 : i32
    %c0_i32_3 = arith.constant 0 : i32
    return %c0_i32, %4, %c0_i32_1, %c0_i32_2 : i32, i32, i32, i32
  }
  func.func @transform_1(%arg0: i32, %arg1: i32) -> (i32, i32, i32, i32) {
    %c1_i32 = arith.constant 1 : i32
    %0 = arith.subi %c1_i32, %arg0 : i32
    %1 = arith.muli %0, %arg1 : i32
    %c1_i32_0 = arith.constant 1 : i32
    %2 = arith.subi %c1_i32_0, %arg1 : i32
    %3 = arith.muli %arg0, %2 : i32
    %4 = arith.addi %1, %3 : i32
    %c1_i32_1 = arith.constant 1 : i32
    %c0_i32 = arith.constant 0 : i32
    %c0_i32_2 = arith.constant 0 : i32
    %c0_i32_3 = arith.constant 0 : i32
    return %c1_i32_1, %4, %c0_i32, %c0_i32_2 : i32, i32, i32, i32
  }
  func.func @transform_2(%arg0: i32, %arg1: i32) -> (i32, i32) {
    %c0_i32 = arith.constant 0 : i32
    %c0_i32_0 = arith.constant 0 : i32
    %c0_i32_1 = arith.constant 0 : i32
    return %c0_i32, %c0_i32_0 : i32, i32
  }
  func.func @transform_3(%arg0: i32, %arg1: i32) -> (i32, i32, i32) {
    %c0_i32 = arith.constant 0 : i32
    %c0_i32_0 = arith.constant 0 : i32
    %c0_i32_1 = arith.constant 0 : i32
    return %arg0, %c0_i32, %c0_i32_0 : i32, i32, i32
  }
  func.func @transform_4(%arg0: i32, %arg1: i32) -> (i32, i32, i32) {
    %c0_i32 = arith.constant 0 : i32
    %c0_i32_0 = arith.constant 0 : i32
    %c0_i32_1 = arith.constant 0 : i32
    return %arg0, %c0_i32, %c0_i32_0 : i32, i32, i32
  }
  func.func @transform_5(%arg0: i32, %arg1: i32) -> (i32, i32, i32) {
    %c0_i32 = arith.constant 0 : i32
    %c0_i32_0 = arith.constant 0 : i32
    %c0_i32_1 = arith.constant 0 : i32
    return %arg0, %c0_i32, %c0_i32_0 : i32, i32, i32
  }
  func.func @transform_6(%arg0: i32, %arg1: i32) -> (i32, i32, i32) {
    %c0_i32 = arith.constant 0 : i32
    %c0_i32_0 = arith.constant 0 : i32
    %c0_i32_1 = arith.constant 0 : i32
    return %arg0, %c0_i32, %c0_i32_0 : i32, i32, i32
  }
  func.func @transform_7(%arg0: i32, %arg1: i32) -> (i32, i32, i32, i32) {
    %c1_i32 = arith.constant 1 : i32
    %0 = arith.subi %c1_i32, %arg0 : i32
    %1 = arith.muli %0, %arg1 : i32
    %c1_i32_0 = arith.constant 1 : i32
    %2 = arith.subi %c1_i32_0, %arg1 : i32
    %3 = arith.muli %arg0, %2 : i32
    %4 = arith.addi %1, %3 : i32
    %c0_i32 = arith.constant 0 : i32
    %c0_i32_1 = arith.constant 0 : i32
    %c0_i32_2 = arith.constant 0 : i32
    return %arg0, %4, %c0_i32, %c0_i32_1 : i32, i32, i32, i32
  }
}

</mosaic_0001>

<llo_original>
// kernel: rnn_encoder_forward.2
$region0: #{rnn_encoder_forward.2}
  #allocation0 [shape = 'u32[]', space=smem, size = 0x4, offset = 0x4, fixed_abs, tag = 'smem constant byte address 0x4 - core index']
  #allocation1 [shape = 'u32[144,128]{1,0:T(1,128)}', space=vmem, size = 0x12000, scoped, tag = 'internal scratch']
  #allocation2 [shape = 'f32[4,8,512]{2,1,0:T(8,128)}', space=vmem, size = 0x10000, scoped, tag = 'scratch operand']
  #allocation3 [shape = 'f32[8,128]{1,0:T(8,128)}', space=vmem, size = 0x1000, scoped, tag = 'scratch operand']
  #allocation4 [shape = 'f32[8,128]{1,0:T(8,128)}', space=vmem, size = 0x1000, scoped, tag = 'scratch operand']
  %s0 = inlined_call_operand.vmem [shape: f32[8,8,16], index: 0, kind: input, shape index: {}]
  %s1 = inlined_call_operand.vmem [shape: s32[8,1], index: 1, kind: input, shape index: {}]
  %s2 = inlined_call_operand.vmem [shape: bf16[2,16,512], index: 2, kind: input, shape index: {}]
  %s3 = inlined_call_operand.vmem [shape: bf16[2,128,512], index: 3, kind: input, shape index: {}]
  %s4 = inlined_call_operand.vmem [shape: f32[2,1,512], index: 4, kind: input, shape index: {}]
  %s5 = inlined_call_operand.vmem [shape: f32[2,8,8,128], index: 5, kind: output, shape index: {}]
  %s6 = sld [smem:[#allocation0]]
  $region57: #{rnn_encoder_forward.2} parent=0
    _
  %s8 = ssub.s32 1, %s6
  %s9 = scalar_select 0, %s8, %s6
  loop: start=0, step=1, limit=6
  $region2: #{rnn_encoder_forward.2} parent=0 // loop_pre_header
    _
  $region3: #{rnn_encoder_forward.2} parent=0 // loop_header
    %s11 = sphi 0, %s15
    %p12 = scmp.ge.s32.totalorder %s11, 6
    %s18 = sphi 0, %s30
    %s19 = sphi 0, %s26
    %s20 = sphi 0, %s18
    %s21 = sphi 0, %s19
    %s22 = sphi 0, %s20
    %s23 = sphi 0, %s21
    %s43 = sphi 0, %s45
    %s46 = sphi 0, %s43
    %s47 = sphi 0, %s46
    %s63 = sphi 0, %s47
    %s67 = sphi 0, %s67
    %s69 = sphi 0, %s67
    %s70 = sphi 0, %s69
    %s84 = sphi 0, %s70
    %s90 = sphi 0, %s92
    %s93 = sphi 0, %s90
    %s94 = sphi 0, %s93
    %s110 = sphi 0, %s94
    %s116 = sphi 0, %s118
    %s119 = sphi 0, %s116
    %s120 = sphi 0, %s119
    %s136 = sphi 0, %s120
    %s142 = sphi 0, %s144
    %s145 = sphi 0, %s142
    %s146 = sphi 0, %s145
    %s162 = sphi 0, %s146
    %s180 = sphi 0, %s182
    %s183 = sphi 0, %s180
    %s184 = sphi 0, %s183
    %s200 = sphi 0, %s184
  $region4: #{rnn_encoder_forward.2} parent=0 // loop_header_branch
    %14 = sbr.rel (%p12) target = $region8
  $region5: #{rnn_encoder_forward.2} parent=0 // loop_body
    %s16 = ssub.s32 %s11, 1
    %s17 = ssub.s32 %s11, 2
    %s24 = sadd.s32 1, %s19
    %p25 = scmp.ge.s32.totalorder %s24, 2
    %s26 = scalar_select %p25, 0, %s24
    %s27 = sadd.s32 1, %s18
    %s28 = scalar_select %p25, %s27, %s18
    %p29 = scmp.ge.s32.totalorder %s28, 2
    %s30 = scalar_select %p29, 0, %s28
    %s31 = ssub.s32 1, %s18
    %s32 = smul.u32 %s31, %s19
    %s33 = ssub.s32 1, %s19
    %s34 = smul.u32 %s18, %s33
    %s35 = sadd.s32 %s32, %s34
    %s36 = ssub.s32 1, %s30
    %s37 = smul.u32 %s36, %s26
    %s38 = ssub.s32 1, %s26
    %s39 = smul.u32 %s30, %s38
    %s40 = sadd.s32 %s37, %s39
    %s41 = ssub.s32 %s35, %s40
    %p42 = scmp.eq.s32.totalorder %s41, 0
    %s44 = sadd.s32 %s43, 1
    %s45 = scalar_select %p42, %s43, %s44
    %p48 = pneg %p42
    %p49 = scmp.eq.s32.totalorder %s11, 3
    %p50 = por %p48, %p49
    %p51 = scmp.ne.s32.totalorder %s43, %s46
    %p52 = scmp.eq.s32.totalorder %s11, 0
    %p53 = por %p51, %p52
    %p54 = scmp.ne.s32.totalorder %s43, %s46
    %p55 = scmp.eq.s32.totalorder %s16, 3
    %p56 = por %p54, %p55
    %p57 = scmp.ne.s32.totalorder %s46, %s47
    %p58 = scmp.eq.s32.totalorder %s16, 0
    %p59 = por %p57, %p58
    %p60 = scmp.ne.s32.totalorder %s46, %s47
    %p61 = scmp.eq.s32.totalorder %s17, 3
    %p62 = por %p60, %p61
    %p64 = scmp.ne.s32.totalorder %s47, %s63
    %p65 = scmp.eq.s32.totalorder %s17, 0
    %p66 = por %p64, %p65
    %s68 = sadd.s32 %s67, 1
    %p71 = scmp.eq.s32.totalorder %s11, 3
    %p72 = scmp.ne.s32.totalorder %s67, %s69
    %p73 = scmp.eq.s32.totalorder %s11, 0
    %p74 = por %p72, %p73
    %p75 = scmp.ne.s32.totalorder %s67, %s69
    %p76 = scmp.eq.s32.totalorder %s16, 3
    %p77 = por %p75, %p76
    %p78 = scmp.ne.s32.totalorder %s69, %s70
    %p79 = scmp.eq.s32.totalorder %s16, 0
    %p80 = por %p78, %p79
    %p81 = scmp.ne.s32.totalorder %s69, %s70
    %p82 = scmp.eq.s32.totalorder %s17, 3
    %p83 = por %p81, %p82
    %p85 = scmp.ne.s32.totalorder %s70, %s84
    %p86 = scmp.eq.s32.totalorder %s17, 0
    %p87 = por %p85, %p86
    %s88 = ssub.s32 %s18, %s30
    %p89 = scmp.eq.s32.totalorder %s88, 0
    %s91 = sadd.s32 %s90, 1
    %s92 = scalar_select %p89, %s90, %s91
    %p95 = pneg %p89
    %p96 = scmp.eq.s32.totalorder %s11, 3
    %p97 = por %p95, %p96
    %p98 = scmp.ne.s32.totalorder %s90, %s93
    %p99 = scmp.eq.s32.totalorder %s11, 0
    %p100 = por %p98, %p99
    %p101 = scmp.ne.s32.totalorder %s90, %s93
    %p102 = scmp.eq.s32.totalorder %s16, 3
    %p103 = por %p101, %p102
    %p104 = scmp.ne.s32.totalorder %s93, %s94
    %p105 = scmp.eq.s32.totalorder %s16, 0
    %p106 = por %p104, %p105
    %p107 = scmp.ne.s32.totalorder %s93, %s94
    %p108 = scmp.eq.s32.totalorder %s17, 3
    %p109 = por %p107, %p108
    %p111 = scmp.ne.s32.totalorder %s94, %s110
    %p112 = scmp.eq.s32.totalorder %s17, 0
    %p113 = por %p111, %p112
    %s114 = ssub.s32 %s18, %s30
    %p115 = scmp.eq.s32.totalorder %s114, 0
    %s117 = sadd.s32 %s116, 1
    %s118 = scalar_select %p115, %s116, %s117
    %p121 = pneg %p115
    %p122 = scmp.eq.s32.totalorder %s11, 3
    %p123 = por %p121, %p122
    %p124 = scmp.ne.s32.totalorder %s116, %s119
    %p125 = scmp.eq.s32.totalorder %s11, 0
    %p126 = por %p124, %p125
    %p127 = scmp.ne.s32.totalorder %s116, %s119
    %p128 = scmp.eq.s32.totalorder %s16, 3
    %p129 = por %p127, %p128
    %p130 = scmp.ne.s32.totalorder %s119, %s120
    %p131 = scmp.eq.s32.totalorder %s16, 0
    %p132 = por %p130, %p131
    %p133 = scmp.ne.s32.totalorder %s119, %s120
    %p134 = scmp.eq.s32.totalorder %s17, 3
    %p135 = por %p133, %p134
    %p137 = scmp.ne.s32.totalorder %s120, %s136
    %p138 = scmp.eq.s32.totalorder %s17, 0
    %p139 = por %p137, %p138
    %s140 = ssub.s32 %s18, %s30
    %p141 = scmp.eq.s32.totalorder %s140, 0
    %s143 = sadd.s32 %s142, 1
    %s144 = scalar_select %p141, %s142, %s143
    %p147 = pneg %p141
    %p148 = scmp.eq.s32.totalorder %s11, 3
    %p149 = por %p147, %p148
    %p150 = scmp.ne.s32.totalorder %s142, %s145
    %p151 = scmp.eq.s32.totalorder %s11, 0
    %p152 = por %p150, %p151
    %p153 = scmp.ne.s32.totalorder %s142, %s145
    %p154 = scmp.eq.s32.totalorder %s16, 3
    %p155 = por %p153, %p154
    %p156 = scmp.ne.s32.totalorder %s145, %s146
    %p157 = scmp.eq.s32.totalorder %s16, 0
    %p158 = por %p156, %p157
    %p159 = scmp.ne.s32.totalorder %s145, %s146
    %p160 = scmp.eq.s32.totalorder %s17, 3
    %p161 = por %p159, %p160
    %p163 = scmp.ne.s32.totalorder %s146, %s162
    %p164 = scmp.eq.s32.totalorder %s17, 0
    %p165 = por %p163, %p164
    %s166 = ssub.s32 1, %s18
    %s167 = smul.u32 %s166, %s19
    %s168 = ssub.s32 1, %s19
    %s169 = smul.u32 %s18, %s168
    %s170 = sadd.s32 %s167, %s169
    %s171 = ssub.s32 1, %s30
    %s172 = smul.u32 %s171, %s26
    %s173 = ssub.s32 1, %s26
    %s174 = smul.u32 %s30, %s173
    %s175 = sadd.s32 %s172, %s174
    %s176 = ssub.s32 %s18, %s30
    %s177 = ssub.s32 %s170, %s175
    %s178 = sor.u32 %s176, %s177
    %p179 = scmp.eq.s32.totalorder %s178, 0
    %s181 = sadd.s32 %s180, 1
    %s182 = scalar_select %p179, %s180, %s181
    %p185 = pneg %p179
    %p186 = scmp.eq.s32.totalorder %s11, 3
    %p187 = por %p185, %p186
    %p188 = scmp.ne.s32.totalorder %s180, %s183
    %p189 = scmp.eq.s32.totalorder %s11, 0
    %p190 = por %p188, %p189
    %p191 = scmp.ne.s32.totalorder %s180, %s183
    %p192 = scmp.eq.s32.totalorder %s16, 3
    %p193 = por %p191, %p192
    %p194 = scmp.ne.s32.totalorder %s183, %s184
    %p195 = scmp.eq.s32.totalorder %s16, 0
    %p196 = por %p194, %p195
    %p197 = scmp.ne.s32.totalorder %s183, %s184
    %p198 = scmp.eq.s32.totalorder %s17, 3
    %p199 = por %p197, %p198
    %p201 = scmp.ne.s32.totalorder %s184, %s200
    %p202 = scmp.eq.s32.totalorder %s17, 0
    %p203 = por %p201, %p202
    %p204 = scmp.le.s32.totalorder 1, %s11
    %p205 = scmp.lt.s32.totalorder %s11, 5
    %p206 = pnand %p204, %p205
    %p207 = pneg %p206
    // Predicated region
    $region9: #{rnn_encoder_forward.2} parent=5 // pred_check
      _
    $region10: #{rnn_encoder_forward.2} parent=5 // pred_check_branch
      %209 = sbr.rel (%p206) target = $region12
    $region11: #{rnn_encoder_forward.2} parent=5 // pred_region
      %s210 = ssub.s32 %s11, 1
      // Predicated region
      $region13: #{rnn_encoder_forward.2} parent=11 // pred_check
        %p211 = pneg %p80
      $region14: #{rnn_encoder_forward.2} parent=11 // pred_check_branch
        %213 = sbr.rel (%p211) target = $region16
      $region15: #{rnn_encoder_forward.2} parent=11 // pred_region
        _
      $region16: #{rnn_encoder_forward.2} parent=11 // pred_fallthru
        _
    $region12: #{rnn_encoder_forward.2} parent=5 // pred_fallthru
      _
    %p214 = scmp.lt.s32.totalorder %s11, 4
    // Predicated region
    $region17: #{rnn_encoder_forward.2} parent=5 // pred_check
      %p215 = pneg %p214
    $region18: #{rnn_encoder_forward.2} parent=5 // pred_check_branch
      %217 = sbr.rel (%p215) target = $region20
    $region19: #{rnn_encoder_forward.2} parent=5 // pred_region
      // Predicated region
      $region21: #{rnn_encoder_forward.2} parent=19 // pred_check
        %p218 = pneg %p53
      $region22: #{rnn_encoder_forward.2} parent=19 // pred_check_branch
        %220 = sbr.rel (%p218) target = $region24
      $region23: #{rnn_encoder_forward.2} parent=19 // pred_region
        %s221 = ssub.s32 1, %s18
        %s222 = smul.u32 %s221, %s19
        %s223 = ssub.s32 1, %s19
        %s224 = smul.u32 %s18, %s223
        %s225 = sadd.s32 %s222, %s224
        %s226 = smul.u32 4, %s225
        %p227 = scmp.lt.s32.totalorder %s226, 7
        %s228 = scalar_select %p227, %s226, 7
        %s229 = smul.addr %s228, 8
        %s230 = scalar_lea.vmem %s0, %s229
        %s231 = ssub.s32 1, %s18
        %s232 = smul.u32 %s231, %s19
        %s233 = ssub.s32 1, %s19
        %s234 = smul.u32 %s18, %s233
        %s235 = sadd.s32 %s232, %s234
        %s236 = smul.u32 4, %s235
      $region24: #{rnn_encoder_forward.2} parent=19 // pred_fallthru
        _
      // Predicated region
      $region25: #{rnn_encoder_forward.2} parent=19 // pred_check
        %p237 = pneg %p100
      $region26: #{rnn_encoder_forward.2} parent=19 // pred_check_branch
        %239 = sbr.rel (%p237) target = $region28
      $region27: #{rnn_encoder_forward.2} parent=19 // pred_region
        %p240 = scmp.lt.s32.totalorder %s18, 1
        %s241 = scalar_select %p240, %s18, 1
        %s242 = smul.addr %s241, 8
        %s243 = smul.addr %s242, 4
        %s244 = scalar_lea.vmem %s2, %s243
      $region28: #{rnn_encoder_forward.2} parent=19 // pred_fallthru
        _
      // Predicated region
      $region29: #{rnn_encoder_forward.2} parent=19 // pred_check
        %p245 = pneg %p126
      $region30: #{rnn_encoder_forward.2} parent=19 // pred_check_branch
        %247 = sbr.rel (%p245) target = $region32
      $region31: #{rnn_encoder_forward.2} parent=19 // pred_region
        %p248 = scmp.lt.s32.totalorder %s18, 1
        %s249 = scalar_select %p248, %s18, 1
        %s250 = smul.addr %s249, 64
        %s251 = smul.addr %s250, 4
        %s252 = scalar_lea.vmem %s3, %s251
      $region32: #{rnn_encoder_forward.2} parent=19 // pred_fallthru
        _
      // Predicated region
      $region33: #{rnn_encoder_forward.2} parent=19 // pred_check
        %p253 = pneg %p152
      $region34: #{rnn_encoder_forward.2} parent=19 // pred_check_branch
        %255 = sbr.rel (%p253) target = $region36
      $region35: #{rnn_encoder_forward.2} parent=19 // pred_region
        %p256 = scmp.lt.s32.totalorder %s18, 1
        %s257 = scalar_select %p256, %s18, 1
        %s258 = smul.addr %s257, 4
        %s259 = scalar_lea.vmem %s4, %s258
      $region36: #{rnn_encoder_forward.2} parent=19 // pred_fallthru
        _
    $region20: #{rnn_encoder_forward.2} parent=5 // pred_fallthru
      _
    %p260 = scmp.le.s32.totalorder 1, %s11
    %p261 = scmp.lt.s32.totalorder %s11, 5
    %p262 = pnand %p260, %p261
    %p263 = pneg %p262
    // Predicated region
    $region37: #{rnn_encoder_forward.2} parent=5 // pred_check
      _
    $region38: #{rnn_encoder_forward.2} parent=5 // pred_check_branch
      %265 = sbr.rel (%p262) target = $region40
    $region39: #{rnn_encoder_forward.2} parent=5 // pred_region
      %s266 = ssub.s32 %s11, 1
      %s267 = ssub.s32 1, %s20
      %s268 = smul.u32 %s267, %s21
      %s269 = ssub.s32 1, %s21
      %s270 = smul.u32 %s20, %s269
      %s271 = sadd.s32 %s268, %s270
      %s272 = smul.u32 4, %s271
      %p273 = scmp.lt.s32.totalorder %s272, 7
      %s274 = scalar_select %p273, %s272, 7
      %s275 = smul.addr %s274, 8
      %s276 = scalar_lea.vmem %s0, %s275
      %p277 = pneg %p59
      %p278 = pneg %p56
      %p279 = pneg %p80
      %p280 = pneg %p77
      %p281 = scmp.lt.s32.totalorder %s20, 1
      %s282 = scalar_select %p281, %s20, 1
      %s283 = smul.addr %s282, 8
      %s284 = smul.addr %s283, 4
      %s285 = scalar_lea.vmem %s2, %s284
      %p286 = pneg %p106
      %p287 = pneg %p103
      %p288 = scmp.lt.s32.totalorder %s20, 1
      %s289 = scalar_select %p288, %s20, 1
      %s290 = smul.addr %s289, 64
      %s291 = smul.addr %s290, 4
      %s292 = scalar_lea.vmem %s3, %s291
      %p293 = pneg %p132
      %p294 = pneg %p129
      %p295 = scmp.lt.s32.totalorder %s20, 1
      %s296 = scalar_select %p295, %s20, 1
      %s297 = smul.addr %s296, 4
      %s298 = scalar_lea.vmem %s4, %s297
      %p299 = pneg %p158
      %p300 = pneg %p155
      %p301 = pneg %p196
      %p302 = pneg %p193
      %s303 = ssub.s32 1, %s20
      %s304 = smul.u32 %s303, %s21
      %s305 = ssub.s32 1, %s21
      %s306 = smul.u32 %s20, %s305
      %s307 = sadd.s32 %s304, %s306
      %s308 = smul.u32 4, %s307
      %p309 = scmp.lt.s32.totalorder %s20, 1
      %s310 = scalar_select %p309, %s20, 1
      %p311 = scmp.lt.s32.totalorder %s308, 7
      %s312 = scalar_select %p311, %s308, 7
      %s313 = smul.addr %s310, 8
      %s314 = sadd.s32 %s312, %s313
      %s315 = smul.addr %s314, 8
      %s316 = scalar_lea.vmem %s5, %s315
      %s317 = ssub.s32 1, %s20
      %s318 = smul.u32 %s317, %s21
      %s319 = ssub.s32 1, %s21
      %s320 = smul.u32 %s20, %s319
      %s321 = sadd.s32 %s318, %s320
      %s322 = smul.u32 4, %s321
      %p323 = scmp.lt.s32.totalorder %s322, 7
      %s324 = scalar_select %p323, %s322, 7
      %s325 = smul.addr %s324, 8
      %s326 = scalar_lea.vmem %s0, %s325
      %s327 = ssub.s32 1, %s20
      %s328 = smul.u32 %s327, %s21
      %s329 = ssub.s32 1, %s21
      %s330 = smul.u32 %s20, %s329
      %s331 = sadd.s32 %s328, %s330
      %s332 = smul.u32 4, %s331
      %p333 = scmp.lt.s32.totalorder %s20, 1
      %s334 = scalar_select %p333, %s20, 1
      %s335 = smul.addr %s334, 8
      %s336 = smul.addr %s335, 4
      %s337 = scalar_lea.vmem %s2, %s336
      %p338 = scmp.lt.s32.totalorder %s20, 1
      %s339 = scalar_select %p338, %s20, 1
      %s340 = smul.addr %s339, 64
      %s341 = smul.addr %s340, 4
      %s342 = scalar_lea.vmem %s3, %s341
      %p343 = scmp.lt.s32.totalorder %s20, 1
      %s344 = scalar_select %p343, %s20, 1
      %s345 = smul.addr %s344, 4
      %s346 = scalar_lea.vmem %s4, %s345
      %s347 = ssub.s32 1, %s20
      %s348 = smul.u32 %s347, %s21
      %s349 = ssub.s32 1, %s21
      %s350 = smul.u32 %s20, %s349
      %s351 = sadd.s32 %s348, %s350
      %s352 = smul.u32 4, %s351
      %p353 = scmp.lt.s32.totalorder %s20, 1
      %s354 = scalar_select %p353, %s20, 1
      %p355 = scmp.lt.s32.totalorder %s352, 7
      %s356 = scalar_select %p355, %s352, 7
      %s357 = smul.addr %s354, 8
      %s358 = sadd.s32 %s356, %s357
      %s359 = smul.addr %s358, 8
      %s360 = scalar_lea.vmem %s5, %s359
      %s361 = ssub.s32 1, %s20
      %s362 = smul.u32 %s361, %s21
      %s363 = ssub.s32 1, %s21
      %s364 = smul.u32 %s20, %s363
      %s365 = sadd.s32 %s362, %s364
      %s366 = smul.u32 4, %s365
      %p368 = scmp.eq.s32.totalorder %s21, 0
      // Predicated region
      $region41: #{rnn_encoder_forward.2} parent=39 // pred_check
        %p369 = pneg %p368
      $region42: #{rnn_encoder_forward.2} parent=39 // pred_check_branch
        %371 = sbr.rel (%p369) target = $region44
      $region43: #{rnn_encoder_forward.2} parent=39 // pred_region
        %372 = vst [vmem:[#allocation3] sm:$0xff] 0.0
        %373 = vst [vmem:[#allocation4] sm:$0xff] 0.0
      $region44: #{rnn_encoder_forward.2} parent=39 // pred_fallthru
        _
      %v374 = vld [vmem:[%s326] sm:$0xff]
      %v375 = vld [vmem:[%s326 + $0x8] sm:$0xff]
      %v376 = vld [vmem:[%s326 + $0x10] sm:$0xff]
      %v377 = vld [vmem:[%s326 + $0x18] sm:$0xff]
      %v378 = vpack.c.bf16 %v375, %v374
      %v379 = vpack.c.bf16 %v377, %v376
      %v380 = vld [vmem:[%s337] sm:$0xff]
      %v381 = vld [vmem:[%s337 + $0x8] sm:$0xff]
      %v382 = vld [vmem:[%s337 + $0x10] sm:$0xff]
      %v383 = vld [vmem:[%s337 + $0x18] sm:$0xff]
      %v384 = vld [vmem:[%s346] sm:$0xf]
      %v386 = vlaneseq
      %v387 = vshrl.u32 %v386, 7
      %v388 = vsub.s32 0, %v387
      %v389 = vrot.slane %v384, %v388
      %v390 = vlaneseq
      %v391 = vshrl.u32 %v390, 7
      %v392 = vsub.s32 1, %v391
      %v393 = vrot.slane %v384, %v392
      %v394 = vlaneseq
      %v395 = vshrl.u32 %v394, 7
      %v396 = vsub.s32 2, %v395
      %v397 = vrot.slane %v384, %v396
      %v398 = vlaneseq
      %v399 = vshrl.u32 %v398, 7
      %v400 = vsub.s32 3, %v399
      %v401 = vrot.slane %v384, %v400
      %v410 = vunpack.c.l.b16 %v380
      %v411 = vunpack.c.h.b16 %v380
      %v412 = vunpack.c.l.b16 %v381
      %v413 = vunpack.c.h.b16 %v381
      %v414 = vunpack.c.l.b16 %v382
      %v415 = vunpack.c.h.b16 %v382
      %v416 = vunpack.c.l.b16 %v383
      %v417 = vunpack.c.h.b16 %v383
      %v418 = vpack.c.b16 %v414, %v410
      %v419 = vpack.c.b16 %v415, %v411
      %v420 = vpack.c.b16 %v416, %v412
      %v421 = vpack.c.b16 %v417, %v413
      %vm426 = vcmask 130048
      %v428 = vsel %vm426, %v378, 0
      %v431 = vsel %vm426, %v379, 0
      %433 = vmatprep.subr.bf16.mxu0 %v419
      %434 = vmatpush1.bf16.msra.mxu0 %v418
      %435 = vmatprep.subr.bf16.mxu0 0
      %436 = vmatpush1.bf16.msra.mxu0 0
      %437 = vmatprep.subr.bf16.mxu0 0
      %438 = vmatpush1.bf16.msra.mxu0 0
      %439 = vmatprep.subr.bf16.mxu0 0
      %440 = vmatpush1.bf16.msra.mxu0 0
      %441 = vmatprep.subr.bf16.mxu0 0
      %442 = vmatpush1.bf16.msra.mxu0 0
      %443 = vmatprep.subr.bf16.mxu0 0
      %444 = vmatpush1.bf16.msra.mxu0 0
      %445 = vmatprep.subr.bf16.mxu0 0
      %446 = vmatpush1.bf16.msra.mxu0 0
      %447 = vmatprep.subr.bf16.mxu0 0
      %448 = vmatpush1.bf16.msra.mxu0 0
      %449 = vmatprep.subr.bf16.mxu0 0
      %450 = vmatpush1.bf16.msra.mxu0 0
      %451 = vmatprep.subr.bf16.mxu0 0
      %452 = vmatpush1.bf16.msra.mxu0 0
      %453 = vmatprep.subr.bf16.mxu0 0
      %454 = vmatpush1.bf16.msra.mxu0 0
      %455 = vmatprep.subr.bf16.mxu0 0
      %456 = vmatpush1.bf16.msra.mxu0 0
      %457 = vmatprep.subr.bf16.mxu0 0
      %458 = vmatpush1.bf16.msra.mxu0 0
      %459 = vmatprep.subr.bf16.mxu0 0
      %460 = vmatpush1.bf16.msra.mxu0 0
      %461 = vmatprep.subr.bf16.mxu0 0
      %462 = vmatpush1.bf16.msra.mxu0 0
      %463 = vmatprep.subr.bf16.mxu0 0
      %464 = vmatpush1.bf16.msra.mxu0 0
      %465 = vmatprep.mubr.bf16.mxu0 0
      %466 = vmatmul.mubr.bf16.gmra.mrb[0].mxu0 %v428
      %v467 = vpop.f32.mrb[0].mxu0
      %v468 = vadd.f32 %v389, %v467
      %v469 = vpop.f32.mrb[0].mxu0
      %v470 = vadd.f32 %v393, %v469
      %v471 = vpop.f32.mrb[0].mxu0
      %v472 = vadd.f32 %v389, %v471
      %v473 = vpop.f32.mrb[0].mxu0
      %v474 = vadd.f32 %v393, %v473
      %475 = vmatprep.mubr.bf16.mxu0 0
      %476 = vmatmul.mubr.bf16.gmra.mrb[0].mxu0 %v431
      %v477 = vpop.f32.mrb[0].mxu0
      %v478 = vadd.f32 %v389, %v477
      %v479 = vpop.f32.mrb[0].mxu0
      %v480 = vadd.f32 %v393, %v479
      %v481 = vpop.f32.mrb[0].mxu0
      %v482 = vadd.f32 %v389, %v481
      %v483 = vpop.f32.mrb[0].mxu0
      %v484 = vadd.f32 %v393, %v483
      %485 = vdwg.mxu0
      %486 = vmatprep.subr.bf16.mxu0 %v421
      %487 = vmatpush1.bf16.msra.mxu0 %v420
      %488 = vmatprep.subr.bf16.mxu0 0
      %489 = vmatpush1.bf16.msra.mxu0 0
      %490 = vmatprep.subr.bf16.mxu0 0
      %491 = vmatpush1.bf16.msra.mxu0 0
      %492 = vmatprep.subr.bf16.mxu0 0
      %493 = vmatpush1.bf16.msra.mxu0 0
      %494 = vmatprep.subr.bf16.mxu0 0
      %495 = vmatpush1.bf16.msra.mxu0 0
      %496 = vmatprep.subr.bf16.mxu0 0
      %497 = vmatpush1.bf16.msra.mxu0 0
      %498 = vmatprep.subr.bf16.mxu0 0
      %499 = vmatpush1.bf16.msra.mxu0 0
      %500 = vmatprep.subr.bf16.mxu0 0
      %501 = vmatpush1.bf16.msra.mxu0 0
      %502 = vmatprep.subr.bf16.mxu0 0
      %503 = vmatpush1.bf16.msra.mxu0 0
      %504 = vmatprep.subr.bf16.mxu0 0
      %505 = vmatpush1.bf16.msra.mxu0 0
      %506 = vmatprep.subr.bf16.mxu0 0
      %507 = vmatpush1.bf16.msra.mxu0 0
      %508 = vmatprep.subr.bf16.mxu0 0
      %509 = vmatpush1.bf16.msra.mxu0 0
      %510 = vmatprep.subr.bf16.mxu0 0
      %511 = vmatpush1.bf16.msra.mxu0 0
      %512 = vmatprep.subr.bf16.mxu0 0
      %513 = vmatpush1.bf16.msra.mxu0 0
      %514 = vmatprep.subr.bf16.mxu0 0
      %515 = vmatpush1.bf16.msra.mxu0 0
      %516 = vmatprep.subr.bf16.mxu0 0
      %517 = vmatpush1.bf16.msra.mxu0 0
      %518 = vmatprep.mubr.bf16.mxu0 0
      %519 = vmatmul.mubr.bf16.gmra.mrb[0].mxu0 %v428
      %v520 = vpop.f32.mrb[0].mxu0
      %v521 = vadd.f32 %v397, %v520
      %v522 = vpop.f32.mrb[0].mxu0
      %v523 = vadd.f32 %v401, %v522
      %v524 = vpop.f32.mrb[0].mxu0
      %v525 = vadd.f32 %v397, %v524
      %v526 = vpop.f32.mrb[0].mxu0
      %v527 = vadd.f32 %v401, %v526
      %528 = vmatprep.mubr.bf16.mxu0 0
      %529 = vmatmul.mubr.bf16.gmra.mrb[0].mxu0 %v431
      %v530 = vpop.f32.mrb[0].mxu0
      %v531 = vadd.f32 %v397, %v530
      %v532 = vpop.f32.mrb[0].mxu0
      %v533 = vadd.f32 %v401, %v532
      %v534 = vpop.f32.mrb[0].mxu0
      %v535 = vadd.f32 %v397, %v534
      %v536 = vpop.f32.mrb[0].mxu0
      %v537 = vadd.f32 %v401, %v536
      %538 = vdwg.mxu0
      %539 = vst [vmem:[#allocation2] sm:$0xff] %v468
      %540 = vst [vmem:[#allocation2 + $0x8] sm:$0xff] %v470
      %541 = vst [vmem:[#allocation2 + $0x10] sm:$0xff] %v521
      %542 = vst [vmem:[#allocation2 + $0x18] sm:$0xff] %v523
      %543 = vst [vmem:[#allocation2 + $0x20] sm:$0xff] %v472
      %544 = vst [vmem:[#allocation2 + $0x28] sm:$0xff] %v474
      %545 = vst [vmem:[#allocation2 + $0x30] sm:$0xff] %v525
      %546 = vst [vmem:[#allocation2 + $0x38] sm:$0xff] %v527
      %547 = vst [vmem:[#allocation2 + $0x40] sm:$0xff] %v478
      %548 = vst [vmem:[#allocation2 + $0x48] sm:$0xff] %v480
      %549 = vst [vmem:[#allocation2 + $0x50] sm:$0xff] %v531
      %550 = vst [vmem:[#allocation2 + $0x58] sm:$0xff] %v533
      %551 = vst [vmem:[#allocation2 + $0x60] sm:$0xff] %v482
      %552 = vst [vmem:[#allocation2 + $0x68] sm:$0xff] %v484
      %553 = vst [vmem:[#allocation2 + $0x70] sm:$0xff] %v535
      %554 = vst [vmem:[#allocation2 + $0x78] sm:$0xff] %v537
      %v555 = vld [vmem:[%s1] sm:$0xff]
      %v556 = vld [vmem:[%s342] sm:$0xff]
      %v557 = vld [vmem:[%s342 + $0x8] sm:$0xff]
      %v558 = vld [vmem:[%s342 + $0x10] sm:$0xff]
      %v559 = vld [vmem:[%s342 + $0x18] sm:$0xff]
      %v560 = vld [vmem:[%s342 + $0x20] sm:$0xff]
      %v561 = vld [vmem:[%s342 + $0x28] sm:$0xff]
      %v562 = vld [vmem:[%s342 + $0x30] sm:$0xff]
      %v563 = vld [vmem:[%s342 + $0x38] sm:$0xff]
      %v564 = vld [vmem:[%s342 + $0x40] sm:$0xff]
      %v565 = vld [vmem:[%s342 + $0x48] sm:$0xff]
      %v566 = vld [vmem:[%s342 + $0x50] sm:$0xff]
      %v567 = vld [vmem:[%s342 + $0x58] sm:$0xff]
      %v568 = vld [vmem:[%s342 + $0x60] sm:$0xff]
      %v569 = vld [vmem:[%s342 + $0x68] sm:$0xff]
      %v570 = vld [vmem:[%s342 + $0x70] sm:$0xff]
      %v571 = vld [vmem:[%s342 + $0x78] sm:$0xff]
      %v572 = vld [vmem:[%s342 + $0x80] sm:$0xff]
      %v573 = vld [vmem:[%s342 + $0x88] sm:$0xff]
      %v574 = vld [vmem:[%s342 + $0x90] sm:$0xff]
      %v575 = vld [vmem:[%s342 + $0x98] sm:$0xff]
      %v576 = vld [vmem:[%s342 + $0xa0] sm:$0xff]
      %v577 = vld [vmem:[%s342 + $0xa8] sm:$0xff]
      %v578 = vld [vmem:[%s342 + $0xb0] sm:$0xff]
      %v579 = vld [vmem:[%s342 + $0xb8] sm:$0xff]
      %v580 = vld [vmem:[%s342 + $0xc0] sm:$0xff]
      %v581 = vld [vmem:[%s342 + $0xc8] sm:$0xff]
      %v582 = vld [vmem:[%s342 + $0xd0] sm:$0xff]
      %v583 = vld [vmem:[%s342 + $0xd8] sm:$0xff]
      %v584 = vld [vmem:[%s342 + $0xe0] sm:$0xff]
      %v585 = vld [vmem:[%s342 + $0xe8] sm:$0xff]
      %v586 = vld [vmem:[%s342 + $0xf0] sm:$0xff]
      %v587 = vld [vmem:[%s342 + $0xf8] sm:$0xff]
      %s588 = ssub.s32 1, %s20
      %s589 = smul.u32 %s588, %s21
      %s590 = ssub.s32 1, %s21
      %s591 = smul.u32 %s20, %s590
      %s592 = sadd.s32 %s589, %s591
      %s593 = smul.u32 %s592, 4
      %p594 = scmp.eq.s32.totalorder %s20, 0
      %s595 = scalar_select %p594, 0, 3
      %s596 = sadd.s32 %s593, %s595
      %v597 = vstv %s596
      %vm598 = vcmp.gt.s32.totalorder %v555, %v597
      %s599 = smul.u32 %s595, 4
      %s600 = smul.addr %s599, 8
      %s601 = scalar_lea.vmem [#allocation2], %s600
      %v602 = vld [vmem:[%s601] sm:$0xff]
      %v603 = vld [vmem:[%s601 + $0x8] sm:$0xff]
      %v604 = vld [vmem:[%s601 + $0x10] sm:$0xff]
      %v605 = vld [vmem:[%s601 + $0x18] sm:$0xff]
      %v606 = vld [vmem:[#allocation3] sm:$0xff]
      %v607 = vpack.c.bf16 %v606, %v606
      %v640 = vunpack.c.l.b16 %v556
      %v641 = vunpack.c.h.b16 %v556
      %v642 = vunpack.c.l.b16 %v557
      %v643 = vunpack.c.h.b16 %v557
      %v644 = vunpack.c.l.b16 %v558
      %v645 = vunpack.c.h.b16 %v558
      %v646 = vunpack.c.l.b16 %v559
      %v647 = vunpack.c.h.b16 %v559
      %v648 = vunpack.c.l.b16 %v560
      %v649 = vunpack.c.h.b16 %v560
      %v650 = vunpack.c.l.b16 %v561
      %v651 = vunpack.c.h.b16 %v561
      %v652 = vunpack.c.l.b16 %v562
      %v653 = vunpack.c.h.b16 %v562
      %v654 = vunpack.c.l.b16 %v563
      %v655 = vunpack.c.h.b16 %v563
      %v656 = vunpack.c.l.b16 %v564
      %v657 = vunpack.c.h.b16 %v564
      %v658 = vunpack.c.l.b16 %v565
      %v659 = vunpack.c.h.b16 %v565
      %v660 = vunpack.c.l.b16 %v566
      %v661 = vunpack.c.h.b16 %v566
      %v662 = vunpack.c.l.b16 %v567
      %v663 = vunpack.c.h.b16 %v567
      %v664 = vunpack.c.l.b16 %v568
      %v665 = vunpack.c.h.b16 %v568
      %v666 = vunpack.c.l.b16 %v569
      %v667 = vunpack.c.h.b16 %v569
      %v668 = vunpack.c.l.b16 %v570
      %v669 = vunpack.c.h.b16 %v570
      %v670 = vunpack.c.l.b16 %v571
      %v671 = vunpack.c.h.b16 %v571
      %v672 = vunpack.c.l.b16 %v572
      %v673 = vunpack.c.h.b16 %v572
      %v674 = vunpack.c.l.b16 %v573
      %v675 = vunpack.c.h.b16 %v573
      %v676 = vunpack.c.l.b16 %v574
      %v677 = vunpack.c.h.b16 %v574
      %v678 = vunpack.c.l.b16 %v575
      %v679 = vunpack.c.h.b16 %v575
      %v680 = vunpack.c.l.b16 %v576
      %v681 = vunpack.c.h.b16 %v576
      %v682 = vunpack.c.l.b16 %v577
      %v683 = vunpack.c.h.b16 %v577
      %v684 = vunpack.c.l.b16 %v578
      %v685 = vunpack.c.h.b16 %v578
      %v686 = vunpack.c.l.b16 %v579
      %v687 = vunpack.c.h.b16 %v579
      %v688 = vunpack.c.l.b16 %v580
      %v689 = vunpack.c.h.b16 %v580
      %v690 = vunpack.c.l.b16 %v581
      %v691 = vunpack.c.h.b16 %v581
      %v692 = vunpack.c.l.b16 %v582
      %v693 = vunpack.c.h.b16 %v582
      %v694 = vunpack.c.l.b16 %v583
      %v695 = vunpack.c.h.b16 %v583
      %v696 = vunpack.c.l.b16 %v584
      %v697 = vunpack.c.h.b16 %v584
      %v698 = vunpack.c.l.b16 %v585
      %v699 = vunpack.c.h.b16 %v585
      %v700 = vunpack.c.l.b16 %v586
      %v701 = vunpack.c.h.b16 %v586
      %v702 = vunpack.c.l.b16 %v587
      %v703 = vunpack.c.h.b16 %v587
      %v704 = vpack.c.b16 %v644, %v640
      %v705 = vpack.c.b16 %v645, %v641
      %v706 = vpack.c.b16 %v646, %v642
      %v707 = vpack.c.b16 %v647, %v643
      %v708 = vpack.c.b16 %v652, %v648
      %v709 = vpack.c.b16 %v653, %v649
      %v710 = vpack.c.b16 %v654, %v650
      %v711 = vpack.c.b16 %v655, %v651
      %v712 = vpack.c.b16 %v660, %v656
      %v713 = vpack.c.b16 %v661, %v657
      %v714 = vpack.c.b16 %v662, %v658
      %v715 = vpack.c.b16 %v663, %v659
      %v716 = vpack.c.b16 %v668, %v664
      %v717 = vpack.c.b16 %v669, %v665
      %v718 = vpack.c.b16 %v670, %v666
      %v719 = vpack.c.b16 %v671, %v667
      %v720 = vpack.c.b16 %v676, %v672
      %v721 = vpack.c.b16 %v677, %v673
      %v722 = vpack.c.b16 %v678, %v674
      %v723 = vpack.c.b16 %v679, %v675
      %v724 = vpack.c.b16 %v684, %v680
      %v725 = vpack.c.b16 %v685, %v681
      %v726 = vpack.c.b16 %v686, %v682
      %v727 = vpack.c.b16 %v687, %v683
      %v728 = vpack.c.b16 %v692, %v688
      %v729 = vpack.c.b16 %v693, %v689
      %v730 = vpack.c.b16 %v694, %v690
      %v731 = vpack.c.b16 %v695, %v691
      %v732 = vpack.c.b16 %v700, %v696
      %v733 = vpack.c.b16 %v701, %v697
      %v734 = vpack.c.b16 %v702, %v698
      %v735 = vpack.c.b16 %v703, %v699
      %768 = vmatprep.subr.bf16.mxu0 %v705
      %769 = vmatpush1.bf16.msra.mxu0 %v704
      %770 = vmatprep.subr.bf16.mxu0 %v709
      %771 = vmatpush1.bf16.msra.mxu0 %v708
      %772 = vmatprep.subr.bf16.mxu0 %v713
      %773 = vmatpush1.bf16.msra.mxu0 %v712
      %774 = vmatprep.subr.bf16.mxu0 %v717
      %775 = vmatpush1.bf16.msra.mxu0 %v716
      %776 = vmatprep.subr.bf16.mxu0 %v721
      %777 = vmatpush1.bf16.msra.mxu0 %v720
      %778 = vmatprep.subr.bf16.mxu0 %v725
      %779 = vmatpush1.bf16.msra.mxu0 %v724
      %780 = vmatprep.subr.bf16.mxu0 %v729
      %781 = vmatpush1.bf16.msra.mxu0 %v728
      %782 = vmatprep.subr.bf16.mxu0 %v733
      %783 = vmatpush1.bf16.msra.mxu0 %v732
      %784 = vmatprep.subr.bf16.mxu0 0
      %785 = vmatpush1.bf16.msra.mxu0 0
      %786 = vmatprep.subr.bf16.mxu0 0
      %787 = vmatpush1.bf16.msra.mxu0 0
      %788 = vmatprep.subr.bf16.mxu0 0
      %789 = vmatpush1.bf16.msra.mxu0 0
      %790 = vmatprep.subr.bf16.mxu0 0
      %791 = vmatpush1.bf16.msra.mxu0 0
      %792 = vmatprep.subr.bf16.mxu0 0
      %793 = vmatpush1.bf16.msra.mxu0 0
      %794 = vmatprep.subr.bf16.mxu0 0
      %795 = vmatpush1.bf16.msra.mxu0 0
      %796 = vmatprep.subr.bf16.mxu0 0
      %797 = vmatpush1.bf16.msra.mxu0 0
      %798 = vmatprep.subr.bf16.mxu0 0
      %799 = vmatpush1.bf16.msra.mxu0 0
      %800 = vmatprep.mubr.bf16.mxu0 0
      %801 = vmatmul.mubr.bf16.gmra.mrb[0].mxu0 %v607
      %v802 = vpop.f32.mrb[0].mxu0
      %v803 = vadd.f32 0.0, %v802
      %v804 = vpop.f32.mrb[0].mxu0
      %v805 = vadd.f32 0.0, %v804
      %v806 = vpop.f32.mrb[0].mxu0
      %v807 = vpop.f32.mrb[0].mxu0
      %808 = vdwg.mxu0
      %809 = vmatprep.subr.bf16.mxu0 %v707
      %810 = vmatpush1.bf16.msra.mxu0 %v706
      %811 = vmatprep.subr.bf16.mxu0 %v711
      %812 = vmatpush1.bf16.msra.mxu0 %v710
      %813 = vmatprep.subr.bf16.mxu0 %v715
      %814 = vmatpush1.bf16.msra.mxu0 %v714
      %815 = vmatprep.subr.bf16.mxu0 %v719
      %816 = vmatpush1.bf16.msra.mxu0 %v718
      %817 = vmatprep.subr.bf16.mxu0 %v723
      %818 = vmatpush1.bf16.msra.mxu0 %v722
      %819 = vmatprep.subr.bf16.mxu0 %v727
      %820 = vmatpush1.bf16.msra.mxu0 %v726
      %821 = vmatprep.subr.bf16.mxu0 %v731
      %822 = vmatpush1.bf16.msra.mxu0 %v730
      %823 = vmatprep.subr.bf16.mxu0 %v735
      %824 = vmatpush1.bf16.msra.mxu0 %v734
      %825 = vmatprep.subr.bf16.mxu0 0
      %826 = vmatpush1.bf16.msra.mxu0 0
      %827 = vmatprep.subr.bf16.mxu0 0
      %828 = vmatpush1.bf16.msra.mxu0 0
      %829 = vmatprep.subr.bf16.mxu0 0
      %830 = vmatpush1.bf16.msra.mxu0 0
      %831 = vmatprep.subr.bf16.mxu0 0
      %832 = vmatpush1.bf16.msra.mxu0 0
      %833 = vmatprep.subr.bf16.mxu0 0
      %834 = vmatpush1.bf16.msra.mxu0 0
      %835 = vmatprep.subr.bf16.mxu0 0
      %836 = vmatpush1.bf16.msra.mxu0 0
      %837 = vmatprep.subr.bf16.mxu0 0
      %838 = vmatpush1.bf16.msra.mxu0 0
      %839 = vmatprep.subr.bf16.mxu0 0
      %840 = vmatpush1.bf16.msra.mxu0 0
      %841 = vmatprep.mubr.bf16.mxu0 0
      %842 = vmatmul.mubr.bf16.gmra.mrb[0].mxu0 %v607
      %v843 = vpop.f32.mrb[0].mxu0
      %v844 = vadd.f32 0.0, %v843
      %v845 = vpop.f32.mrb[0].mxu0
      %v846 = vadd.f32 0.0, %v845
      %v847 = vpop.f32.mrb[0].mxu0
      %v848 = vpop.f32.mrb[0].mxu0
      %849 = vdwg.mxu0
      %v850 = vadd.f32 %v602, %v803
      %v851 = vadd.f32 %v603, %v805
      %v852 = vadd.f32 %v604, %v844
      %v853 = vadd.f32 %v605, %v846
      %v854 = vxor.u32 %v850, 2147483648
      %v855 = vmul.f32 %v854, 1.442695
      %v856 = vpow.pop %v855
      %v857 = vadd.f32 %v856, 1.0
      %v858 = vrcp.pop %v857
      %v859 = vmul.f32 1.0, %v858
      %v860 = vxor.u32 %v851, 2147483648
      %v861 = vmul.f32 %v860, 1.442695
      %v862 = vpow.pop %v861
      %v863 = vadd.f32 %v862, 1.0
      %v864 = vrcp.pop %v863
      %v865 = vmul.f32 1.0, %v864
      %v866 = vtanh.pop %v852
      %v867 = vxor.u32 %v853, 2147483648
      %v868 = vmul.f32 %v867, 1.442695
      %v869 = vpow.pop %v868
      %v870 = vadd.f32 %v869, 1.0
      %v871 = vrcp.pop %v870
      %v872 = vmul.f32 1.0, %v871
      %v873 = vld [vmem:[#allocation4] sm:$0xff]
      %v874 = vmul.f32 %v865, %v873
      %v875 = vmul.f32 %v859, %v866
      %v876 = vadd.f32 %v874, %v875
      %v877 = vtanh.pop %v876
      %v878 = vmul.f32 %v872, %v877
      %v879 = vsel %vm598, 1, 0
      %880 = vset.pattern.permute.xlu0 0
      %881 = vperm.xlu0 %880, %v879
      %v882 = vpop.permute.xlu0 %881
      %vm883 = vcmp.eq.s32.totalorder %v882, 1
      %v884 = vsel %vm883, %v876, %v873
      %885 = vst [vmem:[#allocation4] sm:$0xff] %v884
      %v886 = vld [vmem:[#allocation3] sm:$0xff]
      %v887 = vsel %vm883, %v878, %v886
      %888 = vst [vmem:[#allocation3] sm:$0xff] %v887
      %v889 = vsel %vm883, %v878, 0.0
      %s890 = smul.u32 %s595, 8
      %s891 = scalar_lea.vmem %s360, %s890
      %892 = vst [vmem:[%s891] sm:$0xff] %v889
      %s893 = scalar_select %p594, 1, 2
      %s894 = sadd.s32 %s593, %s893
      %v895 = vstv %s894
      %vm896 = vcmp.gt.s32.totalorder %v555, %v895
      %s897 = smul.u32 %s893, 4
      %s898 = smul.addr %s897, 8
      %s899 = scalar_lea.vmem [#allocation2], %s898
      %v900 = vld [vmem:[%s899] sm:$0xff]
      %v901 = vld [vmem:[%s899 + $0x8] sm:$0xff]
      %v902 = vld [vmem:[%s899 + $0x10] sm:$0xff]
      %v903 = vld [vmem:[%s899 + $0x18] sm:$0xff]
      %v904 = vld [vmem:[#allocation3] sm:$0xff]
      %v905 = vpack.c.bf16 %v904, %v904
      %906 = vmatprep.subr.bf16.mxu0 %v705
      %907 = vmatpush1.bf16.msra.mxu0 %v704
      %908 = vmatprep.subr.bf16.mxu0 %v709
      %909 = vmatpush1.bf16.msra.mxu0 %v708
      %910 = vmatprep.subr.bf16.mxu0 %v713
      %911 = vmatpush1.bf16.msra.mxu0 %v712
      %912 = vmatprep.subr.bf16.mxu0 %v717
      %913 = vmatpush1.bf16.msra.mxu0 %v716
      %914 = vmatprep.subr.bf16.mxu0 %v721
      %915 = vmatpush1.bf16.msra.mxu0 %v720
      %916 = vmatprep.subr.bf16.mxu0 %v725
      %917 = vmatpush1.bf16.msra.mxu0 %v724
      %918 = vmatprep.subr.bf16.mxu0 %v729
      %919 = vmatpush1.bf16.msra.mxu0 %v728
      %920 = vmatprep.subr.bf16.mxu0 %v733
      %921 = vmatpush1.bf16.msra.mxu0 %v732
      %922 = vmatprep.subr.bf16.mxu0 0
      %923 = vmatpush1.bf16.msra.mxu0 0
      %924 = vmatprep.subr.bf16.mxu0 0
      %925 = vmatpush1.bf16.msra.mxu0 0
      %926 = vmatprep.subr.bf16.mxu0 0
      %927 = vmatpush1.bf16.msra.mxu0 0
      %928 = vmatprep.subr.bf16.mxu0 0
      %929 = vmatpush1.bf16.msra.mxu0 0
      %930 = vmatprep.subr.bf16.mxu0 0
      %931 = vmatpush1.bf16.msra.mxu0 0
      %932 = vmatprep.subr.bf16.mxu0 0
      %933 = vmatpush1.bf16.msra.mxu0 0
      %934 = vmatprep.subr.bf16.mxu0 0
      %935 = vmatpush1.bf16.msra.mxu0 0
      %936 = vmatprep.subr.bf16.mxu0 0
      %937 = vmatpush1.bf16.msra.mxu0 0
      %938 = vmatprep.mubr.bf16.mxu0 0
      %939 = vmatmul.mubr.bf16.gmra.mrb[0].mxu0 %v905
      %v940 = vpop.f32.mrb[0].mxu0
      %v941 = vadd.f32 0.0, %v940
      %v942 = vpop.f32.mrb[0].mxu0
      %v943 = vadd.f32 0.0, %v942
      %v944 = vpop.f32.mrb[0].mxu0
      %v945 = vpop.f32.mrb[0].mxu0
      %946 = vdwg.mxu0
      %947 = vmatprep.subr.bf16.mxu0 %v707
      %948 = vmatpush1.bf16.msra.mxu0 %v706
      %949 = vmatprep.subr.bf16.mxu0 %v711
      %950 = vmatpush1.bf16.msra.mxu0 %v710
      %951 = vmatprep.subr.bf16.mxu0 %v715
      %952 = vmatpush1.bf16.msra.mxu0 %v714
      %953 = vmatprep.subr.bf16.mxu0 %v719
      %954 = vmatpush1.bf16.msra.mxu0 %v718
      %955 = vmatprep.subr.bf16.mxu0 %v723
      %956 = vmatpush1.bf16.msra.mxu0 %v722
      %957 = vmatprep.subr.bf16.mxu0 %v727
      %958 = vmatpush1.bf16.msra.mxu0 %v726
      %959 = vmatprep.subr.bf16.mxu0 %v731
      %960 = vmatpush1.bf16.msra.mxu0 %v730
      %961 = vmatprep.subr.bf16.mxu0 %v735
      %962 = vmatpush1.bf16.msra.mxu0 %v734
      %963 = vmatprep.subr.bf16.mxu0 0
      %964 = vmatpush1.bf16.msra.mxu0 0
      %965 = vmatprep.subr.bf16.mxu0 0
      %966 = vmatpush1.bf16.msra.mxu0 0
      %967 = vmatprep.subr.bf16.mxu0 0
      %968 = vmatpush1.bf16.msra.mxu0 0
      %969 = vmatprep.subr.bf16.mxu0 0
      %970 = vmatpush1.bf16.msra.mxu0 0
      %971 = vmatprep.subr.bf16.mxu0 0
      %972 = vmatpush1.bf16.msra.mxu0 0
      %973 = vmatprep.subr.bf16.mxu0 0
      %974 = vmatpush1.bf16.msra.mxu0 0
      %975 = vmatprep.subr.bf16.mxu0 0
      %976 = vmatpush1.bf16.msra.mxu0 0
      %977 = vmatprep.subr.bf16.mxu0 0
      %978 = vmatpush1.bf16.msra.mxu0 0
      %979 = vmatprep.mubr.bf16.mxu0 0
      %980 = vmatmul.mubr.bf16.gmra.mrb[0].mxu0 %v905
      %v981 = vpop.f32.mrb[0].mxu0
      %v982 = vadd.f32 0.0, %v981
      %v983 = vpop.f32.mrb[0].mxu0
      %v984 = vadd.f32 0.0, %v983
      %v985 = vpop.f32.mrb[0].mxu0
      %v986 = vpop.f32.mrb[0].mxu0
      %987 = vdwg.mxu0
      %v988 = vadd.f32 %v900, %v941
      %v989 = vadd.f32 %v901, %v943
      %v990 = vadd.f32 %v902, %v982
      %v991 = vadd.f32 %v903, %v984
      %v992 = vxor.u32 %v988, 2147483648
      %v993 = vmul.f32 %v992, 1.442695
      %v994 = vpow.pop %v993
      %v995 = vadd.f32 %v994, 1.0
      %v996 = vrcp.pop %v995
      %v997 = vmul.f32 1.0, %v996
      %v998 = vxor.u32 %v989, 2147483648
      %v999 = vmul.f32 %v998, 1.442695
      %v1000 = vpow.pop %v999
      %v1001 = vadd.f32 %v1000, 1.0
      %v1002 = vrcp.pop %v1001
      %v1003 = vmul.f32 1.0, %v1002
      %v1004 = vtanh.pop %v990
      %v1005 = vxor.u32 %v991, 2147483648
      %v1006 = vmul.f32 %v1005, 1.442695
      %v1007 = vpow.pop %v1006
      %v1008 = vadd.f32 %v1007, 1.0
      %v1009 = vrcp.pop %v1008
      %v1010 = vmul.f32 1.0, %v1009
      %v1011 = vld [vmem:[#allocation4] sm:$0xff]
      %v1012 = vmul.f32 %v1003, %v1011
      %v1013 = vmul.f32 %v997, %v1004
      %v1014 = vadd.f32 %v1012, %v1013
      %v1015 = vtanh.pop %v1014
      %v1016 = vmul.f32 %v1010, %v1015
      %v1017 = vsel %vm896, 1, 0
      %1018 = vset.pattern.permute.xlu0 0
      %1019 = vperm.xlu0 %1018, %v1017
      %v1020 = vpop.permute.xlu0 %1019
      %vm1021 = vcmp.eq.s32.totalorder %v1020, 1
      %v1022 = vsel %vm1021, %v1014, %v1011
      %1023 = vst [vmem:[#allocation4] sm:$0xff] %v1022
      %v1024 = vld [vmem:[#allocation3] sm:$0xff]
      %v1025 = vsel %vm1021, %v1016, %v1024
      %1026 = vst [vmem:[#allocation3] sm:$0xff] %v1025
      %v1027 = vsel %vm1021, %v1016, 0.0
      %s1028 = smul.u32 %s893, 8
      %s1029 = scalar_lea.vmem %s360, %s1028
      %1030 = vst [vmem:[%s1029] sm:$0xff] %v1027
      %s1031 = scalar_select %p594, 2, 1
      %s1032 = sadd.s32 %s593, %s1031
      %v1033 = vstv %s1032
      %vm1034 = vcmp.gt.s32.totalorder %v555, %v1033
      %s1035 = smul.u32 %s1031, 4
      %s1036 = smul.addr %s1035, 8
      %s1037 = scalar_lea.vmem [#allocation2], %s1036
      %v1038 = vld [vmem:[%s1037] sm:$0xff]
      %v1039 = vld [vmem:[%s1037 + $0x8] sm:$0xff]
      %v1040 = vld [vmem:[%s1037 + $0x10] sm:$0xff]
      %v1041 = vld [vmem:[%s1037 + $0x18] sm:$0xff]
      %v1042 = vld [vmem:[#allocation3] sm:$0xff]
      %v1043 = vpack.c.bf16 %v1042, %v1042
      %1044 = vmatprep.subr.bf16.mxu0 %v705
      %1045 = vmatpush1.bf16.msra.mxu0 %v704
      %1046 = vmatprep.subr.bf16.mxu0 %v709
      %1047 = vmatpush1.bf16.msra.mxu0 %v708
      %1048 = vmatprep.subr.bf16.mxu0 %v713
      %1049 = vmatpush1.bf16.msra.mxu0 %v712
      %1050 = vmatprep.subr.bf16.mxu0 %v717
      %1051 = vmatpush1.bf16.msra.mxu0 %v716
      %1052 = vmatprep.subr.bf16.mxu0 %v721
      %1053 = vmatpush1.bf16.msra.mxu0 %v720
      %1054 = vmatprep.subr.bf16.mxu0 %v725
      %1055 = vmatpush1.bf16.msra.mxu0 %v724
      %1056 = vmatprep.subr.bf16.mxu0 %v729
      %1057 = vmatpush1.bf16.msra.mxu0 %v728
      %1058 = vmatprep.subr.bf16.mxu0 %v733
      %1059 = vmatpush1.bf16.msra.mxu0 %v732
      %1060 = vmatprep.subr.bf16.mxu0 0
      %1061 = vmatpush1.bf16.msra.mxu0 0
      %1062 = vmatprep.subr.bf16.mxu0 0
      %1063 = vmatpush1.bf16.msra.mxu0 0
      %1064 = vmatprep.subr.bf16.mxu0 0
      %1065 = vmatpush1.bf16.msra.mxu0 0
      %1066 = vmatprep.subr.bf16.mxu0 0
      %1067 = vmatpush1.bf16.msra.mxu0 0
      %1068 = vmatprep.subr.bf16.mxu0 0
      %1069 = vmatpush1.bf16.msra.mxu0 0
      %1070 = vmatprep.subr.bf16.mxu0 0
      %1071 = vmatpush1.bf16.msra.mxu0 0
      %1072 = vmatprep.subr.bf16.mxu0 0
      %1073 = vmatpush1.bf16.msra.mxu0 0
      %1074 = vmatprep.subr.bf16.mxu0 0
      %1075 = vmatpush1.bf16.msra.mxu0 0
      %1076 = vmatprep.mubr.bf16.mxu0 0
      %1077 = vmatmul.mubr.bf16.gmra.mrb[0].mxu0 %v1043
      %v1078 = vpop.f32.mrb[0].mxu0
      %v1079 = vadd.f32 0.0, %v1078
      %v1080 = vpop.f32.mrb[0].mxu0
      %v1081 = vadd.f32 0.0, %v1080
      %v1082 = vpop.f32.mrb[0].mxu0
      %v1083 = vpop.f32.mrb[0].mxu0
      %1084 = vdwg.mxu0
      %1085 = vmatprep.subr.bf16.mxu0 %v707
      %1086 = vmatpush1.bf16.msra.mxu0 %v706
      %1087 = vmatprep.subr.bf16.mxu0 %v711
      %1088 = vmatpush1.bf16.msra.mxu0 %v710
      %1089 = vmatprep.subr.bf16.mxu0 %v715
      %1090 = vmatpush1.bf16.msra.mxu0 %v714
      %1091 = vmatprep.subr.bf16.mxu0 %v719
      %1092 = vmatpush1.bf16.msra.mxu0 %v718
      %1093 = vmatprep.subr.bf16.mxu0 %v723
      %1094 = vmatpush1.bf16.msra.mxu0 %v722
      %1095 = vmatprep.subr.bf16.mxu0 %v727
      %1096 = vmatpush1.bf16.msra.mxu0 %v726
      %1097 = vmatprep.subr.bf16.mxu0 %v731
      %1098 = vmatpush1.bf16.msra.mxu0 %v730
      %1099 = vmatprep.subr.bf16.mxu0 %v735
      %1100 = vmatpush1.bf16.msra.mxu0 %v734
      %1101 = vmatprep.subr.bf16.mxu0 0
      %1102 = vmatpush1.bf16.msra.mxu0 0
      %1103 = vmatprep.subr.bf16.mxu0 0
      %1104 = vmatpush1.bf16.msra.mxu0 0
      %1105 = vmatprep.subr.bf16.mxu0 0
      %1106 = vmatpush1.bf16.msra.mxu0 0
      %1107 = vmatprep.subr.bf16.mxu0 0
      %1108 = vmatpush1.bf16.msra.mxu0 0
      %1109 = vmatprep.subr.bf16.mxu0 0
      %1110 = vmatpush1.bf16.msra.mxu0 0
      %1111 = vmatprep.subr.bf16.mxu0 0
      %1112 = vmatpush1.bf16.msra.mxu0 0
      %1113 = vmatprep.subr.bf16.mxu0 0
      %1114 = vmatpush1.bf16.msra.mxu0 0
      %1115 = vmatprep.subr.bf16.mxu0 0
      %1116 = vmatpush1.bf16.msra.mxu0 0
      %1117 = vmatprep.mubr.bf16.mxu0 0
      %1118 = vmatmul.mubr.bf16.gmra.mrb[0].mxu0 %v1043
      %v1119 = vpop.f32.mrb[0].mxu0
      %v1120 = vadd.f32 0.0, %v1119
      %v1121 = vpop.f32.mrb[0].mxu0
      %v1122 = vadd.f32 0.0, %v1121
      %v1123 = vpop.f32.mrb[0].mxu0
      %v1124 = vpop.f32.mrb[0].mxu0
      %1125 = vdwg.mxu0
      %v1126 = vadd.f32 %v1038, %v1079
      %v1127 = vadd.f32 %v1039, %v1081
      %v1128 = vadd.f32 %v1040, %v1120
      %v1129 = vadd.f32 %v1041, %v1122
      %v1130 = vxor.u32 %v1126, 2147483648
      %v1131 = vmul.f32 %v1130, 1.442695
      %v1132 = vpow.pop %v1131
      %v1133 = vadd.f32 %v1132, 1.0
      %v1134 = vrcp.pop %v1133
      %v1135 = vmul.f32 1.0, %v1134
      %v1136 = vxor.u32 %v1127, 2147483648
      %v1137 = vmul.f32 %v1136, 1.442695
      %v1138 = vpow.pop %v1137
      %v1139 = vadd.f32 %v1138, 1.0
      %v1140 = vrcp.pop %v1139
      %v1141 = vmul.f32 1.0, %v1140
      %v1142 = vtanh.pop %v1128
      %v1143 = vxor.u32 %v1129, 2147483648
      %v1144 = vmul.f32 %v1143, 1.442695
      %v1145 = vpow.pop %v1144
      %v1146 = vadd.f32 %v1145, 1.0
      %v1147 = vrcp.pop %v1146
      %v1148 = vmul.f32 1.0, %v1147
      %v1149 = vld [vmem:[#allocation4] sm:$0xff]
      %v1150 = vmul.f32 %v1141, %v1149
      %v1151 = vmul.f32 %v1135, %v1142
      %v1152 = vadd.f32 %v1150, %v1151
      %v1153 = vtanh.pop %v1152
      %v1154 = vmul.f32 %v1148, %v1153
      %v1155 = vsel %vm1034, 1, 0
      %1156 = vset.pattern.permute.xlu0 0
      %1157 = vperm.xlu0 %1156, %v1155
      %v1158 = vpop.permute.xlu0 %1157
      %vm1159 = vcmp.eq.s32.totalorder %v1158, 1
      %v1160 = vsel %vm1159, %v1152, %v1149
      %1161 = vst [vmem:[#allocation4] sm:$0xff] %v1160
      %v1162 = vld [vmem:[#allocation3] sm:$0xff]
      %v1163 = vsel %vm1159, %v1154, %v1162
      %1164 = vst [vmem:[#allocation3] sm:$0xff] %v1163
      %v1165 = vsel %vm1159, %v1154, 0.0
      %s1166 = smul.u32 %s1031, 8
      %s1167 = scalar_lea.vmem %s360, %s1166
      %1168 = vst [vmem:[%s1167] sm:$0xff] %v1165
      %s1169 = scalar_select %p594, 3, 0
      %s1170 = sadd.s32 %s593, %s1169
      %v1171 = vstv %s1170
      %vm1172 = vcmp.gt.s32.totalorder %v555, %v1171
      %s1173 = smul.u32 %s1169, 4
      %s1174 = smul.addr %s1173, 8
      %s1175 = scalar_lea.vmem [#allocation2], %s1174
      %v1176 = vld [vmem:[%s1175] sm:$0xff]
      %v1177 = vld [vmem:[%s1175 + $0x8] sm:$0xff]
      %v1178 = vld [vmem:[%s1175 + $0x10] sm:$0xff]
      %v1179 = vld [vmem:[%s1175 + $0x18] sm:$0xff]
      %v1180 = vld [vmem:[#allocation3] sm:$0xff]
      %v1181 = vpack.c.bf16 %v1180, %v1180
      %1182 = vmatprep.subr.bf16.mxu0 %v705
      %1183 = vmatpush1.bf16.msra.mxu0 %v704
      %1184 = vmatprep.subr.bf16.mxu0 %v709
      %1185 = vmatpush1.bf16.msra.mxu0 %v708
      %1186 = vmatprep.subr.bf16.mxu0 %v713
      %1187 = vmatpush1.bf16.msra.mxu0 %v712
      %1188 = vmatprep.subr.bf16.mxu0 %v717
      %1189 = vmatpush1.bf16.msra.mxu0 %v716
      %1190 = vmatprep.subr.bf16.mxu0 %v721
      %1191 = vmatpush1.bf16.msra.mxu0 %v720
      %1192 = vmatprep.subr.bf16.mxu0 %v725
      %1193 = vmatpush1.bf16.msra.mxu0 %v724
      %1194 = vmatprep.subr.bf16.mxu0 %v729
      %1195 = vmatpush1.bf16.msra.mxu0 %v728
      %1196 = vmatprep.subr.bf16.mxu0 %v733
      %1197 = vmatpush1.bf16.msra.mxu0 %v732
      %1198 = vmatprep.subr.bf16.mxu0 0
      %1199 = vmatpush1.bf16.msra.mxu0 0
      %1200 = vmatprep.subr.bf16.mxu0 0
      %1201 = vmatpush1.bf16.msra.mxu0 0
      %1202 = vmatprep.subr.bf16.mxu0 0
      %1203 = vmatpush1.bf16.msra.mxu0 0
      %1204 = vmatprep.subr.bf16.mxu0 0
      %1205 = vmatpush1.bf16.msra.mxu0 0
      %1206 = vmatprep.subr.bf16.mxu0 0
      %1207 = vmatpush1.bf16.msra.mxu0 0
      %1208 = vmatprep.subr.bf16.mxu0 0
      %1209 = vmatpush1.bf16.msra.mxu0 0
      %1210 = vmatprep.subr.bf16.mxu0 0
      %1211 = vmatpush1.bf16.msra.mxu0 0
      %1212 = vmatprep.subr.bf16.mxu0 0
      %1213 = vmatpush1.bf16.msra.mxu0 0
      %1214 = vmatprep.mubr.bf16.mxu0 0
      %1215 = vmatmul.mubr.bf16.gmra.mrb[0].mxu0 %v1181
      %v1216 = vpop.f32.mrb[0].mxu0
      %v1217 = vadd.f32 0.0, %v1216
      %v1218 = vpop.f32.mrb[0].mxu0
      %v1219 = vadd.f32 0.0, %v1218
      %v1220 = vpop.f32.mrb[0].mxu0
      %v1221 = vpop.f32.mrb[0].mxu0
      %1222 = vdwg.mxu0
      %1223 = vmatprep.subr.bf16.mxu0 %v707
      %1224 = vmatpush1.bf16.msra.mxu0 %v706
      %1225 = vmatprep.subr.bf16.mxu0 %v711
      %1226 = vmatpush1.bf16.msra.mxu0 %v710
      %1227 = vmatprep.subr.bf16.mxu0 %v715
      %1228 = vmatpush1.bf16.msra.mxu0 %v714
      %1229 = vmatprep.subr.bf16.mxu0 %v719
      %1230 = vmatpush1.bf16.msra.mxu0 %v718
      %1231 = vmatprep.subr.bf16.mxu0 %v723
      %1232 = vmatpush1.bf16.msra.mxu0 %v722
      %1233 = vmatprep.subr.bf16.mxu0 %v727
      %1234 = vmatpush1.bf16.msra.mxu0 %v726
      %1235 = vmatprep.subr.bf16.mxu0 %v731
      %1236 = vmatpush1.bf16.msra.mxu0 %v730
      %1237 = vmatprep.subr.bf16.mxu0 %v735
      %1238 = vmatpush1.bf16.msra.mxu0 %v734
      %1239 = vmatprep.subr.bf16.mxu0 0
      %1240 = vmatpush1.bf16.msra.mxu0 0
      %1241 = vmatprep.subr.bf16.mxu0 0
      %1242 = vmatpush1.bf16.msra.mxu0 0
      %1243 = vmatprep.subr.bf16.mxu0 0
      %1244 = vmatpush1.bf16.msra.mxu0 0
      %1245 = vmatprep.subr.bf16.mxu0 0
      %1246 = vmatpush1.bf16.msra.mxu0 0
      %1247 = vmatprep.subr.bf16.mxu0 0
      %1248 = vmatpush1.bf16.msra.mxu0 0
      %1249 = vmatprep.subr.bf16.mxu0 0
      %1250 = vmatpush1.bf16.msra.mxu0 0
      %1251 = vmatprep.subr.bf16.mxu0 0
      %1252 = vmatpush1.bf16.msra.mxu0 0
      %1253 = vmatprep.subr.bf16.mxu0 0
      %1254 = vmatpush1.bf16.msra.mxu0 0
      %1255 = vmatprep.mubr.bf16.mxu0 0
      %1256 = vmatmul.mubr.bf16.gmra.mrb[0].mxu0 %v1181
      %v1257 = vpop.f32.mrb[0].mxu0
      %v1258 = vadd.f32 0.0, %v1257
      %v1259 = vpop.f32.mrb[0].mxu0
      %v1260 = vadd.f32 0.0, %v1259
      %v1261 = vpop.f32.mrb[0].mxu0
      %v1262 = vpop.f32.mrb[0].mxu0
      %1263 = vdwg.mxu0
      %v1264 = vadd.f32 %v1176, %v1217
      %v1265 = vadd.f32 %v1177, %v1219
      %v1266 = vadd.f32 %v1178, %v1258
      %v1267 = vadd.f32 %v1179, %v1260
      %v1268 = vxor.u32 %v1264, 2147483648
      %v1269 = vmul.f32 %v1268, 1.442695
      %v1270 = vpow.pop %v1269
      %v1271 = vadd.f32 %v1270, 1.0
      %v1272 = vrcp.pop %v1271
      %v1273 = vmul.f32 1.0, %v1272
      %v1274 = vxor.u32 %v1265, 2147483648
      %v1275 = vmul.f32 %v1274, 1.442695
      %v1276 = vpow.pop %v1275
      %v1277 = vadd.f32 %v1276, 1.0
      %v1278 = vrcp.pop %v1277
      %v1279 = vmul.f32 1.0, %v1278
      %v1280 = vtanh.pop %v1266
      %v1281 = vxor.u32 %v1267, 2147483648
      %v1282 = vmul.f32 %v1281, 1.442695
      %v1283 = vpow.pop %v1282
      %v1284 = vadd.f32 %v1283, 1.0
      %v1285 = vrcp.pop %v1284
      %v1286 = vmul.f32 1.0, %v1285
      %v1287 = vld [vmem:[#allocation4] sm:$0xff]
      %v1288 = vmul.f32 %v1279, %v1287
      %v1289 = vmul.f32 %v1273, %v1280
      %v1290 = vadd.f32 %v1288, %v1289
      %v1291 = vtanh.pop %v1290
      %v1292 = vmul.f32 %v1286, %v1291
      %v1293 = vsel %vm1172, 1, 0
      %1294 = vset.pattern.permute.xlu0 0
      %1295 = vperm.xlu0 %1294, %v1293
      %v1296 = vpop.permute.xlu0 %1295
      %vm1297 = vcmp.eq.s32.totalorder %v1296, 1
      %v1298 = vsel %vm1297, %v1290, %v1287
      %1299 = vst [vmem:[#allocation4] sm:$0xff] %v1298
      %v1300 = vld [vmem:[#allocation3] sm:$0xff]
      %v1301 = vsel %vm1297, %v1292, %v1300
      %1302 = vst [vmem:[#allocation3] sm:$0xff] %v1301
      %v1303 = vsel %vm1297, %v1292, 0.0
      %s1304 = smul.u32 %s1169, 8
      %s1305 = scalar_lea.vmem %s360, %s1304
      %1306 = vst [vmem:[%s1305] sm:$0xff] %v1303
      %s1307 = ssub.s32 1, %s20
      %s1308 = smul.u32 %s1307, %s21
      %s1309 = ssub.s32 1, %s21
      %s1310 = smul.u32 %s20, %s1309
      %s1311 = sadd.s32 %s1308, %s1310
      %s1312 = smul.u32 4, %s1311
      %p1313 = scmp.lt.s32.totalorder %s20, 1
      %s1314 = scalar_select %p1313, %s20, 1
      %p1315 = scmp.lt.s32.totalorder %s1312, 7
      %s1316 = scalar_select %p1315, %s1312, 7
      %s1317 = smul.addr %s1314, 8
      %s1318 = sadd.s32 %s1316, %s1317
      %s1319 = smul.addr %s1318, 8
      %s1320 = scalar_lea.vmem %s5, %s1319
      // Predicated region
      $region45: #{rnn_encoder_forward.2} parent=39 // pred_check
        %p1321 = pneg %p193
      $region46: #{rnn_encoder_forward.2} parent=39 // pred_check_branch
        %1323 = sbr.rel (%p1321) target = $region48
      $region47: #{rnn_encoder_forward.2} parent=39 // pred_region
        %s1324 = ssub.s32 1, %s20
        %s1325 = smul.u32 %s1324, %s21
        %s1326 = ssub.s32 1, %s21
        %s1327 = smul.u32 %s20, %s1326
        %s1328 = sadd.s32 %s1325, %s1327
        %s1329 = smul.u32 4, %s1328
      $region48: #{rnn_encoder_forward.2} parent=39 // pred_fallthru
        _
    $region40: #{rnn_encoder_forward.2} parent=5 // pred_fallthru
      _
    %p1330 = scmp.le.s32.totalorder 2, %s11
    // Predicated region
    $region49: #{rnn_encoder_forward.2} parent=5 // pred_check
      %p1331 = pneg %p1330
    $region50: #{rnn_encoder_forward.2} parent=5 // pred_check_branch
      %1333 = sbr.rel (%p1331) target = $region52
    $region51: #{rnn_encoder_forward.2} parent=5 // pred_region
      %s1334 = ssub.s32 %s11, 2
      // Predicated region
      $region53: #{rnn_encoder_forward.2} parent=51 // pred_check
        %p1335 = pneg %p199
      $region54: #{rnn_encoder_forward.2} parent=51 // pred_check_branch
        %1337 = sbr.rel (%p1335) target = $region56
      $region55: #{rnn_encoder_forward.2} parent=51 // pred_region
        %s1338 = ssub.s32 1, %s22
        %s1339 = smul.u32 %s1338, %s23
        %s1340 = ssub.s32 1, %s23
        %s1341 = smul.u32 %s22, %s1340
        %s1342 = sadd.s32 %s1339, %s1341
        %s1343 = smul.u32 4, %s1342
        %p1344 = scmp.lt.s32.totalorder %s22, 1
        %s1345 = scalar_select %p1344, %s22, 1
        %p1346 = scmp.lt.s32.totalorder %s1343, 7
        %s1347 = scalar_select %p1346, %s1343, 7
        %s1348 = smul.addr %s1345, 8
        %s1349 = sadd.s32 %s1347, %s1348
        %s1350 = smul.addr %s1349, 8
        %s1351 = scalar_lea.vmem %s5, %s1350
      $region56: #{rnn_encoder_forward.2} parent=51 // pred_fallthru
        _
    $region52: #{rnn_encoder_forward.2} parent=5 // pred_fallthru
      _
  $region6: #{rnn_encoder_forward.2} parent=0 // loop_footer
    %s15 = sadd.s32 1, %s11
  $region7: #{rnn_encoder_forward.2} parent=0 // loop_footer_branch
    %10 = sbr.rel target = $region3
  $region8: #{rnn_encoder_forward.2} parent=0 // loop_exit
    _

// kernel: rnn_encoder_forward.3
$region0: #{rnn_encoder_forward.3}
  #allocation0 [shape = 'u32[]', space=smem, size = 0x4, offset = 0x4, fixed_abs, tag = 'smem constant byte address 0x4 - core index']
  #allocation1 [shape = 'u32[144,128]{1,0:T(1,128)}', space=vmem, size = 0x12000, scoped, tag = 'internal scratch']
  #allocation2 [shape = 'f32[4,8,512]{2,1,0:T(8,128)}', space=vmem, size = 0x10000, scoped, tag = 'scratch operand']
  #allocation3 [shape = 'f32[8,128]{1,0:T(8,128)}', space=vmem, size = 0x1000, scoped, tag = 'scratch operand']
  #allocation4 [shape = 'f32[8,128]{1,0:T(8,128)}', space=vmem, size = 0x1000, scoped, tag = 'scratch operand']
  %s0 = inlined_call_operand.vmem [shape: f32[2,8,8,128], index: 0, kind: input, shape index: {}, may-alias: {0,1}]
  %s1 = inlined_call_operand.vmem [shape: f32[2,8,8,128], index: 1, kind: input, shape index: {}, may-alias: {0,1}]
  %s2 = inlined_call_operand.vmem [shape: s32[8,1], index: 2, kind: input, shape index: {}]
  %s3 = inlined_call_operand.vmem [shape: bf16[2,128,512], index: 3, kind: input, shape index: {}]
  %s4 = inlined_call_operand.vmem [shape: bf16[2,128,512], index: 4, kind: input, shape index: {}]
  %s5 = inlined_call_operand.vmem [shape: bf16[2,128,512], index: 5, kind: input, shape index: {}]
  %s6 = inlined_call_operand.vmem [shape: f32[2,1,512], index: 6, kind: input, shape index: {}]
  %s7 = inlined_call_operand.vmem [shape: f32[2,8,8,128], index: 7, kind: output, shape index: {}]
  %s8 = sld [smem:[#allocation0]]
  $region65: #{rnn_encoder_forward.3} parent=0
    _
  %s10 = ssub.s32 1, %s8
  %s11 = scalar_select 0, %s10, %s8
  loop: start=0, step=1, limit=6
  $region2: #{rnn_encoder_forward.3} parent=0 // loop_pre_header
    _
  $region3: #{rnn_encoder_forward.3} parent=0 // loop_header
    %s13 = sphi 0, %s17
    %p14 = scmp.ge.s32.totalorder %s13, 6
    %s20 = sphi 0, %s32
    %s21 = sphi 0, %s28
    %s22 = sphi 0, %s20
    %s23 = sphi 0, %s21
    %s24 = sphi 0, %s22
    %s25 = sphi 0, %s23
    %s45 = sphi 0, %s47
    %s48 = sphi 0, %s45
    %s49 = sphi 0, %s48
    %s65 = sphi 0, %s49
    %s81 = sphi 0, %s83
    %s84 = sphi 0, %s81
    %s85 = sphi 0, %s84
    %s101 = sphi 0, %s85
    %s105 = sphi 0, %s105
    %s107 = sphi 0, %s105
    %s108 = sphi 0, %s107
    %s122 = sphi 0, %s108
    %s128 = sphi 0, %s130
    %s131 = sphi 0, %s128
    %s132 = sphi 0, %s131
    %s148 = sphi 0, %s132
    %s154 = sphi 0, %s156
    %s157 = sphi 0, %s154
    %s158 = sphi 0, %s157
    %s174 = sphi 0, %s158
    %s180 = sphi 0, %s182
    %s183 = sphi 0, %s180
    %s184 = sphi 0, %s183
    %s200 = sphi 0, %s184
    %s206 = sphi 0, %s208
    %s209 = sphi 0, %s206
    %s210 = sphi 0, %s209
    %s226 = sphi 0, %s210
    %s244 = sphi 0, %s246
    %s247 = sphi 0, %s244
    %s248 = sphi 0, %s247
    %s264 = sphi 0, %s248
  $region4: #{rnn_encoder_forward.3} parent=0 // loop_header_branch
    %16 = sbr.rel (%p14) target = $region8
  $region5: #{rnn_encoder_forward.3} parent=0 // loop_body
    %s18 = ssub.s32 %s13, 1
    %s19 = ssub.s32 %s13, 2
    %s26 = sadd.s32 1, %s21
    %p27 = scmp.ge.s32.totalorder %s26, 2
    %s28 = scalar_select %p27, 0, %s26
    %s29 = sadd.s32 1, %s20
    %s30 = scalar_select %p27, %s29, %s20
    %p31 = scmp.ge.s32.totalorder %s30, 2
    %s32 = scalar_select %p31, 0, %s30
    %s33 = ssub.s32 1, %s20
    %s34 = smul.u32 %s33, %s21
    %s35 = ssub.s32 1, %s21
    %s36 = smul.u32 %s20, %s35
    %s37 = sadd.s32 %s34, %s36
    %s38 = ssub.s32 1, %s32
    %s39 = smul.u32 %s38, %s28
    %s40 = ssub.s32 1, %s28
    %s41 = smul.u32 %s32, %s40
    %s42 = sadd.s32 %s39, %s41
    %s43 = ssub.s32 %s37, %s42
    %p44 = scmp.eq.s32.totalorder %s43, 0
    %s46 = sadd.s32 %s45, 1
    %s47 = scalar_select %p44, %s45, %s46
    %p50 = pneg %p44
    %p51 = scmp.eq.s32.totalorder %s13, 3
    %p52 = por %p50, %p51
    %p53 = scmp.ne.s32.totalorder %s45, %s48
    %p54 = scmp.eq.s32.totalorder %s13, 0
    %p55 = por %p53, %p54
    %p56 = scmp.ne.s32.totalorder %s45, %s48
    %p57 = scmp.eq.s32.totalorder %s18, 3
    %p58 = por %p56, %p57
    %p59 = scmp.ne.s32.totalorder %s48, %s49
    %p60 = scmp.eq.s32.totalorder %s18, 0
    %p61 = por %p59, %p60
    %p62 = scmp.ne.s32.totalorder %s48, %s49
    %p63 = scmp.eq.s32.totalorder %s19, 3
    %p64 = por %p62, %p63
    %p66 = scmp.ne.s32.totalorder %s49, %s65
    %p67 = scmp.eq.s32.totalorder %s19, 0
    %p68 = por %p66, %p67
    %s69 = ssub.s32 1, %s20
    %s70 = smul.u32 %s69, %s21
    %s71 = ssub.s32 1, %s21
    %s72 = smul.u32 %s20, %s71
    %s73 = sadd.s32 %s70, %s72
    %s74 = ssub.s32 1, %s32
    %s75 = smul.u32 %s74, %s28
    %s76 = ssub.s32 1, %s28
    %s77 = smul.u32 %s32, %s76
    %s78 = sadd.s32 %s75, %s77
    %s79 = ssub.s32 %s73, %s78
    %p80 = scmp.eq.s32.totalorder %s79, 0
    %s82 = sadd.s32 %s81, 1
    %s83 = scalar_select %p80, %s81, %s82
    %p86 = pneg %p80
    %p87 = scmp.eq.s32.totalorder %s13, 3
    %p88 = por %p86, %p87
    %p89 = scmp.ne.s32.totalorder %s81, %s84
    %p90 = scmp.eq.s32.totalorder %s13, 0
    %p91 = por %p89, %p90
    %p92 = scmp.ne.s32.totalorder %s81, %s84
    %p93 = scmp.eq.s32.totalorder %s18, 3
    %p94 = por %p92, %p93
    %p95 = scmp.ne.s32.totalorder %s84, %s85
    %p96 = scmp.eq.s32.totalorder %s18, 0
    %p97 = por %p95, %p96
    %p98 = scmp.ne.s32.totalorder %s84, %s85
    %p99 = scmp.eq.s32.totalorder %s19, 3
    %p100 = por %p98, %p99
    %p102 = scmp.ne.s32.totalorder %s85, %s101
    %p103 = scmp.eq.s32.totalorder %s19, 0
    %p104 = por %p102, %p103
    %s106 = sadd.s32 %s105, 1
    %p109 = scmp.eq.s32.totalorder %s13, 3
    %p110 = scmp.ne.s32.totalorder %s105, %s107
    %p111 = scmp.eq.s32.totalorder %s13, 0
    %p112 = por %p110, %p111
    %p113 = scmp.ne.s32.totalorder %s105, %s107
    %p114 = scmp.eq.s32.totalorder %s18, 3
    %p115 = por %p113, %p114
    %p116 = scmp.ne.s32.totalorder %s107, %s108
    %p117 = scmp.eq.s32.totalorder %s18, 0
    %p118 = por %p116, %p117
    %p119 = scmp.ne.s32.totalorder %s107, %s108
    %p120 = scmp.eq.s32.totalorder %s19, 3
    %p121 = por %p119, %p120
    %p123 = scmp.ne.s32.totalorder %s108, %s122
    %p124 = scmp.eq.s32.totalorder %s19, 0
    %p125 = por %p123, %p124
    %s126 = ssub.s32 %s20, %s32
    %p127 = scmp.eq.s32.totalorder %s126, 0
    %s129 = sadd.s32 %s128, 1
    %s130 = scalar_select %p127, %s128, %s129
    %p133 = pneg %p127
    %p134 = scmp.eq.s32.totalorder %s13, 3
    %p135 = por %p133, %p134
    %p136 = scmp.ne.s32.totalorder %s128, %s131
    %p137 = scmp.eq.s32.totalorder %s13, 0
    %p138 = por %p136, %p137
    %p139 = scmp.ne.s32.totalorder %s128, %s131
    %p140 = scmp.eq.s32.totalorder %s18, 3
    %p141 = por %p139, %p140
    %p142 = scmp.ne.s32.totalorder %s131, %s132
    %p143 = scmp.eq.s32.totalorder %s18, 0
    %p144 = por %p142, %p143
    %p145 = scmp.ne.s32.totalorder %s131, %s132
    %p146 = scmp.eq.s32.totalorder %s19, 3
    %p147 = por %p145, %p146
    %p149 = scmp.ne.s32.totalorder %s132, %s148
    %p150 = scmp.eq.s32.totalorder %s19, 0
    %p151 = por %p149, %p150
    %s152 = ssub.s32 %s20, %s32
    %p153 = scmp.eq.s32.totalorder %s152, 0
    %s155 = sadd.s32 %s154, 1
    %s156 = scalar_select %p153, %s154, %s155
    %p159 = pneg %p153
    %p160 = scmp.eq.s32.totalorder %s13, 3
    %p161 = por %p159, %p160
    %p162 = scmp.ne.s32.totalorder %s154, %s157
    %p163 = scmp.eq.s32.totalorder %s13, 0
    %p164 = por %p162, %p163
    %p165 = scmp.ne.s32.totalorder %s154, %s157
    %p166 = scmp.eq.s32.totalorder %s18, 3
    %p167 = por %p165, %p166
    %p168 = scmp.ne.s32.totalorder %s157, %s158
    %p169 = scmp.eq.s32.totalorder %s18, 0
    %p170 = por %p168, %p169
    %p171 = scmp.ne.s32.totalorder %s157, %s158
    %p172 = scmp.eq.s32.totalorder %s19, 3
    %p173 = por %p171, %p172
    %p175 = scmp.ne.s32.totalorder %s158, %s174
    %p176 = scmp.eq.s32.totalorder %s19, 0
    %p177 = por %p175, %p176
    %s178 = ssub.s32 %s20, %s32
    %p179 = scmp.eq.s32.totalorder %s178, 0
    %s181 = sadd.s32 %s180, 1
    %s182 = scalar_select %p179, %s180, %s181
    %p185 = pneg %p179
    %p186 = scmp.eq.s32.totalorder %s13, 3
    %p187 = por %p185, %p186
    %p188 = scmp.ne.s32.totalorder %s180, %s183
    %p189 = scmp.eq.s32.totalorder %s13, 0
    %p190 = por %p188, %p189
    %p191 = scmp.ne.s32.totalorder %s180, %s183
    %p192 = scmp.eq.s32.totalorder %s18, 3
    %p193 = por %p191, %p192
    %p194 = scmp.ne.s32.totalorder %s183, %s184
    %p195 = scmp.eq.s32.totalorder %s18, 0
    %p196 = por %p194, %p195
    %p197 = scmp.ne.s32.totalorder %s183, %s184
    %p198 = scmp.eq.s32.totalorder %s19, 3
    %p199 = por %p197, %p198
    %p201 = scmp.ne.s32.totalorder %s184, %s200
    %p202 = scmp.eq.s32.totalorder %s19, 0
    %p203 = por %p201, %p202
    %s204 = ssub.s32 %s20, %s32
    %p205 = scmp.eq.s32.totalorder %s204, 0
    %s207 = sadd.s32 %s206, 1
    %s208 = scalar_select %p205, %s206, %s207
    %p211 = pneg %p205
    %p212 = scmp.eq.s32.totalorder %s13, 3
    %p213 = por %p211, %p212
    %p214 = scmp.ne.s32.totalorder %s206, %s209
    %p215 = scmp.eq.s32.totalorder %s13, 0
    %p216 = por %p214, %p215
    %p217 = scmp.ne.s32.totalorder %s206, %s209
    %p218 = scmp.eq.s32.totalorder %s18, 3
    %p219 = por %p217, %p218
    %p220 = scmp.ne.s32.totalorder %s209, %s210
    %p221 = scmp.eq.s32.totalorder %s18, 0
    %p222 = por %p220, %p221
    %p223 = scmp.ne.s32.totalorder %s209, %s210
    %p224 = scmp.eq.s32.totalorder %s19, 3
    %p225 = por %p223, %p224
    %p227 = scmp.ne.s32.totalorder %s210, %s226
    %p228 = scmp.eq.s32.totalorder %s19, 0
    %p229 = por %p227, %p228
    %s230 = ssub.s32 1, %s20
    %s231 = smul.u32 %s230, %s21
    %s232 = ssub.s32 1, %s21
    %s233 = smul.u32 %s20, %s232
    %s234 = sadd.s32 %s231, %s233
    %s235 = ssub.s32 1, %s32
    %s236 = smul.u32 %s235, %s28
    %s237 = ssub.s32 1, %s28
    %s238 = smul.u32 %s32, %s237
    %s239 = sadd.s32 %s236, %s238
    %s240 = ssub.s32 %s20, %s32
    %s241 = ssub.s32 %s234, %s239
    %s242 = sor.u32 %s240, %s241
    %p243 = scmp.eq.s32.totalorder %s242, 0
    %s245 = sadd.s32 %s244, 1
    %s246 = scalar_select %p243, %s244, %s245
    %p249 = pneg %p243
    %p250 = scmp.eq.s32.totalorder %s13, 3
    %p251 = por %p249, %p250
    %p252 = scmp.ne.s32.totalorder %s244, %s247
    %p253 = scmp.eq.s32.totalorder %s13, 0
    %p254 = por %p252, %p253
    %p255 = scmp.ne.s32.totalorder %s244, %s247
    %p256 = scmp.eq.s32.totalorder %s18, 3
    %p257 = por %p255, %p256
    %p258 = scmp.ne.s32.totalorder %s247, %s248
    %p259 = scmp.eq.s32.totalorder %s18, 0
    %p260 = por %p258, %p259
    %p261 = scmp.ne.s32.totalorder %s247, %s248
    %p262 = scmp.eq.s32.totalorder %s19, 3
    %p263 = por %p261, %p262
    %p265 = scmp.ne.s32.totalorder %s248, %s264
    %p266 = scmp.eq.s32.totalorder %s19, 0
    %p267 = por %p265, %p266
    %p268 = scmp.le.s32.totalorder 1, %s13
    %p269 = scmp.lt.s32.totalorder %s13, 5
    %p270 = pnand %p268, %p269
    %p271 = pneg %p270
    // Predicated region
    $region9: #{rnn_encoder_forward.3} parent=5 // pred_check
      _
    $region10: #{rnn_encoder_forward.3} parent=5 // pred_check_branch
      %273 = sbr.rel (%p270) target = $region12
    $region11: #{rnn_encoder_forward.3} parent=5 // pred_region
      %s274 = ssub.s32 %s13, 1
      // Predicated region
      $region13: #{rnn_encoder_forward.3} parent=11 // pred_check
        %p275 = pneg %p118
      $region14: #{rnn_encoder_forward.3} parent=11 // pred_check_branch
        %277 = sbr.rel (%p275) target = $region16
      $region15: #{rnn_encoder_forward.3} parent=11 // pred_region
        _
      $region16: #{rnn_encoder_forward.3} parent=11 // pred_fallthru
        _
    $region12: #{rnn_encoder_forward.3} parent=5 // pred_fallthru
      _
    %p278 = scmp.lt.s32.totalorder %s13, 4
    // Predicated region
    $region17: #{rnn_encoder_forward.3} parent=5 // pred_check
      %p279 = pneg %p278
    $region18: #{rnn_encoder_forward.3} parent=5 // pred_check_branch
      %281 = sbr.rel (%p279) target = $region20
    $region19: #{rnn_encoder_forward.3} parent=5 // pred_region
      // Predicated region
      $region21: #{rnn_encoder_forward.3} parent=19 // pred_check
        %p282 = pneg %p55
      $region22: #{rnn_encoder_forward.3} parent=19 // pred_check_branch
        %284 = sbr.rel (%p282) target = $region24
      $region23: #{rnn_encoder_forward.3} parent=19 // pred_region
        %s285 = ssub.s32 1, %s20
        %s286 = smul.u32 %s285, %s21
        %s287 = ssub.s32 1, %s21
        %s288 = smul.u32 %s20, %s287
        %s289 = sadd.s32 %s286, %s288
        %s290 = smul.u32 4, %s289
        %p291 = scmp.lt.s32.totalorder %s290, 7
        %s292 = scalar_select %p291, %s290, 7
        %s293 = smul.addr %s292, 8
        %s294 = scalar_lea.vmem %s0, %s293
        %s295 = ssub.s32 1, %s20
        %s296 = smul.u32 %s295, %s21
        %s297 = ssub.s32 1, %s21
        %s298 = smul.u32 %s20, %s297
        %s299 = sadd.s32 %s296, %s298
        %s300 = smul.u32 4, %s299
      $region24: #{rnn_encoder_forward.3} parent=19 // pred_fallthru
        _
      // Predicated region
      $region25: #{rnn_encoder_forward.3} parent=19 // pred_check
        %p301 = pneg %p91
      $region26: #{rnn_encoder_forward.3} parent=19 // pred_check_branch
        %303 = sbr.rel (%p301) target = $region28
      $region27: #{rnn_encoder_forward.3} parent=19 // pred_region
        %s304 = ssub.s32 1, %s20
        %s305 = smul.u32 %s304, %s21
        %s306 = ssub.s32 1, %s21
        %s307 = smul.u32 %s20, %s306
        %s308 = sadd.s32 %s305, %s307
        %s309 = smul.u32 4, %s308
        %p310 = scmp.lt.s32.totalorder %s309, 7
        %s311 = scalar_select %p310, %s309, 7
        %s312 = sadd.s32 %s311, 8
        %s313 = smul.addr %s312, 8
        %s314 = scalar_lea.vmem %s1, %s313
        %s315 = ssub.s32 1, %s20
        %s316 = smul.u32 %s315, %s21
        %s317 = ssub.s32 1, %s21
        %s318 = smul.u32 %s20, %s317
        %s319 = sadd.s32 %s316, %s318
        %s320 = smul.u32 4, %s319
      $region28: #{rnn_encoder_forward.3} parent=19 // pred_fallthru
        _
      // Predicated region
      $region29: #{rnn_encoder_forward.3} parent=19 // pred_check
        %p321 = pneg %p138
      $region30: #{rnn_encoder_forward.3} parent=19 // pred_check_branch
        %323 = sbr.rel (%p321) target = $region32
      $region31: #{rnn_encoder_forward.3} parent=19 // pred_region
        %p324 = scmp.lt.s32.totalorder %s20, 1
        %s325 = scalar_select %p324, %s20, 1
        %s326 = smul.addr %s325, 64
        %s327 = smul.addr %s326, 4
        %s328 = scalar_lea.vmem %s3, %s327
      $region32: #{rnn_encoder_forward.3} parent=19 // pred_fallthru
        _
      // Predicated region
      $region33: #{rnn_encoder_forward.3} parent=19 // pred_check
        %p329 = pneg %p164
      $region34: #{rnn_encoder_forward.3} parent=19 // pred_check_branch
        %331 = sbr.rel (%p329) target = $region36
      $region35: #{rnn_encoder_forward.3} parent=19 // pred_region
        %p332 = scmp.lt.s32.totalorder %s20, 1
        %s333 = scalar_select %p332, %s20, 1
        %s334 = smul.addr %s333, 64
        %s335 = smul.addr %s334, 4
        %s336 = scalar_lea.vmem %s4, %s335
      $region36: #{rnn_encoder_forward.3} parent=19 // pred_fallthru
        _
      // Predicated region
      $region37: #{rnn_encoder_forward.3} parent=19 // pred_check
        %p337 = pneg %p190
      $region38: #{rnn_encoder_forward.3} parent=19 // pred_check_branch
        %339 = sbr.rel (%p337) target = $region40
      $region39: #{rnn_encoder_forward.3} parent=19 // pred_region
        %p340 = scmp.lt.s32.totalorder %s20, 1
        %s341 = scalar_select %p340, %s20, 1
        %s342 = smul.addr %s341, 64
        %s343 = smul.addr %s342, 4
        %s344 = scalar_lea.vmem %s5, %s343
      $region40: #{rnn_encoder_forward.3} parent=19 // pred_fallthru
        _
      // Predicated region
      $region41: #{rnn_encoder_forward.3} parent=19 // pred_check
        %p345 = pneg %p216
      $region42: #{rnn_encoder_forward.3} parent=19 // pred_check_branch
        %347 = sbr.rel (%p345) target = $region44
      $region43: #{rnn_encoder_forward.3} parent=19 // pred_region
        %p348 = scmp.lt.s32.totalorder %s20, 1
        %s349 = scalar_select %p348, %s20, 1
        %s350 = smul.addr %s349, 4
        %s351 = scalar_lea.vmem %s6, %s350
      $region44: #{rnn_encoder_forward.3} parent=19 // pred_fallthru
        _
    $region20: #{rnn_encoder_forward.3} parent=5 // pred_fallthru
      _
    %p352 = scmp.le.s32.totalorder 1, %s13
    %p353 = scmp.lt.s32.totalorder %s13, 5
    %p354 = pnand %p352, %p353
    %p355 = pneg %p354
    // Predicated region
    $region45: #{rnn_encoder_forward.3} parent=5 // pred_check
      _
    $region46: #{rnn_encoder_forward.3} parent=5 // pred_check_branch
      %357 = sbr.rel (%p354) target = $region48
    $region47: #{rnn_encoder_forward.3} parent=5 // pred_region
      %s358 = ssub.s32 %s13, 1
      %s359 = ssub.s32 1, %s22
      %s360 = smul.u32 %s359, %s23
      %s361 = ssub.s32 1, %s23
      %s362 = smul.u32 %s22, %s361
      %s363 = sadd.s32 %s360, %s362
      %s364 = smul.u32 4, %s363
      %p365 = scmp.lt.s32.totalorder %s364, 7
      %s366 = scalar_select %p365, %s364, 7
      %s367 = smul.addr %s366, 8
      %s368 = scalar_lea.vmem %s0, %s367
      %p369 = pneg %p61
      %p370 = pneg %p58
      %s371 = ssub.s32 1, %s22
      %s372 = smul.u32 %s371, %s23
      %s373 = ssub.s32 1, %s23
      %s374 = smul.u32 %s22, %s373
      %s375 = sadd.s32 %s372, %s374
      %s376 = smul.u32 4, %s375
      %p377 = scmp.lt.s32.totalorder %s376, 7
      %s378 = scalar_select %p377, %s376, 7
      %s379 = sadd.s32 %s378, 8
      %s380 = smul.addr %s379, 8
      %s381 = scalar_lea.vmem %s1, %s380
      %p382 = pneg %p97
      %p383 = pneg %p94
      %p384 = pneg %p118
      %p385 = pneg %p115
      %p386 = scmp.lt.s32.totalorder %s22, 1
      %s387 = scalar_select %p386, %s22, 1
      %s388 = smul.addr %s387, 64
      %s389 = smul.addr %s388, 4
      %s390 = scalar_lea.vmem %s3, %s389
      %p391 = pneg %p144
      %p392 = pneg %p141
      %p393 = scmp.lt.s32.totalorder %s22, 1
      %s394 = scalar_select %p393, %s22, 1
      %s395 = smul.addr %s394, 64
      %s396 = smul.addr %s395, 4
      %s397 = scalar_lea.vmem %s4, %s396
      %p398 = pneg %p170
      %p399 = pneg %p167
      %p400 = scmp.lt.s32.totalorder %s22, 1
      %s401 = scalar_select %p400, %s22, 1
      %s402 = smul.addr %s401, 64
      %s403 = smul.addr %s402, 4
      %s404 = scalar_lea.vmem %s5, %s403
      %p405 = pneg %p196
      %p406 = pneg %p193
      %p407 = scmp.lt.s32.totalorder %s22, 1
      %s408 = scalar_select %p407, %s22, 1
      %s409 = smul.addr %s408, 4
      %s410 = scalar_lea.vmem %s6, %s409
      %p411 = pneg %p222
      %p412 = pneg %p219
      %p413 = pneg %p260
      %p414 = pneg %p257
      %s415 = ssub.s32 1, %s22
      %s416 = smul.u32 %s415, %s23
      %s417 = ssub.s32 1, %s23
      %s418 = smul.u32 %s22, %s417
      %s419 = sadd.s32 %s416, %s418
      %s420 = smul.u32 4, %s419
      %p421 = scmp.lt.s32.totalorder %s22, 1
      %s422 = scalar_select %p421, %s22, 1
      %p423 = scmp.lt.s32.totalorder %s420, 7
      %s424 = scalar_select %p423, %s420, 7
      %s425 = smul.addr %s422, 8
      %s426 = sadd.s32 %s424, %s425
      %s427 = smul.addr %s426, 8
      %s428 = scalar_lea.vmem %s7, %s427
      %s429 = ssub.s32 1, %s22
      %s430 = smul.u32 %s429, %s23
      %s431 = ssub.s32 1, %s23
      %s432 = smul.u32 %s22, %s431
      %s433 = sadd.s32 %s430, %s432
      %s434 = smul.u32 4, %s433
      %p435 = scmp.lt.s32.totalorder %s434, 7
      %s436 = scalar_select %p435, %s434, 7
      %s437 = smul.addr %s436, 8
      %s438 = scalar_lea.vmem %s0, %s437
      %s439 = ssub.s32 1, %s22
      %s440 = smul.u32 %s439, %s23
      %s441 = ssub.s32 1, %s23
      %s442 = smul.u32 %s22, %s441
      %s443 = sadd.s32 %s440, %s442
      %s444 = smul.u32 4, %s443
      %s445 = ssub.s32 1, %s22
      %s446 = smul.u32 %s445, %s23
      %s447 = ssub.s32 1, %s23
      %s448 = smul.u32 %s22, %s447
      %s449 = sadd.s32 %s446, %s448
      %s450 = smul.u32 4, %s449
      %p451 = scmp.lt.s32.totalorder %s450, 7
      %s452 = scalar_select %p451, %s450, 7
      %s453 = sadd.s32 %s452, 8
      %s454 = smul.addr %s453, 8
      %s455 = scalar_lea.vmem %s1, %s454
      %s456 = ssub.s32 1, %s22
      %s457 = smul.u32 %s456, %s23
      %s458 = ssub.s32 1, %s23
      %s459 = smul.u32 %s22, %s458
      %s460 = sadd.s32 %s457, %s459
      %s461 = smul.u32 4, %s460
      %p462 = scmp.lt.s32.totalorder %s22, 1
      %s463 = scalar_select %p462, %s22, 1
      %s464 = smul.addr %s463, 64
      %s465 = smul.addr %s464, 4
      %s466 = scalar_lea.vmem %s3, %s465
      %p467 = scmp.lt.s32.totalorder %s22, 1
      %s468 = scalar_select %p467, %s22, 1
      %s469 = smul.addr %s468, 64
      %s470 = smul.addr %s469, 4
      %s471 = scalar_lea.vmem %s4, %s470
      %p472 = scmp.lt.s32.totalorder %s22, 1
      %s473 = scalar_select %p472, %s22, 1
      %s474 = smul.addr %s473, 64
      %s475 = smul.addr %s474, 4
      %s476 = scalar_lea.vmem %s5, %s475
      %p477 = scmp.lt.s32.totalorder %s22, 1
      %s478 = scalar_select %p477, %s22, 1
      %s479 = smul.addr %s478, 4
      %s480 = scalar_lea.vmem %s6, %s479
      %s481 = ssub.s32 1, %s22
      %s482 = smul.u32 %s481, %s23
      %s483 = ssub.s32 1, %s23
      %s484 = smul.u32 %s22, %s483
      %s485 = sadd.s32 %s482, %s484
      %s486 = smul.u32 4, %s485
      %p487 = scmp.lt.s32.totalorder %s22, 1
      %s488 = scalar_select %p487, %s22, 1
      %p489 = scmp.lt.s32.totalorder %s486, 7
      %s490 = scalar_select %p489, %s486, 7
      %s491 = smul.addr %s488, 8
      %s492 = sadd.s32 %s490, %s491
      %s493 = smul.addr %s492, 8
      %s494 = scalar_lea.vmem %s7, %s493
      %s495 = ssub.s32 1, %s22
      %s496 = smul.u32 %s495, %s23
      %s497 = ssub.s32 1, %s23
      %s498 = smul.u32 %s22, %s497
      %s499 = sadd.s32 %s496, %s498
      %s500 = smul.u32 4, %s499
      %p502 = scmp.eq.s32.totalorder %s23, 0
      // Predicated region
      $region49: #{rnn_encoder_forward.3} parent=47 // pred_check
        %p503 = pneg %p502
      $region50: #{rnn_encoder_forward.3} parent=47 // pred_check_branch
        %505 = sbr.rel (%p503) target = $region52
      $region51: #{rnn_encoder_forward.3} parent=47 // pred_region
        %506 = vst [vmem:[#allocation3] sm:$0xff] 0.0
        %507 = vst [vmem:[#allocation4] sm:$0xff] 0.0
      $region52: #{rnn_encoder_forward.3} parent=47 // pred_fallthru
        _
      %v508 = vld [vmem:[%s438] sm:$0xff]
      %v509 = vld [vmem:[%s438 + $0x8] sm:$0xff]
      %v510 = vld [vmem:[%s438 + $0x10] sm:$0xff]
      %v511 = vld [vmem:[%s438 + $0x18] sm:$0xff]
      %v512 = vpack.c.bf16 %v509, %v508
      %v513 = vpack.c.bf16 %v511, %v510
      %v514 = vld [vmem:[%s466] sm:$0xff]
      %v515 = vld [vmem:[%s466 + $0x8] sm:$0xff]
      %v516 = vld [vmem:[%s466 + $0x10] sm:$0xff]
      %v517 = vld [vmem:[%s466 + $0x18] sm:$0xff]
      %v518 = vld [vmem:[%s466 + $0x20] sm:$0xff]
      %v519 = vld [vmem:[%s466 + $0x28] sm:$0xff]
      %v520 = vld [vmem:[%s466 + $0x30] sm:$0xff]
      %v521 = vld [vmem:[%s466 + $0x38] sm:$0xff]
      %v522 = vld [vmem:[%s466 + $0x40] sm:$0xff]
      %v523 = vld [vmem:[%s466 + $0x48] sm:$0xff]
      %v524 = vld [vmem:[%s466 + $0x50] sm:$0xff]
      %v525 = vld [vmem:[%s466 + $0x58] sm:$0xff]
      %v526 = vld [vmem:[%s466 + $0x60] sm:$0xff]
      %v527 = vld [vmem:[%s466 + $0x68] sm:$0xff]
      %v528 = vld [vmem:[%s466 + $0x70] sm:$0xff]
      %v529 = vld [vmem:[%s466 + $0x78] sm:$0xff]
      %v530 = vld [vmem:[%s466 + $0x80] sm:$0xff]
      %v531 = vld [vmem:[%s466 + $0x88] sm:$0xff]
      %v532 = vld [vmem:[%s466 + $0x90] sm:$0xff]
      %v533 = vld [vmem:[%s466 + $0x98] sm:$0xff]
      %v534 = vld [vmem:[%s466 + $0xa0] sm:$0xff]
      %v535 = vld [vmem:[%s466 + $0xa8] sm:$0xff]
      %v536 = vld [vmem:[%s466 + $0xb0] sm:$0xff]
      %v537 = vld [vmem:[%s466 + $0xb8] sm:$0xff]
      %v538 = vld [vmem:[%s466 + $0xc0] sm:$0xff]
      %v539 = vld [vmem:[%s466 + $0xc8] sm:$0xff]
      %v540 = vld [vmem:[%s466 + $0xd0] sm:$0xff]
      %v541 = vld [vmem:[%s466 + $0xd8] sm:$0xff]
      %v542 = vld [vmem:[%s466 + $0xe0] sm:$0xff]
      %v543 = vld [vmem:[%s466 + $0xe8] sm:$0xff]
      %v544 = vld [vmem:[%s466 + $0xf0] sm:$0xff]
      %v545 = vld [vmem:[%s466 + $0xf8] sm:$0xff]
      %v546 = vld [vmem:[%s455] sm:$0xff]
      %v547 = vld [vmem:[%s455 + $0x8] sm:$0xff]
      %v548 = vld [vmem:[%s455 + $0x10] sm:$0xff]
      %v549 = vld [vmem:[%s455 + $0x18] sm:$0xff]
      %v550 = vpack.c.bf16 %v547, %v546
      %v551 = vpack.c.bf16 %v549, %v548
      %v552 = vld [vmem:[%s471] sm:$0xff]
      %v553 = vld [vmem:[%s471 + $0x8] sm:$0xff]
      %v554 = vld [vmem:[%s471 + $0x10] sm:$0xff]
      %v555 = vld [vmem:[%s471 + $0x18] sm:$0xff]
      %v556 = vld [vmem:[%s471 + $0x20] sm:$0xff]
      %v557 = vld [vmem:[%s471 + $0x28] sm:$0xff]
      %v558 = vld [vmem:[%s471 + $0x30] sm:$0xff]
      %v559 = vld [vmem:[%s471 + $0x38] sm:$0xff]
      %v560 = vld [vmem:[%s471 + $0x40] sm:$0xff]
      %v561 = vld [vmem:[%s471 + $0x48] sm:$0xff]
      %v562 = vld [vmem:[%s471 + $0x50] sm:$0xff]
      %v563 = vld [vmem:[%s471 + $0x58] sm:$0xff]
      %v564 = vld [vmem:[%s471 + $0x60] sm:$0xff]
      %v565 = vld [vmem:[%s471 + $0x68] sm:$0xff]
      %v566 = vld [vmem:[%s471 + $0x70] sm:$0xff]
      %v567 = vld [vmem:[%s471 + $0x78] sm:$0xff]
      %v568 = vld [vmem:[%s471 + $0x80] sm:$0xff]
      %v569 = vld [vmem:[%s471 + $0x88] sm:$0xff]
      %v570 = vld [vmem:[%s471 + $0x90] sm:$0xff]
      %v571 = vld [vmem:[%s471 + $0x98] sm:$0xff]
      %v572 = vld [vmem:[%s471 + $0xa0] sm:$0xff]
      %v573 = vld [vmem:[%s471 + $0xa8] sm:$0xff]
      %v574 = vld [vmem:[%s471 + $0xb0] sm:$0xff]
      %v575 = vld [vmem:[%s471 + $0xb8] sm:$0xff]
      %v576 = vld [vmem:[%s471 + $0xc0] sm:$0xff]
      %v577 = vld [vmem:[%s471 + $0xc8] sm:$0xff]
      %v578 = vld [vmem:[%s471 + $0xd0] sm:$0xff]
      %v579 = vld [vmem:[%s471 + $0xd8] sm:$0xff]
      %v580 = vld [vmem:[%s471 + $0xe0] sm:$0xff]
      %v581 = vld [vmem:[%s471 + $0xe8] sm:$0xff]
      %v582 = vld [vmem:[%s471 + $0xf0] sm:$0xff]
      %v583 = vld [vmem:[%s471 + $0xf8] sm:$0xff]
      %v616 = vunpack.c.l.b16 %v552
      %v617 = vunpack.c.h.b16 %v552
      %v618 = vunpack.c.l.b16 %v553
      %v619 = vunpack.c.h.b16 %v553
      %v620 = vunpack.c.l.b16 %v554
      %v621 = vunpack.c.h.b16 %v554
      %v622 = vunpack.c.l.b16 %v555
      %v623 = vunpack.c.h.b16 %v555
      %v624 = vunpack.c.l.b16 %v556
      %v625 = vunpack.c.h.b16 %v556
      %v626 = vunpack.c.l.b16 %v557
      %v627 = vunpack.c.h.b16 %v557
      %v628 = vunpack.c.l.b16 %v558
      %v629 = vunpack.c.h.b16 %v558
      %v630 = vunpack.c.l.b16 %v559
      %v631 = vunpack.c.h.b16 %v559
      %v632 = vunpack.c.l.b16 %v560
      %v633 = vunpack.c.h.b16 %v560
      %v634 = vunpack.c.l.b16 %v561
      %v635 = vunpack.c.h.b16 %v561
      %v636 = vunpack.c.l.b16 %v562
      %v637 = vunpack.c.h.b16 %v562
      %v638 = vunpack.c.l.b16 %v563
      %v639 = vunpack.c.h.b16 %v563
      %v640 = vunpack.c.l.b16 %v564
      %v641 = vunpack.c.h.b16 %v564
      %v642 = vunpack.c.l.b16 %v565
      %v643 = vunpack.c.h.b16 %v565
      %v644 = vunpack.c.l.b16 %v566
      %v645 = vunpack.c.h.b16 %v566
      %v646 = vunpack.c.l.b16 %v567
      %v647 = vunpack.c.h.b16 %v567
      %v648 = vunpack.c.l.b16 %v568
      %v649 = vunpack.c.h.b16 %v568
      %v650 = vunpack.c.l.b16 %v569
      %v651 = vunpack.c.h.b16 %v569
      %v652 = vunpack.c.l.b16 %v570
      %v653 = vunpack.c.h.b16 %v570
      %v654 = vunpack.c.l.b16 %v571
      %v655 = vunpack.c.h.b16 %v571
      %v656 = vunpack.c.l.b16 %v572
      %v657 = vunpack.c.h.b16 %v572
      %v658 = vunpack.c.l.b16 %v573
      %v659 = vunpack.c.h.b16 %v573
      %v660 = vunpack.c.l.b16 %v574
      %v661 = vunpack.c.h.b16 %v574
      %v662 = vunpack.c.l.b16 %v575
      %v663 = vunpack.c.h.b16 %v575
      %v664 = vunpack.c.l.b16 %v576
      %v665 = vunpack.c.h.b16 %v576
      %v666 = vunpack.c.l.b16 %v577
      %v667 = vunpack.c.h.b16 %v577
      %v668 = vunpack.c.l.b16 %v578
      %v669 = vunpack.c.h.b16 %v578
      %v670 = vunpack.c.l.b16 %v579
      %v671 = vunpack.c.h.b16 %v579
      %v672 = vunpack.c.l.b16 %v580
      %v673 = vunpack.c.h.b16 %v580
      %v674 = vunpack.c.l.b16 %v581
      %v675 = vunpack.c.h.b16 %v581
      %v676 = vunpack.c.l.b16 %v582
      %v677 = vunpack.c.h.b16 %v582
      %v678 = vunpack.c.l.b16 %v583
      %v679 = vunpack.c.h.b16 %v583
      %v680 = vpack.c.b16 %v620, %v616
      %v681 = vpack.c.b16 %v621, %v617
      %v682 = vpack.c.b16 %v622, %v618
      %v683 = vpack.c.b16 %v623, %v619
      %v684 = vpack.c.b16 %v628, %v624
      %v685 = vpack.c.b16 %v629, %v625
      %v686 = vpack.c.b16 %v630, %v626
      %v687 = vpack.c.b16 %v631, %v627
      %v688 = vpack.c.b16 %v636, %v632
      %v689 = vpack.c.b16 %v637, %v633
      %v690 = vpack.c.b16 %v638, %v634
      %v691 = vpack.c.b16 %v639, %v635
      %v692 = vpack.c.b16 %v644, %v640
      %v693 = vpack.c.b16 %v645, %v641
      %v694 = vpack.c.b16 %v646, %v642
      %v695 = vpack.c.b16 %v647, %v643
      %v696 = vpack.c.b16 %v652, %v648
      %v697 = vpack.c.b16 %v653, %v649
      %v698 = vpack.c.b16 %v654, %v650
      %v699 = vpack.c.b16 %v655, %v651
      %v700 = vpack.c.b16 %v660, %v656
      %v701 = vpack.c.b16 %v661, %v657
      %v702 = vpack.c.b16 %v662, %v658
      %v703 = vpack.c.b16 %v663, %v659
      %v704 = vpack.c.b16 %v668, %v664
      %v705 = vpack.c.b16 %v669, %v665
      %v706 = vpack.c.b16 %v670, %v666
      %v707 = vpack.c.b16 %v671, %v667
      %v708 = vpack.c.b16 %v676, %v672
      %v709 = vpack.c.b16 %v677, %v673
      %v710 = vpack.c.b16 %v678, %v674
      %v711 = vpack.c.b16 %v679, %v675
      %744 = vmatprep.subr.bf16.mxu0 %v681
      %745 = vmatpush1.bf16.msra.mxu0 %v680
      %746 = vmatprep.subr.bf16.mxu0 %v685
      %747 = vmatpush1.bf16.msra.mxu0 %v684
      %748 = vmatprep.subr.bf16.mxu0 %v689
      %749 = vmatpush1.bf16.msra.mxu0 %v688
      %750 = vmatprep.subr.bf16.mxu0 %v693
      %751 = vmatpush1.bf16.msra.mxu0 %v692
      %752 = vmatprep.subr.bf16.mxu0 %v697
      %753 = vmatpush1.bf16.msra.mxu0 %v696
      %754 = vmatprep.subr.bf16.mxu0 %v701
      %755 = vmatpush1.bf16.msra.mxu0 %v700
      %756 = vmatprep.subr.bf16.mxu0 %v705
      %757 = vmatpush1.bf16.msra.mxu0 %v704
      %758 = vmatprep.subr.bf16.mxu0 %v709
      %759 = vmatpush1.bf16.msra.mxu0 %v708
      %760 = vmatprep.subr.bf16.mxu0 0
      %761 = vmatpush1.bf16.msra.mxu0 0
      %762 = vmatprep.subr.bf16.mxu0 0
      %763 = vmatpush1.bf16.msra.mxu0 0
      %764 = vmatprep.subr.bf16.mxu0 0
      %765 = vmatpush1.bf16.msra.mxu0 0
      %766 = vmatprep.subr.bf16.mxu0 0
      %767 = vmatpush1.bf16.msra.mxu0 0
      %768 = vmatprep.subr.bf16.mxu0 0
      %769 = vmatpush1.bf16.msra.mxu0 0
      %770 = vmatprep.subr.bf16.mxu0 0
      %771 = vmatpush1.bf16.msra.mxu0 0
      %772 = vmatprep.subr.bf16.mxu0 0
      %773 = vmatpush1.bf16.msra.mxu0 0
      %774 = vmatprep.subr.bf16.mxu0 0
      %775 = vmatpush1.bf16.msra.mxu0 0
      %776 = vmatprep.mubr.bf16.mxu0 0
      %777 = vmatmul.mubr.bf16.gmra.mrb[0].mxu0 %v550
      %v778 = vpop.f32.mrb[0].mxu0
      %v779 = vadd.f32 0.0, %v778
      %v780 = vpop.f32.mrb[0].mxu0
      %v781 = vadd.f32 0.0, %v780
      %v782 = vpop.f32.mrb[0].mxu0
      %v783 = vadd.f32 0.0, %v782
      %v784 = vpop.f32.mrb[0].mxu0
      %v785 = vadd.f32 0.0, %v784
      %786 = vmatprep.mubr.bf16.mxu0 0
      %787 = vmatmul.mubr.bf16.gmra.mrb[0].mxu0 %v551
      %v788 = vpop.f32.mrb[0].mxu0
      %v789 = vadd.f32 0.0, %v788
      %v790 = vpop.f32.mrb[0].mxu0
      %v791 = vadd.f32 0.0, %v790
      %v792 = vpop.f32.mrb[0].mxu0
      %v793 = vadd.f32 0.0, %v792
      %v794 = vpop.f32.mrb[0].mxu0
      %v795 = vadd.f32 0.0, %v794
      %796 = vdwg.mxu0
      %797 = vmatprep.subr.bf16.mxu0 %v683
      %798 = vmatpush1.bf16.msra.mxu0 %v682
      %799 = vmatprep.subr.bf16.mxu0 %v687
      %800 = vmatpush1.bf16.msra.mxu0 %v686
      %801 = vmatprep.subr.bf16.mxu0 %v691
      %802 = vmatpush1.bf16.msra.mxu0 %v690
      %803 = vmatprep.subr.bf16.mxu0 %v695
      %804 = vmatpush1.bf16.msra.mxu0 %v694
      %805 = vmatprep.subr.bf16.mxu0 %v699
      %806 = vmatpush1.bf16.msra.mxu0 %v698
      %807 = vmatprep.subr.bf16.mxu0 %v703
      %808 = vmatpush1.bf16.msra.mxu0 %v702
      %809 = vmatprep.subr.bf16.mxu0 %v707
      %810 = vmatpush1.bf16.msra.mxu0 %v706
      %811 = vmatprep.subr.bf16.mxu0 %v711
      %812 = vmatpush1.bf16.msra.mxu0 %v710
      %813 = vmatprep.subr.bf16.mxu0 0
      %814 = vmatpush1.bf16.msra.mxu0 0
      %815 = vmatprep.subr.bf16.mxu0 0
      %816 = vmatpush1.bf16.msra.mxu0 0
      %817 = vmatprep.subr.bf16.mxu0 0
      %818 = vmatpush1.bf16.msra.mxu0 0
      %819 = vmatprep.subr.bf16.mxu0 0
      %820 = vmatpush1.bf16.msra.mxu0 0
      %821 = vmatprep.subr.bf16.mxu0 0
      %822 = vmatpush1.bf16.msra.mxu0 0
      %823 = vmatprep.subr.bf16.mxu0 0
      %824 = vmatpush1.bf16.msra.mxu0 0
      %825 = vmatprep.subr.bf16.mxu0 0
      %826 = vmatpush1.bf16.msra.mxu0 0
      %827 = vmatprep.subr.bf16.mxu0 0
      %828 = vmatpush1.bf16.msra.mxu0 0
      %829 = vmatprep.mubr.bf16.mxu0 0
      %830 = vmatmul.mubr.bf16.gmra.mrb[0].mxu0 %v550
      %v831 = vpop.f32.mrb[0].mxu0
      %v832 = vadd.f32 0.0, %v831
      %v833 = vpop.f32.mrb[0].mxu0
      %v834 = vadd.f32 0.0, %v833
      %v835 = vpop.f32.mrb[0].mxu0
      %v836 = vadd.f32 0.0, %v835
      %v837 = vpop.f32.mrb[0].mxu0
      %v838 = vadd.f32 0.0, %v837
      %839 = vmatprep.mubr.bf16.mxu0 0
      %840 = vmatmul.mubr.bf16.gmra.mrb[0].mxu0 %v551
      %v841 = vpop.f32.mrb[0].mxu0
      %v842 = vadd.f32 0.0, %v841
      %v843 = vpop.f32.mrb[0].mxu0
      %v844 = vadd.f32 0.0, %v843
      %v845 = vpop.f32.mrb[0].mxu0
      %v846 = vadd.f32 0.0, %v845
      %v847 = vpop.f32.mrb[0].mxu0
      %v848 = vadd.f32 0.0, %v847
      %849 = vdwg.mxu0
      %v882 = vunpack.c.l.b16 %v514
      %v883 = vunpack.c.h.b16 %v514
      %v884 = vunpack.c.l.b16 %v515
      %v885 = vunpack.c.h.b16 %v515
      %v886 = vunpack.c.l.b16 %v516
      %v887 = vunpack.c.h.b16 %v516
      %v888 = vunpack.c.l.b16 %v517
      %v889 = vunpack.c.h.b16 %v517
      %v890 = vunpack.c.l.b16 %v518
      %v891 = vunpack.c.h.b16 %v518
      %v892 = vunpack.c.l.b16 %v519
      %v893 = vunpack.c.h.b16 %v519
      %v894 = vunpack.c.l.b16 %v520
      %v895 = vunpack.c.h.b16 %v520
      %v896 = vunpack.c.l.b16 %v521
      %v897 = vunpack.c.h.b16 %v521
      %v898 = vunpack.c.l.b16 %v522
      %v899 = vunpack.c.h.b16 %v522
      %v900 = vunpack.c.l.b16 %v523
      %v901 = vunpack.c.h.b16 %v523
      %v902 = vunpack.c.l.b16 %v524
      %v903 = vunpack.c.h.b16 %v524
      %v904 = vunpack.c.l.b16 %v525
      %v905 = vunpack.c.h.b16 %v525
      %v906 = vunpack.c.l.b16 %v526
      %v907 = vunpack.c.h.b16 %v526
      %v908 = vunpack.c.l.b16 %v527
      %v909 = vunpack.c.h.b16 %v527
      %v910 = vunpack.c.l.b16 %v528
      %v911 = vunpack.c.h.b16 %v528
      %v912 = vunpack.c.l.b16 %v529
      %v913 = vunpack.c.h.b16 %v529
      %v914 = vunpack.c.l.b16 %v530
      %v915 = vunpack.c.h.b16 %v530
      %v916 = vunpack.c.l.b16 %v531
      %v917 = vunpack.c.h.b16 %v531
      %v918 = vunpack.c.l.b16 %v532
      %v919 = vunpack.c.h.b16 %v532
      %v920 = vunpack.c.l.b16 %v533
      %v921 = vunpack.c.h.b16 %v533
      %v922 = vunpack.c.l.b16 %v534
      %v923 = vunpack.c.h.b16 %v534
      %v924 = vunpack.c.l.b16 %v535
      %v925 = vunpack.c.h.b16 %v535
      %v926 = vunpack.c.l.b16 %v536
      %v927 = vunpack.c.h.b16 %v536
      %v928 = vunpack.c.l.b16 %v537
      %v929 = vunpack.c.h.b16 %v537
      %v930 = vunpack.c.l.b16 %v538
      %v931 = vunpack.c.h.b16 %v538
      %v932 = vunpack.c.l.b16 %v539
      %v933 = vunpack.c.h.b16 %v539
      %v934 = vunpack.c.l.b16 %v540
      %v935 = vunpack.c.h.b16 %v540
      %v936 = vunpack.c.l.b16 %v541
      %v937 = vunpack.c.h.b16 %v541
      %v938 = vunpack.c.l.b16 %v542
      %v939 = vunpack.c.h.b16 %v542
      %v940 = vunpack.c.l.b16 %v543
      %v941 = vunpack.c.h.b16 %v543
      %v942 = vunpack.c.l.b16 %v544
      %v943 = vunpack.c.h.b16 %v544
      %v944 = vunpack.c.l.b16 %v545
      %v945 = vunpack.c.h.b16 %v545
      %v946 = vpack.c.b16 %v886, %v882
      %v947 = vpack.c.b16 %v887, %v883
      %v948 = vpack.c.b16 %v888, %v884
      %v949 = vpack.c.b16 %v889, %v885
      %v950 = vpack.c.b16 %v894, %v890
      %v951 = vpack.c.b16 %v895, %v891
      %v952 = vpack.c.b16 %v896, %v892
      %v953 = vpack.c.b16 %v897, %v893
      %v954 = vpack.c.b16 %v902, %v898
      %v955 = vpack.c.b16 %v903, %v899
      %v956 = vpack.c.b16 %v904, %v900
      %v957 = vpack.c.b16 %v905, %v901
      %v958 = vpack.c.b16 %v910, %v906
      %v959 = vpack.c.b16 %v911, %v907
      %v960 = vpack.c.b16 %v912, %v908
      %v961 = vpack.c.b16 %v913, %v909
      %v962 = vpack.c.b16 %v918, %v914
      %v963 = vpack.c.b16 %v919, %v915
      %v964 = vpack.c.b16 %v920, %v916
      %v965 = vpack.c.b16 %v921, %v917
      %v966 = vpack.c.b16 %v926, %v922
      %v967 = vpack.c.b16 %v927, %v923
      %v968 = vpack.c.b16 %v928, %v924
      %v969 = vpack.c.b16 %v929, %v925
      %v970 = vpack.c.b16 %v934, %v930
      %v971 = vpack.c.b16 %v935, %v931
      %v972 = vpack.c.b16 %v936, %v932
      %v973 = vpack.c.b16 %v937, %v933
      %v974 = vpack.c.b16 %v942, %v938
      %v975 = vpack.c.b16 %v943, %v939
      %v976 = vpack.c.b16 %v944, %v940
      %v977 = vpack.c.b16 %v945, %v941
      %1010 = vmatprep.subr.bf16.mxu0 %v947
      %1011 = vmatpush1.bf16.msra.mxu0 %v946
      %1012 = vmatprep.subr.bf16.mxu0 %v951
      %1013 = vmatpush1.bf16.msra.mxu0 %v950
      %1014 = vmatprep.subr.bf16.mxu0 %v955
      %1015 = vmatpush1.bf16.msra.mxu0 %v954
      %1016 = vmatprep.subr.bf16.mxu0 %v959
      %1017 = vmatpush1.bf16.msra.mxu0 %v958
      %1018 = vmatprep.subr.bf16.mxu0 %v963
      %1019 = vmatpush1.bf16.msra.mxu0 %v962
      %1020 = vmatprep.subr.bf16.mxu0 %v967
      %1021 = vmatpush1.bf16.msra.mxu0 %v966
      %1022 = vmatprep.subr.bf16.mxu0 %v971
      %1023 = vmatpush1.bf16.msra.mxu0 %v970
      %1024 = vmatprep.subr.bf16.mxu0 %v975
      %1025 = vmatpush1.bf16.msra.mxu0 %v974
      %1026 = vmatprep.subr.bf16.mxu0 0
      %1027 = vmatpush1.bf16.msra.mxu0 0
      %1028 = vmatprep.subr.bf16.mxu0 0
      %1029 = vmatpush1.bf16.msra.mxu0 0
      %1030 = vmatprep.subr.bf16.mxu0 0
      %1031 = vmatpush1.bf16.msra.mxu0 0
      %1032 = vmatprep.subr.bf16.mxu0 0
      %1033 = vmatpush1.bf16.msra.mxu0 0
      %1034 = vmatprep.subr.bf16.mxu0 0
      %1035 = vmatpush1.bf16.msra.mxu0 0
      %1036 = vmatprep.subr.bf16.mxu0 0
      %1037 = vmatpush1.bf16.msra.mxu0 0
      %1038 = vmatprep.subr.bf16.mxu0 0
      %1039 = vmatpush1.bf16.msra.mxu0 0
      %1040 = vmatprep.subr.bf16.mxu0 0
      %1041 = vmatpush1.bf16.msra.mxu0 0
      %1042 = vmatprep.mubr.bf16.mxu0 0
      %1043 = vmatmul.mubr.bf16.gmra.mrb[0].mxu0 %v512
      %v1044 = vpop.f32.mrb[0].mxu0
      %v1045 = vadd.f32 %v779, %v1044
      %v1046 = vpop.f32.mrb[0].mxu0
      %v1047 = vadd.f32 %v781, %v1046
      %v1048 = vpop.f32.mrb[0].mxu0
      %v1049 = vadd.f32 %v783, %v1048
      %v1050 = vpop.f32.mrb[0].mxu0
      %v1051 = vadd.f32 %v785, %v1050
      %1052 = vmatprep.mubr.bf16.mxu0 0
      %1053 = vmatmul.mubr.bf16.gmra.mrb[0].mxu0 %v513
      %v1054 = vpop.f32.mrb[0].mxu0
      %v1055 = vadd.f32 %v789, %v1054
      %v1056 = vpop.f32.mrb[0].mxu0
      %v1057 = vadd.f32 %v791, %v1056
      %v1058 = vpop.f32.mrb[0].mxu0
      %v1059 = vadd.f32 %v793, %v1058
      %v1060 = vpop.f32.mrb[0].mxu0
      %v1061 = vadd.f32 %v795, %v1060
      %1062 = vdwg.mxu0
      %1063 = vmatprep.subr.bf16.mxu0 %v949
      %1064 = vmatpush1.bf16.msra.mxu0 %v948
      %1065 = vmatprep.subr.bf16.mxu0 %v953
      %1066 = vmatpush1.bf16.msra.mxu0 %v952
      %1067 = vmatprep.subr.bf16.mxu0 %v957
      %1068 = vmatpush1.bf16.msra.mxu0 %v956
      %1069 = vmatprep.subr.bf16.mxu0 %v961
      %1070 = vmatpush1.bf16.msra.mxu0 %v960
      %1071 = vmatprep.subr.bf16.mxu0 %v965
      %1072 = vmatpush1.bf16.msra.mxu0 %v964
      %1073 = vmatprep.subr.bf16.mxu0 %v969
      %1074 = vmatpush1.bf16.msra.mxu0 %v968
      %1075 = vmatprep.subr.bf16.mxu0 %v973
      %1076 = vmatpush1.bf16.msra.mxu0 %v972
      %1077 = vmatprep.subr.bf16.mxu0 %v977
      %1078 = vmatpush1.bf16.msra.mxu0 %v976
      %1079 = vmatprep.subr.bf16.mxu0 0
      %1080 = vmatpush1.bf16.msra.mxu0 0
      %1081 = vmatprep.subr.bf16.mxu0 0
      %1082 = vmatpush1.bf16.msra.mxu0 0
      %1083 = vmatprep.subr.bf16.mxu0 0
      %1084 = vmatpush1.bf16.msra.mxu0 0
      %1085 = vmatprep.subr.bf16.mxu0 0
      %1086 = vmatpush1.bf16.msra.mxu0 0
      %1087 = vmatprep.subr.bf16.mxu0 0
      %1088 = vmatpush1.bf16.msra.mxu0 0
      %1089 = vmatprep.subr.bf16.mxu0 0
      %1090 = vmatpush1.bf16.msra.mxu0 0
      %1091 = vmatprep.subr.bf16.mxu0 0
      %1092 = vmatpush1.bf16.msra.mxu0 0
      %1093 = vmatprep.subr.bf16.mxu0 0
      %1094 = vmatpush1.bf16.msra.mxu0 0
      %1095 = vmatprep.mubr.bf16.mxu0 0
      %1096 = vmatmul.mubr.bf16.gmra.mrb[0].mxu0 %v512
      %v1097 = vpop.f32.mrb[0].mxu0
      %v1098 = vadd.f32 %v832, %v1097
      %v1099 = vpop.f32.mrb[0].mxu0
      %v1100 = vadd.f32 %v834, %v1099
      %v1101 = vpop.f32.mrb[0].mxu0
      %v1102 = vadd.f32 %v836, %v1101
      %v1103 = vpop.f32.mrb[0].mxu0
      %v1104 = vadd.f32 %v838, %v1103
      %1105 = vmatprep.mubr.bf16.mxu0 0
      %1106 = vmatmul.mubr.bf16.gmra.mrb[0].mxu0 %v513
      %v1107 = vpop.f32.mrb[0].mxu0
      %v1108 = vadd.f32 %v842, %v1107
      %v1109 = vpop.f32.mrb[0].mxu0
      %v1110 = vadd.f32 %v844, %v1109
      %v1111 = vpop.f32.mrb[0].mxu0
      %v1112 = vadd.f32 %v846, %v1111
      %v1113 = vpop.f32.mrb[0].mxu0
      %v1114 = vadd.f32 %v848, %v1113
      %1115 = vdwg.mxu0
      %v1116 = vld [vmem:[%s480] sm:$0xf]
      %v1118 = vlaneseq
      %v1119 = vshrl.u32 %v1118, 7
      %v1120 = vsub.s32 0, %v1119
      %v1121 = vrot.slane %v1116, %v1120
      %v1122 = vlaneseq
      %v1123 = vshrl.u32 %v1122, 7
      %v1124 = vsub.s32 1, %v1123
      %v1125 = vrot.slane %v1116, %v1124
      %v1126 = vlaneseq
      %v1127 = vshrl.u32 %v1126, 7
      %v1128 = vsub.s32 2, %v1127
      %v1129 = vrot.slane %v1116, %v1128
      %v1130 = vlaneseq
      %v1131 = vshrl.u32 %v1130, 7
      %v1132 = vsub.s32 3, %v1131
      %v1133 = vrot.slane %v1116, %v1132
      %v1138 = vadd.f32 %v1045, %v1121
      %v1139 = vadd.f32 %v1047, %v1125
      %v1140 = vadd.f32 %v1098, %v1129
      %v1141 = vadd.f32 %v1100, %v1133
      %v1142 = vadd.f32 %v1049, %v1121
      %v1143 = vadd.f32 %v1051, %v1125
      %v1144 = vadd.f32 %v1102, %v1129
      %v1145 = vadd.f32 %v1104, %v1133
      %v1146 = vadd.f32 %v1055, %v1121
      %v1147 = vadd.f32 %v1057, %v1125
      %v1148 = vadd.f32 %v1108, %v1129
      %v1149 = vadd.f32 %v1110, %v1133
      %v1150 = vadd.f32 %v1059, %v1121
      %v1151 = vadd.f32 %v1061, %v1125
      %v1152 = vadd.f32 %v1112, %v1129
      %v1153 = vadd.f32 %v1114, %v1133
      %1154 = vst [vmem:[#allocation2] sm:$0xff] %v1138
      %1155 = vst [vmem:[#allocation2 + $0x8] sm:$0xff] %v1139
      %1156 = vst [vmem:[#allocation2 + $0x10] sm:$0xff] %v1140
      %1157 = vst [vmem:[#allocation2 + $0x18] sm:$0xff] %v1141
      %1158 = vst [vmem:[#allocation2 + $0x20] sm:$0xff] %v1142
      %1159 = vst [vmem:[#allocation2 + $0x28] sm:$0xff] %v1143
      %1160 = vst [vmem:[#allocation2 + $0x30] sm:$0xff] %v1144
      %1161 = vst [vmem:[#allocation2 + $0x38] sm:$0xff] %v1145
      %1162 = vst [vmem:[#allocation2 + $0x40] sm:$0xff] %v1146
      %1163 = vst [vmem:[#allocation2 + $0x48] sm:$0xff] %v1147
      %1164 = vst [vmem:[#allocation2 + $0x50] sm:$0xff] %v1148
      %1165 = vst [vmem:[#allocation2 + $0x58] sm:$0xff] %v1149
      %1166 = vst [vmem:[#allocation2 + $0x60] sm:$0xff] %v1150
      %1167 = vst [vmem:[#allocation2 + $0x68] sm:$0xff] %v1151
      %1168 = vst [vmem:[#allocation2 + $0x70] sm:$0xff] %v1152
      %1169 = vst [vmem:[#allocation2 + $0x78] sm:$0xff] %v1153
      %v1170 = vld [vmem:[%s2] sm:$0xff]
      %v1171 = vld [vmem:[%s476] sm:$0xff]
      %v1172 = vld [vmem:[%s476 + $0x8] sm:$0xff]
      %v1173 = vld [vmem:[%s476 + $0x10] sm:$0xff]
      %v1174 = vld [vmem:[%s476 + $0x18] sm:$0xff]
      %v1175 = vld [vmem:[%s476 + $0x20] sm:$0xff]
      %v1176 = vld [vmem:[%s476 + $0x28] sm:$0xff]
      %v1177 = vld [vmem:[%s476 + $0x30] sm:$0xff]
      %v1178 = vld [vmem:[%s476 + $0x38] sm:$0xff]
      %v1179 = vld [vmem:[%s476 + $0x40] sm:$0xff]
      %v1180 = vld [vmem:[%s476 + $0x48] sm:$0xff]
      %v1181 = vld [vmem:[%s476 + $0x50] sm:$0xff]
      %v1182 = vld [vmem:[%s476 + $0x58] sm:$0xff]
      %v1183 = vld [vmem:[%s476 + $0x60] sm:$0xff]
      %v1184 = vld [vmem:[%s476 + $0x68] sm:$0xff]
      %v1185 = vld [vmem:[%s476 + $0x70] sm:$0xff]
      %v1186 = vld [vmem:[%s476 + $0x78] sm:$0xff]
      %v1187 = vld [vmem:[%s476 + $0x80] sm:$0xff]
      %v1188 = vld [vmem:[%s476 + $0x88] sm:$0xff]
      %v1189 = vld [vmem:[%s476 + $0x90] sm:$0xff]
      %v1190 = vld [vmem:[%s476 + $0x98] sm:$0xff]
      %v1191 = vld [vmem:[%s476 + $0xa0] sm:$0xff]
      %v1192 = vld [vmem:[%s476 + $0xa8] sm:$0xff]
      %v1193 = vld [vmem:[%s476 + $0xb0] sm:$0xff]
      %v1194 = vld [vmem:[%s476 + $0xb8] sm:$0xff]
      %v1195 = vld [vmem:[%s476 + $0xc0] sm:$0xff]
      %v1196 = vld [vmem:[%s476 + $0xc8] sm:$0xff]
      %v1197 = vld [vmem:[%s476 + $0xd0] sm:$0xff]
      %v1198 = vld [vmem:[%s476 + $0xd8] sm:$0xff]
      %v1199 = vld [vmem:[%s476 + $0xe0] sm:$0xff]
      %v1200 = vld [vmem:[%s476 + $0xe8] sm:$0xff]
      %v1201 = vld [vmem:[%s476 + $0xf0] sm:$0xff]
      %v1202 = vld [vmem:[%s476 + $0xf8] sm:$0xff]
      %s1203 = ssub.s32 1, %s22
      %s1204 = smul.u32 %s1203, %s23
      %s1205 = ssub.s32 1, %s23
      %s1206 = smul.u32 %s22, %s1205
      %s1207 = sadd.s32 %s1204, %s1206
      %s1208 = smul.u32 %s1207, 4
      %p1209 = scmp.eq.s32.totalorder %s22, 0
      %s1210 = scalar_select %p1209, 0, 3
      %s1211 = sadd.s32 %s1208, %s1210
      %v1212 = vstv %s1211
      %vm1213 = vcmp.gt.s32.totalorder %v1170, %v1212
      %s1214 = smul.u32 %s1210, 4
      %s1215 = smul.addr %s1214, 8
      %s1216 = scalar_lea.vmem [#allocation2], %s1215
      %v1217 = vld [vmem:[%s1216] sm:$0xff]
      %v1218 = vld [vmem:[%s1216 + $0x8] sm:$0xff]
      %v1219 = vld [vmem:[%s1216 + $0x10] sm:$0xff]
      %v1220 = vld [vmem:[%s1216 + $0x18] sm:$0xff]
      %v1221 = vld [vmem:[#allocation3] sm:$0xff]
      %v1222 = vpack.c.bf16 %v1221, %v1221
      %v1255 = vunpack.c.l.b16 %v1171
      %v1256 = vunpack.c.h.b16 %v1171
      %v1257 = vunpack.c.l.b16 %v1172
      %v1258 = vunpack.c.h.b16 %v1172
      %v1259 = vunpack.c.l.b16 %v1173
      %v1260 = vunpack.c.h.b16 %v1173
      %v1261 = vunpack.c.l.b16 %v1174
      %v1262 = vunpack.c.h.b16 %v1174
      %v1263 = vunpack.c.l.b16 %v1175
      %v1264 = vunpack.c.h.b16 %v1175
      %v1265 = vunpack.c.l.b16 %v1176
      %v1266 = vunpack.c.h.b16 %v1176
      %v1267 = vunpack.c.l.b16 %v1177
      %v1268 = vunpack.c.h.b16 %v1177
      %v1269 = vunpack.c.l.b16 %v1178
      %v1270 = vunpack.c.h.b16 %v1178
      %v1271 = vunpack.c.l.b16 %v1179
      %v1272 = vunpack.c.h.b16 %v1179
      %v1273 = vunpack.c.l.b16 %v1180
      %v1274 = vunpack.c.h.b16 %v1180
      %v1275 = vunpack.c.l.b16 %v1181
      %v1276 = vunpack.c.h.b16 %v1181
      %v1277 = vunpack.c.l.b16 %v1182
      %v1278 = vunpack.c.h.b16 %v1182
      %v1279 = vunpack.c.l.b16 %v1183
      %v1280 = vunpack.c.h.b16 %v1183
      %v1281 = vunpack.c.l.b16 %v1184
      %v1282 = vunpack.c.h.b16 %v1184
      %v1283 = vunpack.c.l.b16 %v1185
      %v1284 = vunpack.c.h.b16 %v1185
      %v1285 = vunpack.c.l.b16 %v1186
      %v1286 = vunpack.c.h.b16 %v1186
      %v1287 = vunpack.c.l.b16 %v1187
      %v1288 = vunpack.c.h.b16 %v1187
      %v1289 = vunpack.c.l.b16 %v1188
      %v1290 = vunpack.c.h.b16 %v1188
      %v1291 = vunpack.c.l.b16 %v1189
      %v1292 = vunpack.c.h.b16 %v1189
      %v1293 = vunpack.c.l.b16 %v1190
      %v1294 = vunpack.c.h.b16 %v1190
      %v1295 = vunpack.c.l.b16 %v1191
      %v1296 = vunpack.c.h.b16 %v1191
      %v1297 = vunpack.c.l.b16 %v1192
      %v1298 = vunpack.c.h.b16 %v1192
      %v1299 = vunpack.c.l.b16 %v1193
      %v1300 = vunpack.c.h.b16 %v1193
      %v1301 = vunpack.c.l.b16 %v1194
      %v1302 = vunpack.c.h.b16 %v1194
      %v1303 = vunpack.c.l.b16 %v1195
      %v1304 = vunpack.c.h.b16 %v1195
      %v1305 = vunpack.c.l.b16 %v1196
      %v1306 = vunpack.c.h.b16 %v1196
      %v1307 = vunpack.c.l.b16 %v1197
      %v1308 = vunpack.c.h.b16 %v1197
      %v1309 = vunpack.c.l.b16 %v1198
      %v1310 = vunpack.c.h.b16 %v1198
      %v1311 = vunpack.c.l.b16 %v1199
      %v1312 = vunpack.c.h.b16 %v1199
      %v1313 = vunpack.c.l.b16 %v1200
      %v1314 = vunpack.c.h.b16 %v1200
      %v1315 = vunpack.c.l.b16 %v1201
      %v1316 = vunpack.c.h.b16 %v1201
      %v1317 = vunpack.c.l.b16 %v1202
      %v1318 = vunpack.c.h.b16 %v1202
      %v1319 = vpack.c.b16 %v1259, %v1255
      %v1320 = vpack.c.b16 %v1260, %v1256
      %v1321 = vpack.c.b16 %v1261, %v1257
      %v1322 = vpack.c.b16 %v1262, %v1258
      %v1323 = vpack.c.b16 %v1267, %v1263
      %v1324 = vpack.c.b16 %v1268, %v1264
      %v1325 = vpack.c.b16 %v1269, %v1265
      %v1326 = vpack.c.b16 %v1270, %v1266
      %v1327 = vpack.c.b16 %v1275, %v1271
      %v1328 = vpack.c.b16 %v1276, %v1272
      %v1329 = vpack.c.b16 %v1277, %v1273
      %v1330 = vpack.c.b16 %v1278, %v1274
      %v1331 = vpack.c.b16 %v1283, %v1279
      %v1332 = vpack.c.b16 %v1284, %v1280
      %v1333 = vpack.c.b16 %v1285, %v1281
      %v1334 = vpack.c.b16 %v1286, %v1282
      %v1335 = vpack.c.b16 %v1291, %v1287
      %v1336 = vpack.c.b16 %v1292, %v1288
      %v1337 = vpack.c.b16 %v1293, %v1289
      %v1338 = vpack.c.b16 %v1294, %v1290
      %v1339 = vpack.c.b16 %v1299, %v1295
      %v1340 = vpack.c.b16 %v1300, %v1296
      %v1341 = vpack.c.b16 %v1301, %v1297
      %v1342 = vpack.c.b16 %v1302, %v1298
      %v1343 = vpack.c.b16 %v1307, %v1303
      %v1344 = vpack.c.b16 %v1308, %v1304
      %v1345 = vpack.c.b16 %v1309, %v1305
      %v1346 = vpack.c.b16 %v1310, %v1306
      %v1347 = vpack.c.b16 %v1315, %v1311
      %v1348 = vpack.c.b16 %v1316, %v1312
      %v1349 = vpack.c.b16 %v1317, %v1313
      %v1350 = vpack.c.b16 %v1318, %v1314
      %1383 = vmatprep.subr.bf16.mxu0 %v1320
      %1384 = vmatpush1.bf16.msra.mxu0 %v1319
      %1385 = vmatprep.subr.bf16.mxu0 %v1324
      %1386 = vmatpush1.bf16.msra.mxu0 %v1323
      %1387 = vmatprep.subr.bf16.mxu0 %v1328
      %1388 = vmatpush1.bf16.msra.mxu0 %v1327
      %1389 = vmatprep.subr.bf16.mxu0 %v1332
      %1390 = vmatpush1.bf16.msra.mxu0 %v1331
      %1391 = vmatprep.subr.bf16.mxu0 %v1336
      %1392 = vmatpush1.bf16.msra.mxu0 %v1335
      %1393 = vmatprep.subr.bf16.mxu0 %v1340
      %1394 = vmatpush1.bf16.msra.mxu0 %v1339
      %1395 = vmatprep.subr.bf16.mxu0 %v1344
      %1396 = vmatpush1.bf16.msra.mxu0 %v1343
      %1397 = vmatprep.subr.bf16.mxu0 %v1348
      %1398 = vmatpush1.bf16.msra.mxu0 %v1347
      %1399 = vmatprep.subr.bf16.mxu0 0
      %1400 = vmatpush1.bf16.msra.mxu0 0
      %1401 = vmatprep.subr.bf16.mxu0 0
      %1402 = vmatpush1.bf16.msra.mxu0 0
      %1403 = vmatprep.subr.bf16.mxu0 0
      %1404 = vmatpush1.bf16.msra.mxu0 0
      %1405 = vmatprep.subr.bf16.mxu0 0
      %1406 = vmatpush1.bf16.msra.mxu0 0
      %1407 = vmatprep.subr.bf16.mxu0 0
      %1408 = vmatpush1.bf16.msra.mxu0 0
      %1409 = vmatprep.subr.bf16.mxu0 0
      %1410 = vmatpush1.bf16.msra.mxu0 0
      %1411 = vmatprep.subr.bf16.mxu0 0
      %1412 = vmatpush1.bf16.msra.mxu0 0
      %1413 = vmatprep.subr.bf16.mxu0 0
      %1414 = vmatpush1.bf16.msra.mxu0 0
      %1415 = vmatprep.mubr.bf16.mxu0 0
      %1416 = vmatmul.mubr.bf16.gmra.mrb[0].mxu0 %v1222
      %v1417 = vpop.f32.mrb[0].mxu0
      %v1418 = vadd.f32 0.0, %v1417
      %v1419 = vpop.f32.mrb[0].mxu0
      %v1420 = vadd.f32 0.0, %v1419
      %v1421 = vpop.f32.mrb[0].mxu0
      %v1422 = vpop.f32.mrb[0].mxu0
      %1423 = vdwg.mxu0
      %1424 = vmatprep.subr.bf16.mxu0 %v1322
      %1425 = vmatpush1.bf16.msra.mxu0 %v1321
      %1426 = vmatprep.subr.bf16.mxu0 %v1326
      %1427 = vmatpush1.bf16.msra.mxu0 %v1325
      %1428 = vmatprep.subr.bf16.mxu0 %v1330
      %1429 = vmatpush1.bf16.msra.mxu0 %v1329
      %1430 = vmatprep.subr.bf16.mxu0 %v1334
      %1431 = vmatpush1.bf16.msra.mxu0 %v1333
      %1432 = vmatprep.subr.bf16.mxu0 %v1338
      %1433 = vmatpush1.bf16.msra.mxu0 %v1337
      %1434 = vmatprep.subr.bf16.mxu0 %v1342
      %1435 = vmatpush1.bf16.msra.mxu0 %v1341
      %1436 = vmatprep.subr.bf16.mxu0 %v1346
      %1437 = vmatpush1.bf16.msra.mxu0 %v1345
      %1438 = vmatprep.subr.bf16.mxu0 %v1350
      %1439 = vmatpush1.bf16.msra.mxu0 %v1349
      %1440 = vmatprep.subr.bf16.mxu0 0
      %1441 = vmatpush1.bf16.msra.mxu0 0
      %1442 = vmatprep.subr.bf16.mxu0 0
      %1443 = vmatpush1.bf16.msra.mxu0 0
      %1444 = vmatprep.subr.bf16.mxu0 0
      %1445 = vmatpush1.bf16.msra.mxu0 0
      %1446 = vmatprep.subr.bf16.mxu0 0
      %1447 = vmatpush1.bf16.msra.mxu0 0
      %1448 = vmatprep.subr.bf16.mxu0 0
      %1449 = vmatpush1.bf16.msra.mxu0 0
      %1450 = vmatprep.subr.bf16.mxu0 0
      %1451 = vmatpush1.bf16.msra.mxu0 0
      %1452 = vmatprep.subr.bf16.mxu0 0
      %1453 = vmatpush1.bf16.msra.mxu0 0
      %1454 = vmatprep.subr.bf16.mxu0 0
      %1455 = vmatpush1.bf16.msra.mxu0 0
      %1456 = vmatprep.mubr.bf16.mxu0 0
      %1457 = vmatmul.mubr.bf16.gmra.mrb[0].mxu0 %v1222
      %v1458 = vpop.f32.mrb[0].mxu0
      %v1459 = vadd.f32 0.0, %v1458
      %v1460 = vpop.f32.mrb[0].mxu0
      %v1461 = vadd.f32 0.0, %v1460
      %v1462 = vpop.f32.mrb[0].mxu0
      %v1463 = vpop.f32.mrb[0].mxu0
      %1464 = vdwg.mxu0
      %v1465 = vadd.f32 %v1217, %v1418
      %v1466 = vadd.f32 %v1218, %v1420
      %v1467 = vadd.f32 %v1219, %v1459
      %v1468 = vadd.f32 %v1220, %v1461
      %v1469 = vxor.u32 %v1465, 2147483648
      %v1470 = vmul.f32 %v1469, 1.442695
      %v1471 = vpow.pop %v1470
      %v1472 = vadd.f32 %v1471, 1.0
      %v1473 = vrcp.pop %v1472
      %v1474 = vmul.f32 1.0, %v1473
      %v1475 = vxor.u32 %v1466, 2147483648
      %v1476 = vmul.f32 %v1475, 1.442695
      %v1477 = vpow.pop %v1476
      %v1478 = vadd.f32 %v1477, 1.0
      %v1479 = vrcp.pop %v1478
      %v1480 = vmul.f32 1.0, %v1479
      %v1481 = vtanh.pop %v1467
      %v1482 = vxor.u32 %v1468, 2147483648
      %v1483 = vmul.f32 %v1482, 1.442695
      %v1484 = vpow.pop %v1483
      %v1485 = vadd.f32 %v1484, 1.0
      %v1486 = vrcp.pop %v1485
      %v1487 = vmul.f32 1.0, %v1486
      %v1488 = vld [vmem:[#allocation4] sm:$0xff]
      %v1489 = vmul.f32 %v1480, %v1488
      %v1490 = vmul.f32 %v1474, %v1481
      %v1491 = vadd.f32 %v1489, %v1490
      %v1492 = vtanh.pop %v1491
      %v1493 = vmul.f32 %v1487, %v1492
      %v1494 = vsel %vm1213, 1, 0
      %1495 = vset.pattern.permute.xlu0 0
      %1496 = vperm.xlu0 %1495, %v1494
      %v1497 = vpop.permute.xlu0 %1496
      %vm1498 = vcmp.eq.s32.totalorder %v1497, 1
      %v1499 = vsel %vm1498, %v1491, %v1488
      %1500 = vst [vmem:[#allocation4] sm:$0xff] %v1499
      %v1501 = vld [vmem:[#allocation3] sm:$0xff]
      %v1502 = vsel %vm1498, %v1493, %v1501
      %1503 = vst [vmem:[#allocation3] sm:$0xff] %v1502
      %v1504 = vsel %vm1498, %v1493, 0.0
      %s1505 = smul.u32 %s1210, 8
      %s1506 = scalar_lea.vmem %s494, %s1505
      %1507 = vst [vmem:[%s1506] sm:$0xff] %v1504
      %s1508 = scalar_select %p1209, 1, 2
      %s1509 = sadd.s32 %s1208, %s1508
      %v1510 = vstv %s1509
      %vm1511 = vcmp.gt.s32.totalorder %v1170, %v1510
      %s1512 = smul.u32 %s1508, 4
      %s1513 = smul.addr %s1512, 8
      %s1514 = scalar_lea.vmem [#allocation2], %s1513
      %v1515 = vld [vmem:[%s1514] sm:$0xff]
      %v1516 = vld [vmem:[%s1514 + $0x8] sm:$0xff]
      %v1517 = vld [vmem:[%s1514 + $0x10] sm:$0xff]
      %v1518 = vld [vmem:[%s1514 + $0x18] sm:$0xff]
      %v1519 = vld [vmem:[#allocation3] sm:$0xff]
      %v1520 = vpack.c.bf16 %v1519, %v1519
      %1521 = vmatprep.subr.bf16.mxu0 %v1320
      %1522 = vmatpush1.bf16.msra.mxu0 %v1319
      %1523 = vmatprep.subr.bf16.mxu0 %v1324
      %1524 = vmatpush1.bf16.msra.mxu0 %v1323
      %1525 = vmatprep.subr.bf16.mxu0 %v1328
      %1526 = vmatpush1.bf16.msra.mxu0 %v1327
      %1527 = vmatprep.subr.bf16.mxu0 %v1332
      %1528 = vmatpush1.bf16.msra.mxu0 %v1331
      %1529 = vmatprep.subr.bf16.mxu0 %v1336
      %1530 = vmatpush1.bf16.msra.mxu0 %v1335
      %1531 = vmatprep.subr.bf16.mxu0 %v1340
      %1532 = vmatpush1.bf16.msra.mxu0 %v1339
      %1533 = vmatprep.subr.bf16.mxu0 %v1344
      %1534 = vmatpush1.bf16.msra.mxu0 %v1343
      %1535 = vmatprep.subr.bf16.mxu0 %v1348
      %1536 = vmatpush1.bf16.msra.mxu0 %v1347
      %1537 = vmatprep.subr.bf16.mxu0 0
      %1538 = vmatpush1.bf16.msra.mxu0 0
      %1539 = vmatprep.subr.bf16.mxu0 0
      %1540 = vmatpush1.bf16.msra.mxu0 0
      %1541 = vmatprep.subr.bf16.mxu0 0
      %1542 = vmatpush1.bf16.msra.mxu0 0
      %1543 = vmatprep.subr.bf16.mxu0 0
      %1544 = vmatpush1.bf16.msra.mxu0 0
      %1545 = vmatprep.subr.bf16.mxu0 0
      %1546 = vmatpush1.bf16.msra.mxu0 0
      %1547 = vmatprep.subr.bf16.mxu0 0
      %1548 = vmatpush1.bf16.msra.mxu0 0
      %1549 = vmatprep.subr.bf16.mxu0 0
      %1550 = vmatpush1.bf16.msra.mxu0 0
      %1551 = vmatprep.subr.bf16.mxu0 0
      %1552 = vmatpush1.bf16.msra.mxu0 0
      %1553 = vmatprep.mubr.bf16.mxu0 0
      %1554 = vmatmul.mubr.bf16.gmra.mrb[0].mxu0 %v1520
      %v1555 = vpop.f32.mrb[0].mxu0
      %v1556 = vadd.f32 0.0, %v1555
      %v1557 = vpop.f32.mrb[0].mxu0
      %v1558 = vadd.f32 0.0, %v1557
      %v1559 = vpop.f32.mrb[0].mxu0
      %v1560 = vpop.f32.mrb[0].mxu0
      %1561 = vdwg.mxu0
      %1562 = vmatprep.subr.bf16.mxu0 %v1322
      %1563 = vmatpush1.bf16.msra.mxu0 %v1321
      %1564 = vmatprep.subr.bf16.mxu0 %v1326
      %1565 = vmatpush1.bf16.msra.mxu0 %v1325
      %1566 = vmatprep.subr.bf16.mxu0 %v1330
      %1567 = vmatpush1.bf16.msra.mxu0 %v1329
      %1568 = vmatprep.subr.bf16.mxu0 %v1334
      %1569 = vmatpush1.bf16.msra.mxu0 %v1333
      %1570 = vmatprep.subr.bf16.mxu0 %v1338
      %1571 = vmatpush1.bf16.msra.mxu0 %v1337
      %1572 = vmatprep.subr.bf16.mxu0 %v1342
      %1573 = vmatpush1.bf16.msra.mxu0 %v1341
      %1574 = vmatprep.subr.bf16.mxu0 %v1346
      %1575 = vmatpush1.bf16.msra.mxu0 %v1345
      %1576 = vmatprep.subr.bf16.mxu0 %v1350
      %1577 = vmatpush1.bf16.msra.mxu0 %v1349
      %1578 = vmatprep.subr.bf16.mxu0 0
      %1579 = vmatpush1.bf16.msra.mxu0 0
      %1580 = vmatprep.subr.bf16.mxu0 0
      %1581 = vmatpush1.bf16.msra.mxu0 0
      %1582 = vmatprep.subr.bf16.mxu0 0
      %1583 = vmatpush1.bf16.msra.mxu0 0
      %1584 = vmatprep.subr.bf16.mxu0 0
      %1585 = vmatpush1.bf16.msra.mxu0 0
      %1586 = vmatprep.subr.bf16.mxu0 0
      %1587 = vmatpush1.bf16.msra.mxu0 0
      %1588 = vmatprep.subr.bf16.mxu0 0
      %1589 = vmatpush1.bf16.msra.mxu0 0
      %1590 = vmatprep.subr.bf16.mxu0 0
      %1591 = vmatpush1.bf16.msra.mxu0 0
      %1592 = vmatprep.subr.bf16.mxu0 0
      %1593 = vmatpush1.bf16.msra.mxu0 0
      %1594 = vmatprep.mubr.bf16.mxu0 0
      %1595 = vmatmul.mubr.bf16.gmra.mrb[0].mxu0 %v1520
      %v1596 = vpop.f32.mrb[0].mxu0
      %v1597 = vadd.f32 0.0, %v1596
      %v1598 = vpop.f32.mrb[0].mxu0
      %v1599 = vadd.f32 0.0, %v1598
      %v1600 = vpop.f32.mrb[0].mxu0
      %v1601 = vpop.f32.mrb[0].mxu0
      %1602 = vdwg.mxu0
      %v1603 = vadd.f32 %v1515, %v1556
      %v1604 = vadd.f32 %v1516, %v1558
      %v1605 = vadd.f32 %v1517, %v1597
      %v1606 = vadd.f32 %v1518, %v1599
      %v1607 = vxor.u32 %v1603, 2147483648
      %v1608 = vmul.f32 %v1607, 1.442695
      %v1609 = vpow.pop %v1608
      %v1610 = vadd.f32 %v1609, 1.0
      %v1611 = vrcp.pop %v1610
      %v1612 = vmul.f32 1.0, %v1611
      %v1613 = vxor.u32 %v1604, 2147483648
      %v1614 = vmul.f32 %v1613, 1.442695
      %v1615 = vpow.pop %v1614
      %v1616 = vadd.f32 %v1615, 1.0
      %v1617 = vrcp.pop %v1616
      %v1618 = vmul.f32 1.0, %v1617
      %v1619 = vtanh.pop %v1605
      %v1620 = vxor.u32 %v1606, 2147483648
      %v1621 = vmul.f32 %v1620, 1.442695
      %v1622 = vpow.pop %v1621
      %v1623 = vadd.f32 %v1622, 1.0
      %v1624 = vrcp.pop %v1623
      %v1625 = vmul.f32 1.0, %v1624
      %v1626 = vld [vmem:[#allocation4] sm:$0xff]
      %v1627 = vmul.f32 %v1618, %v1626
      %v1628 = vmul.f32 %v1612, %v1619
      %v1629 = vadd.f32 %v1627, %v1628
      %v1630 = vtanh.pop %v1629
      %v1631 = vmul.f32 %v1625, %v1630
      %v1632 = vsel %vm1511, 1, 0
      %1633 = vset.pattern.permute.xlu0 0
      %1634 = vperm.xlu0 %1633, %v1632
      %v1635 = vpop.permute.xlu0 %1634
      %vm1636 = vcmp.eq.s32.totalorder %v1635, 1
      %v1637 = vsel %vm1636, %v1629, %v1626
      %1638 = vst [vmem:[#allocation4] sm:$0xff] %v1637
      %v1639 = vld [vmem:[#allocation3] sm:$0xff]
      %v1640 = vsel %vm1636, %v1631, %v1639
      %1641 = vst [vmem:[#allocation3] sm:$0xff] %v1640
      %v1642 = vsel %vm1636, %v1631, 0.0
      %s1643 = smul.u32 %s1508, 8
      %s1644 = scalar_lea.vmem %s494, %s1643
      %1645 = vst [vmem:[%s1644] sm:$0xff] %v1642
      %s1646 = scalar_select %p1209, 2, 1
      %s1647 = sadd.s32 %s1208, %s1646
      %v1648 = vstv %s1647
      %vm1649 = vcmp.gt.s32.totalorder %v1170, %v1648
      %s1650 = smul.u32 %s1646, 4
      %s1651 = smul.addr %s1650, 8
      %s1652 = scalar_lea.vmem [#allocation2], %s1651
      %v1653 = vld [vmem:[%s1652] sm:$0xff]
      %v1654 = vld [vmem:[%s1652 + $0x8] sm:$0xff]
      %v1655 = vld [vmem:[%s1652 + $0x10] sm:$0xff]
      %v1656 = vld [vmem:[%s1652 + $0x18] sm:$0xff]
      %v1657 = vld [vmem:[#allocation3] sm:$0xff]
      %v1658 = vpack.c.bf16 %v1657, %v1657
      %1659 = vmatprep.subr.bf16.mxu0 %v1320
      %1660 = vmatpush1.bf16.msra.mxu0 %v1319
      %1661 = vmatprep.subr.bf16.mxu0 %v1324
      %1662 = vmatpush1.bf16.msra.mxu0 %v1323
      %1663 = vmatprep.subr.bf16.mxu0 %v1328
      %1664 = vmatpush1.bf16.msra.mxu0 %v1327
      %1665 = vmatprep.subr.bf16.mxu0 %v1332
      %1666 = vmatpush1.bf16.msra.mxu0 %v1331
      %1667 = vmatprep.subr.bf16.mxu0 %v1336
      %1668 = vmatpush1.bf16.msra.mxu0 %v1335
      %1669 = vmatprep.subr.bf16.mxu0 %v1340
      %1670 = vmatpush1.bf16.msra.mxu0 %v1339
      %1671 = vmatprep.subr.bf16.mxu0 %v1344
      %1672 = vmatpush1.bf16.msra.mxu0 %v1343
      %1673 = vmatprep.subr.bf16.mxu0 %v1348
      %1674 = vmatpush1.bf16.msra.mxu0 %v1347
      %1675 = vmatprep.subr.bf16.mxu0 0
      %1676 = vmatpush1.bf16.msra.mxu0 0
      %1677 = vmatprep.subr.bf16.mxu0 0
      %1678 = vmatpush1.bf16.msra.mxu0 0
      %1679 = vmatprep.subr.bf16.mxu0 0
      %1680 = vmatpush1.bf16.msra.mxu0 0
      %1681 = vmatprep.subr.bf16.mxu0 0
      %1682 = vmatpush1.bf16.msra.mxu0 0
      %1683 = vmatprep.subr.bf16.mxu0 0
      %1684 = vmatpush1.bf16.msra.mxu0 0
      %1685 = vmatprep.subr.bf16.mxu0 0
      %1686 = vmatpush1.bf16.msra.mxu0 0
      %1687 = vmatprep.subr.bf16.mxu0 0
      %1688 = vmatpush1.bf16.msra.mxu0 0
      %1689 = vmatprep.subr.bf16.mxu0 0
      %1690 = vmatpush1.bf16.msra.mxu0 0
      %1691 = vmatprep.mubr.bf16.mxu0 0
      %1692 = vmatmul.mubr.bf16.gmra.mrb[0].mxu0 %v1658
      %v1693 = vpop.f32.mrb[0].mxu0
      %v1694 = vadd.f32 0.0, %v1693
      %v1695 = vpop.f32.mrb[0].mxu0
      %v1696 = vadd.f32 0.0, %v1695
      %v1697 = vpop.f32.mrb[0].mxu0
      %v1698 = vpop.f32.mrb[0].mxu0
      %1699 = vdwg.mxu0
      %1700 = vmatprep.subr.bf16.mxu0 %v1322
      %1701 = vmatpush1.bf16.msra.mxu0 %v1321
      %1702 = vmatprep.subr.bf16.mxu0 %v1326
      %1703 = vmatpush1.bf16.msra.mxu0 %v1325
      %1704 = vmatprep.subr.bf16.mxu0 %v1330
      %1705 = vmatpush1.bf16.msra.mxu0 %v1329
      %1706 = vmatprep.subr.bf16.mxu0 %v1334
      %1707 = vmatpush1.bf16.msra.mxu0 %v1333
      %1708 = vmatprep.subr.bf16.mxu0 %v1338
      %1709 = vmatpush1.bf16.msra.mxu0 %v1337
      %1710 = vmatprep.subr.bf16.mxu0 %v1342
      %1711 = vmatpush1.bf16.msra.mxu0 %v1341
      %1712 = vmatprep.subr.bf16.mxu0 %v1346
      %1713 = vmatpush1.bf16.msra.mxu0 %v1345
      %1714 = vmatprep.subr.bf16.mxu0 %v1350
      %1715 = vmatpush1.bf16.msra.mxu0 %v1349
      %1716 = vmatprep.subr.bf16.mxu0 0
      %1717 = vmatpush1.bf16.msra.mxu0 0
      %1718 = vmatprep.subr.bf16.mxu0 0
      %1719 = vmatpush1.bf16.msra.mxu0 0
      %1720 = vmatprep.subr.bf16.mxu0 0
      %1721 = vmatpush1.bf16.msra.mxu0 0
      %1722 = vmatprep.subr.bf16.mxu0 0
      %1723 = vmatpush1.bf16.msra.mxu0 0
      %1724 = vmatprep.subr.bf16.mxu0 0
      %1725 = vmatpush1.bf16.msra.mxu0 0
      %1726 = vmatprep.subr.bf16.mxu0 0
      %1727 = vmatpush1.bf16.msra.mxu0 0
      %1728 = vmatprep.subr.bf16.mxu0 0
      %1729 = vmatpush1.bf16.msra.mxu0 0
      %1730 = vmatprep.subr.bf16.mxu0 0
      %1731 = vmatpush1.bf16.msra.mxu0 0
      %1732 = vmatprep.mubr.bf16.mxu0 0
      %1733 = vmatmul.mubr.bf16.gmra.mrb[0].mxu0 %v1658
      %v1734 = vpop.f32.mrb[0].mxu0
      %v1735 = vadd.f32 0.0, %v1734
      %v1736 = vpop.f32.mrb[0].mxu0
      %v1737 = vadd.f32 0.0, %v1736
      %v1738 = vpop.f32.mrb[0].mxu0
      %v1739 = vpop.f32.mrb[0].mxu0
      %1740 = vdwg.mxu0
      %v1741 = vadd.f32 %v1653, %v1694
      %v1742 = vadd.f32 %v1654, %v1696
      %v1743 = vadd.f32 %v1655, %v1735
      %v1744 = vadd.f32 %v1656, %v1737
      %v1745 = vxor.u32 %v1741, 2147483648
      %v1746 = vmul.f32 %v1745, 1.442695
      %v1747 = vpow.pop %v1746
      %v1748 = vadd.f32 %v1747, 1.0
      %v1749 = vrcp.pop %v1748
      %v1750 = vmul.f32 1.0, %v1749
      %v1751 = vxor.u32 %v1742, 2147483648
      %v1752 = vmul.f32 %v1751, 1.442695
      %v1753 = vpow.pop %v1752
      %v1754 = vadd.f32 %v1753, 1.0
      %v1755 = vrcp.pop %v1754
      %v1756 = vmul.f32 1.0, %v1755
      %v1757 = vtanh.pop %v1743
      %v1758 = vxor.u32 %v1744, 2147483648
      %v1759 = vmul.f32 %v1758, 1.442695
      %v1760 = vpow.pop %v1759
      %v1761 = vadd.f32 %v1760, 1.0
      %v1762 = vrcp.pop %v1761
      %v1763 = vmul.f32 1.0, %v1762
      %v1764 = vld [vmem:[#allocation4] sm:$0xff]
      %v1765 = vmul.f32 %v1756, %v1764
      %v1766 = vmul.f32 %v1750, %v1757
      %v1767 = vadd.f32 %v1765, %v1766
      %v1768 = vtanh.pop %v1767
      %v1769 = vmul.f32 %v1763, %v1768
      %v1770 = vsel %vm1649, 1, 0
      %1771 = vset.pattern.permute.xlu0 0
      %1772 = vperm.xlu0 %1771, %v1770
      %v1773 = vpop.permute.xlu0 %1772
      %vm1774 = vcmp.eq.s32.totalorder %v1773, 1
      %v1775 = vsel %vm1774, %v1767, %v1764
      %1776 = vst [vmem:[#allocation4] sm:$0xff] %v1775
      %v1777 = vld [vmem:[#allocation3] sm:$0xff]
      %v1778 = vsel %vm1774, %v1769, %v1777
      %1779 = vst [vmem:[#allocation3] sm:$0xff] %v1778
      %v1780 = vsel %vm1774, %v1769, 0.0
      %s1781 = smul.u32 %s1646, 8
      %s1782 = scalar_lea.vmem %s494, %s1781
      %1783 = vst [vmem:[%s1782] sm:$0xff] %v1780
      %s1784 = scalar_select %p1209, 3, 0
      %s1785 = sadd.s32 %s1208, %s1784
      %v1786 = vstv %s1785
      %vm1787 = vcmp.gt.s32.totalorder %v1170, %v1786
      %s1788 = smul.u32 %s1784, 4
      %s1789 = smul.addr %s1788, 8
      %s1790 = scalar_lea.vmem [#allocation2], %s1789
      %v1791 = vld [vmem:[%s1790] sm:$0xff]
      %v1792 = vld [vmem:[%s1790 + $0x8] sm:$0xff]
      %v1793 = vld [vmem:[%s1790 + $0x10] sm:$0xff]
      %v1794 = vld [vmem:[%s1790 + $0x18] sm:$0xff]
      %v1795 = vld [vmem:[#allocation3] sm:$0xff]
      %v1796 = vpack.c.bf16 %v1795, %v1795
      %1797 = vmatprep.subr.bf16.mxu0 %v1320
      %1798 = vmatpush1.bf16.msra.mxu0 %v1319
      %1799 = vmatprep.subr.bf16.mxu0 %v1324
      %1800 = vmatpush1.bf16.msra.mxu0 %v1323
      %1801 = vmatprep.subr.bf16.mxu0 %v1328
      %1802 = vmatpush1.bf16.msra.mxu0 %v1327
      %1803 = vmatprep.subr.bf16.mxu0 %v1332
      %1804 = vmatpush1.bf16.msra.mxu0 %v1331
      %1805 = vmatprep.subr.bf16.mxu0 %v1336
      %1806 = vmatpush1.bf16.msra.mxu0 %v1335
      %1807 = vmatprep.subr.bf16.mxu0 %v1340
      %1808 = vmatpush1.bf16.msra.mxu0 %v1339
      %1809 = vmatprep.subr.bf16.mxu0 %v1344
      %1810 = vmatpush1.bf16.msra.mxu0 %v1343
      %1811 = vmatprep.subr.bf16.mxu0 %v1348
      %1812 = vmatpush1.bf16.msra.mxu0 %v1347
      %1813 = vmatprep.subr.bf16.mxu0 0
      %1814 = vmatpush1.bf16.msra.mxu0 0
      %1815 = vmatprep.subr.bf16.mxu0 0
      %1816 = vmatpush1.bf16.msra.mxu0 0
      %1817 = vmatprep.subr.bf16.mxu0 0
      %1818 = vmatpush1.bf16.msra.mxu0 0
      %1819 = vmatprep.subr.bf16.mxu0 0
      %1820 = vmatpush1.bf16.msra.mxu0 0
      %1821 = vmatprep.subr.bf16.mxu0 0
      %1822 = vmatpush1.bf16.msra.mxu0 0
      %1823 = vmatprep.subr.bf16.mxu0 0
      %1824 = vmatpush1.bf16.msra.mxu0 0
      %1825 = vmatprep.subr.bf16.mxu0 0
      %1826 = vmatpush1.bf16.msra.mxu0 0
      %1827 = vmatprep.subr.bf16.mxu0 0
      %1828 = vmatpush1.bf16.msra.mxu0 0
      %1829 = vmatprep.mubr.bf16.mxu0 0
      %1830 = vmatmul.mubr.bf16.gmra.mrb[0].mxu0 %v1796
      %v1831 = vpop.f32.mrb[0].mxu0
      %v1832 = vadd.f32 0.0, %v1831
      %v1833 = vpop.f32.mrb[0].mxu0
      %v1834 = vadd.f32 0.0, %v1833
      %v1835 = vpop.f32.mrb[0].mxu0
      %v1836 = vpop.f32.mrb[0].mxu0
      %1837 = vdwg.mxu0
      %1838 = vmatprep.subr.bf16.mxu0 %v1322
      %1839 = vmatpush1.bf16.msra.mxu0 %v1321
      %1840 = vmatprep.subr.bf16.mxu0 %v1326
      %1841 = vmatpush1.bf16.msra.mxu0 %v1325
      %1842 = vmatprep.subr.bf16.mxu0 %v1330
      %1843 = vmatpush1.bf16.msra.mxu0 %v1329
      %1844 = vmatprep.subr.bf16.mxu0 %v1334
      %1845 = vmatpush1.bf16.msra.mxu0 %v1333
      %1846 = vmatprep.subr.bf16.mxu0 %v1338
      %1847 = vmatpush1.bf16.msra.mxu0 %v1337
      %1848 = vmatprep.subr.bf16.mxu0 %v1342
      %1849 = vmatpush1.bf16.msra.mxu0 %v1341
      %1850 = vmatprep.subr.bf16.mxu0 %v1346
      %1851 = vmatpush1.bf16.msra.mxu0 %v1345
      %1852 = vmatprep.subr.bf16.mxu0 %v1350
      %1853 = vmatpush1.bf16.msra.mxu0 %v1349
      %1854 = vmatprep.subr.bf16.mxu0 0
      %1855 = vmatpush1.bf16.msra.mxu0 0
      %1856 = vmatprep.subr.bf16.mxu0 0
      %1857 = vmatpush1.bf16.msra.mxu0 0
      %1858 = vmatprep.subr.bf16.mxu0 0
      %1859 = vmatpush1.bf16.msra.mxu0 0
      %1860 = vmatprep.subr.bf16.mxu0 0
      %1861 = vmatpush1.bf16.msra.mxu0 0
      %1862 = vmatprep.subr.bf16.mxu0 0
      %1863 = vmatpush1.bf16.msra.mxu0 0
      %1864 = vmatprep.subr.bf16.mxu0 0
      %1865 = vmatpush1.bf16.msra.mxu0 0
      %1866 = vmatprep.subr.bf16.mxu0 0
      %1867 = vmatpush1.bf16.msra.mxu0 0
      %1868 = vmatprep.subr.bf16.mxu0 0
      %1869 = vmatpush1.bf16.msra.mxu0 0
      %1870 = vmatprep.mubr.bf16.mxu0 0
      %1871 = vmatmul.mubr.bf16.gmra.mrb[0].mxu0 %v1796
      %v1872 = vpop.f32.mrb[0].mxu0
      %v1873 = vadd.f32 0.0, %v1872
      %v1874 = vpop.f32.mrb[0].mxu0
      %v1875 = vadd.f32 0.0, %v1874
      %v1876 = vpop.f32.mrb[0].mxu0
      %v1877 = vpop.f32.mrb[0].mxu0
      %1878 = vdwg.mxu0
      %v1879 = vadd.f32 %v1791, %v1832
      %v1880 = vadd.f32 %v1792, %v1834
      %v1881 = vadd.f32 %v1793, %v1873
      %v1882 = vadd.f32 %v1794, %v1875
      %v1883 = vxor.u32 %v1879, 2147483648
      %v1884 = vmul.f32 %v1883, 1.442695
      %v1885 = vpow.pop %v1884
      %v1886 = vadd.f32 %v1885, 1.0
      %v1887 = vrcp.pop %v1886
      %v1888 = vmul.f32 1.0, %v1887
      %v1889 = vxor.u32 %v1880, 2147483648
      %v1890 = vmul.f32 %v1889, 1.442695
      %v1891 = vpow.pop %v1890
      %v1892 = vadd.f32 %v1891, 1.0
      %v1893 = vrcp.pop %v1892
      %v1894 = vmul.f32 1.0, %v1893
      %v1895 = vtanh.pop %v1881
      %v1896 = vxor.u32 %v1882, 2147483648
      %v1897 = vmul.f32 %v1896, 1.442695
      %v1898 = vpow.pop %v1897
      %v1899 = vadd.f32 %v1898, 1.0
      %v1900 = vrcp.pop %v1899
      %v1901 = vmul.f32 1.0, %v1900
      %v1902 = vld [vmem:[#allocation4] sm:$0xff]
      %v1903 = vmul.f32 %v1894, %v1902
      %v1904 = vmul.f32 %v1888, %v1895
      %v1905 = vadd.f32 %v1903, %v1904
      %v1906 = vtanh.pop %v1905
      %v1907 = vmul.f32 %v1901, %v1906
      %v1908 = vsel %vm1787, 1, 0
      %1909 = vset.pattern.permute.xlu0 0
      %1910 = vperm.xlu0 %1909, %v1908
      %v1911 = vpop.permute.xlu0 %1910
      %vm1912 = vcmp.eq.s32.totalorder %v1911, 1
      %v1913 = vsel %vm1912, %v1905, %v1902
      %1914 = vst [vmem:[#allocation4] sm:$0xff] %v1913
      %v1915 = vld [vmem:[#allocation3] sm:$0xff]
      %v1916 = vsel %vm1912, %v1907, %v1915
      %1917 = vst [vmem:[#allocation3] sm:$0xff] %v1916
      %v1918 = vsel %vm1912, %v1907, 0.0
      %s1919 = smul.u32 %s1784, 8
      %s1920 = scalar_lea.vmem %s494, %s1919
      %1921 = vst [vmem:[%s1920] sm:$0xff] %v1918
      %s1922 = ssub.s32 1, %s22
      %s1923 = smul.u32 %s1922, %s23
      %s1924 = ssub.s32 1, %s23
      %s1925 = smul.u32 %s22, %s1924
      %s1926 = sadd.s32 %s1923, %s1925
      %s1927 = smul.u32 4, %s1926
      %p1928 = scmp.lt.s32.totalorder %s22, 1
      %s1929 = scalar_select %p1928, %s22, 1
      %p1930 = scmp.lt.s32.totalorder %s1927, 7
      %s1931 = scalar_select %p1930, %s1927, 7
      %s1932 = smul.addr %s1929, 8
      %s1933 = sadd.s32 %s1931, %s1932
      %s1934 = smul.addr %s1933, 8
      %s1935 = scalar_lea.vmem %s7, %s1934
      // Predicated region
      $region53: #{rnn_encoder_forward.3} parent=47 // pred_check
        %p1936 = pneg %p257
      $region54: #{rnn_encoder_forward.3} parent=47 // pred_check_branch
        %1938 = sbr.rel (%p1936) target = $region56
      $region55: #{rnn_encoder_forward.3} parent=47 // pred_region
        %s1939 = ssub.s32 1, %s22
        %s1940 = smul.u32 %s1939, %s23
        %s1941 = ssub.s32 1, %s23
        %s1942 = smul.u32 %s22, %s1941
        %s1943 = sadd.s32 %s1940, %s1942
        %s1944 = smul.u32 4, %s1943
      $region56: #{rnn_encoder_forward.3} parent=47 // pred_fallthru
        _
    $region48: #{rnn_encoder_forward.3} parent=5 // pred_fallthru
      _
    %p1945 = scmp.le.s32.totalorder 2, %s13
    // Predicated region
    $region57: #{rnn_encoder_forward.3} parent=5 // pred_check
      %p1946 = pneg %p1945
    $region58: #{rnn_encoder_forward.3} parent=5 // pred_check_branch
      %1948 = sbr.rel (%p1946) target = $region60
    $region59: #{rnn_encoder_forward.3} parent=5 // pred_region
      %s1949 = ssub.s32 %s13, 2
      // Predicated region
      $region61: #{rnn_encoder_forward.3} parent=59 // pred_check
        %p1950 = pneg %p263
      $region62: #{rnn_encoder_forward.3} parent=59 // pred_check_branch
        %1952 = sbr.rel (%p1950) target = $region64
      $region63: #{rnn_encoder_forward.3} parent=59 // pred_region
        %s1953 = ssub.s32 1, %s24
        %s1954 = smul.u32 %s1953, %s25
        %s1955 = ssub.s32 1, %s25
        %s1956 = smul.u32 %s24, %s1955
        %s1957 = sadd.s32 %s1954, %s1956
        %s1958 = smul.u32 4, %s1957
        %p1959 = scmp.lt.s32.totalorder %s24, 1
        %s1960 = scalar_select %p1959, %s24, 1
        %p1961 = scmp.lt.s32.totalorder %s1958, 7
        %s1962 = scalar_select %p1961, %s1958, 7
        %s1963 = smul.addr %s1960, 8
        %s1964 = sadd.s32 %s1962, %s1963
        %s1965 = smul.addr %s1964, 8
        %s1966 = scalar_lea.vmem %s7, %s1965
      $region64: #{rnn_encoder_forward.3} parent=59 // pred_fallthru
        _
    $region60: #{rnn_encoder_forward.3} parent=5 // pred_fallthru
      _
  $region6: #{rnn_encoder_forward.3} parent=0 // loop_footer
    %s17 = sadd.s32 1, %s13
  $region7: #{rnn_encoder_forward.3} parent=0 // loop_footer_branch
    %12 = sbr.rel target = $region3
  $region8: #{rnn_encoder_forward.3} parent=0 // loop_exit
    _

</llo_original>
